<compile_context>
chip_gen: v7x
topology: tpu7x:2x2x1
jax: 0.10.0
libtpu: 0.0.40
codegen_flags: <defaults>
</compile_context>

<pallas_src>
import functools
import math

import numpy as np
import jax
import jax.numpy as jnp
from jax.experimental import pallas as pl
from jax.experimental.pallas import tpu as pltpu

LN_EPS = 1e-5      # torch.nn.LayerNorm default


def _round_up(x, m):
    return ((x + m - 1) // m) * m


def _mm_nt(x, w):
    """x @ w.T (PyTorch Linear weight layout), f32 accumulation on the MXU."""
    return jax.lax.dot_general(
        x, w, (((1,), (1,)), ((), ())), preferred_element_type=jnp.float32
    )


def _layer_norm(x, w, b):
    mu = jnp.mean(x, axis=-1, keepdims=True)
    var = jnp.mean((x - mu) ** 2, axis=-1, keepdims=True)
    return (x - mu) * jax.lax.rsqrt(var + LN_EPS) * w + b


def _softmax_rows(s):
    s = s - jnp.max(s, axis=-1, keepdims=True)
    p = jnp.exp(s)
    return p * pl.reciprocal(jnp.sum(p, axis=-1, keepdims=True), approx=True)


# ------------------------------ fused kernel ------------------------------- #

def _decoder_kernel(z_ref, slab_ref, o_ref, *,
                    layout, batch, seq, num_heads, n_layers, d_model):
    B, S, H, D = batch, seq, num_heads, d_model
    hd = D // H
    M = B * S
    HB = H * B

    def P(name):
        r0, nr, nc = layout[name]          # static python ints -> free slice views
        return slab_ref[r0:r0 + nr, 0:nc]

    # fc_z: (B*S, L) -> (B*S, D)   (batch-major flat layout end-to-end)
    h = _mm_nt(z_ref[...], P("fc_z_w")) + P("fc_z_b")

    # Causal additive mask, built once and pre-broadcast to the batched-head shape.
    row = jax.lax.broadcasted_iota(jnp.int32, (S, S), 0)
    col = jax.lax.broadcasted_iota(jnp.int32, (S, S), 1)
    mask = jnp.where(col > row, -1e30, 0.0).astype(jnp.float32)
    mask = jnp.broadcast_to(mask[None], (HB, S, S))

    for li in range(n_layers):
        # Fused QKV projection (torch in_proj); 1/sqrt(hd) already folded into the Q slab rows.
        qkv = _mm_nt(h, P(f"wqkv_{li}")) + P(f"bqkv_{li}")          # (M, 3D)

        # Fold (head, batch) into one leading batch dim using only safe ops:
        # static lane slices + leading-dim reshapes + axis-0 concat.
        qs, ks, vs = [], [], []
        for hh in range(H):
            lo = hh * hd
            qs.append(qkv[:, lo:lo + hd].reshape(B, S, hd))
            ks.append(qkv[:, D + lo:D + lo + hd].reshape(B, S, hd))
            vs.append(qkv[:, 2 * D + lo:2 * D + lo + hd].reshape(B, S, hd))
        q = jnp.concatenate(qs, axis=0)                              # (H*B, S, hd)
        k = jnp.concatenate(ks, axis=0)
        v = jnp.concatenate(vs, axis=0)

        # Two batched einsums + a single softmax for all heads/batches.
        s = jnp.einsum("zqd,zkd->zqk", q, k,
                       preferred_element_type=jnp.float32) + mask    # (H*B, S, S)
        p = _softmax_rows(s)
        o = jnp.einsum("zqk,zkd->zqd", p, v,
                       preferred_element_type=jnp.float32)           # (H*B, S, hd)

        # Back to (B*S, D) concat-heads layout (one lane concat per layer).
        attn = jnp.concatenate(
            [o[hh * B:(hh + 1) * B].reshape(M, hd) for hh in range(H)], axis=-1)

        # Output projection + residual + post-LayerNorm (norm_first=False).
        attn = _mm_nt(attn, P(f"wo_{li}")) + P(f"bo_{li}")
        h = _layer_norm(h + attn, P(f"ln1w_{li}"), P(f"ln1b_{li}"))

        # Feed-forward (relu, hidden padded to a lane-dense width with zero rows/cols: exact).
        h1 = jnp.maximum(_mm_nt(h, P(f"w1_{li}")) + P(f"b1_{li}"), 0.0)
        ffn = _mm_nt(h1, P(f"w2_{li}")) + P(f"b2_{li}")
        h = _layer_norm(h + ffn, P(f"ln2w_{li}"), P(f"ln2b_{li}"))

    # Final linear (out features zero-padded to a 128-multiple -> wide unmasked store) + sigmoid.
    o_ref[...] = jax.nn.sigmoid(_mm_nt(h, P("out_w")) + P("out_b"))


# ----------------------- one-time parameter packing ------------------------ #

def pack_params(params, num_heads):
    """Pack all weights into ONE contiguous f32 slab (single HBM->VMEM DMA).

    Done once at init: folds 1/sqrt(hd) into the Q projection, zero-pads d_hid and
    the output head to 128-multiples, and records static (row, nrows, ncols) offsets.
    """
    d_model = int(params["fc_z_w"].shape[0])
    latent = int(params["fc_z_w"].shape[1])
    n_layers = int(params["wqkv"].shape[0])
    d_hid = int(params["w1"].shape[1])
    neuron_num = int(params["out_w"].shape[0])
    hd = d_model // num_heads
    scale = 1.0 / math.sqrt(hd)
    hid_pad = _round_up(d_hid, 128)
    out_pad = _round_up(neuron_num, 128)

    entries = []

    def add(name, arr):
        a = np.asarray(arr, np.float32)
        if a.ndim == 1:
            a = a[None, :]
        entries.append((name, a))

    add("fc_z_w", params["fc_z_w"])
    add("fc_z_b", params["fc_z_b"])

    for li in range(n_layers):
        wqkv = np.array(params["wqkv"][li], np.float32)
        bqkv = np.array(params["bqkv"][li], np.float32).reshape(1, -1)
        wqkv[:d_model] *= scale          # fold attention scale into Q rows
        bqkv[:, :d_model] *= scale
        add(f"wqkv_{li}", wqkv)
        add(f"bqkv_{li}", bqkv)
        add(f"wo_{li}", params["wo"][li])
        add(f"bo_{li}", params["bo"][li])
        add(f"ln1w_{li}", params["ln1w"][li])
        add(f"ln1b_{li}", params["ln1b"][li])
        w1 = np.zeros((hid_pad, d_model), np.float32)
        w1[:d_hid] = np.asarray(params["w1"][li], np.float32)
        b1 = np.zeros((1, hid_pad), np.float32)
        b1[:, :d_hid] = np.asarray(params["b1"][li], np.float32).reshape(1, -1)
        w2 = np.zeros((d_model, hid_pad), np.float32)
        w2[:, :d_hid] = np.asarray(params["w2"][li], np.float32)
        add(f"w1_{li}", w1)
        add(f"b1_{li}", b1)
        add(f"w2_{li}", w2)
        add(f"b2_{li}", params["b2"][li])
        add(f"ln2w_{li}", params["ln2w"][li])
        add(f"ln2b_{li}", params["ln2b"][li])

    out_w = np.zeros((out_pad, d_model), np.float32)
    out_w[:neuron_num] = np.asarray(params["out_w"], np.float32)
    out_b = np.zeros((1, out_pad), np.float32)
    out_b[:, :neuron_num] = np.asarray(params["out_b"], np.float32).reshape(1, -1)
    add("out_w", out_w)
    add("out_b", out_b)

    slab_cols = _round_up(max(a.shape[1] for _, a in entries), 128)
    layout = {}
    row = 0
    for name, a in entries:
        layout[name] = (row, a.shape[0], a.shape[1])
        row += _round_up(a.shape[0], 8)
    slab = np.zeros((_round_up(row, 8), slab_cols), np.float32)
    for name, a in entries:
        r0, nr, nc = layout[name]
        slab[r0:r0 + nr, :nc] = a

    static = dict(layout=layout, d_model=d_model, latent_dim=latent,
                  n_layers=n_layers, num_heads=num_heads,
                  neuron_num=neuron_num, out_pad=out_pad)
    return jnp.asarray(slab), static


# --------------------------------- wrapper --------------------------------- #

_VMEM = pl.BlockSpec(memory_space=pltpu.MemorySpace.VMEM)


def decoder_forward(z, slab, static):
    """z: (S, B, latent_dim) f32 -> (S, B, neuron_num) f32 (PyTorch seq-first API)."""
    S, B, L = z.shape
    D = static["d_model"]
    H = static["num_heads"]
    n_layers = static["n_layers"]
    out_pad = static["out_pad"]
    neuron_num = static["neuron_num"]

    # Keep B*S a multiple of 8 (unmasked sublane stores, esp. on v5e's single vst slot).
    B_pad = B
    while (B_pad * S) % 8:
        B_pad += 1
    if B_pad != B:
        z = jnp.concatenate([z, jnp.zeros((S, B_pad - B, L), z.dtype)], axis=1)

    # Batch-major flat layout for the kernel (seq stays on sublanes; no in-kernel transposes).
    z_flat = jnp.transpose(z, (1, 0, 2)).reshape(B_pad * S, L)

    kernel = functools.partial(_decoder_kernel, layout=static["layout"],
                               batch=B_pad, seq=S, num_heads=H,
                               n_layers=n_layers, d_model=D)

    out = pl.pallas_call(
        kernel,
        out_shape=jax.ShapeDtypeStruct((B_pad * S, out_pad), jnp.float32),
        in_specs=[_VMEM, _VMEM],        # activation + single packed weight slab
        out_specs=_VMEM,
    )(z_flat, slab)

    out = out.reshape(B_pad, S, out_pad)[:B, :, :neuron_num]
    return jnp.transpose(out, (1, 0, 2))                                # (S, B, neuron_num)


# --------------------------- parameter creation ----------------------------- #

def init_params(key, latent_dim, d_model, d_hid, n_layers, neuron_num):
    def dense(k, shape):
        return 0.05 * jax.random.normal(k, shape, jnp.float32)

    keys = jax.random.split(key, 6)
    return {
        "fc_z_w": dense(keys[0], (d_model, latent_dim)),
        "fc_z_b": jnp.zeros((1, d_model), jnp.float32),
        "out_w": dense(keys[1], (neuron_num, d_model)),
        "out_b": jnp.zeros((1, neuron_num), jnp.float32),
        # Per-layer weights stacked with a leading layer axis (packed into the slab once).
        "wqkv": dense(keys[2], (n_layers, 3 * d_model, d_model)),
        "bqkv": jnp.zeros((n_layers, 1, 3 * d_model), jnp.float32),
        "wo": dense(keys[3], (n_layers, d_model, d_model)),
        "bo": jnp.zeros((n_layers, 1, d_model), jnp.float32),
        "ln1w": jnp.ones((n_layers, 1, d_model), jnp.float32),
        "ln1b": jnp.zeros((n_layers, 1, d_model), jnp.float32),
        "w1": dense(keys[4], (n_layers, d_hid, d_model)),
        "b1": jnp.zeros((n_layers, 1, d_hid), jnp.float32),
        "w2": dense(keys[5], (n_layers, d_model, d_hid)),
        "b2": jnp.zeros((n_layers, 1, d_model), jnp.float32),
        "ln2w": jnp.ones((n_layers, 1, d_model), jnp.float32),
        "ln2b": jnp.zeros((n_layers, 1, d_model), jnp.float32),
    }


# ----------------------------------- main ------------------------------------ #

if __name__ == "__main__":
    # Small config: EMBED_DIM=32, LATENT_DIM=16, NUM_HEADS=4, HIDDEN_SIZE=64,
    # N_LAYERS_DECODER=2, neuron_num=10; seq=8, batch=2.
    S, B = 8, 2
    latent_dim, d_model, n_head, d_hid, n_layers, neuron_num = 16, 32, 4, 64, 2, 10

    key = jax.random.PRNGKey(0)
    kp, kz = jax.random.split(key)
    params = init_params(kp, latent_dim, d_model, d_hid, n_layers, neuron_num)
    slab, static = pack_params(params, n_head)   # one-time pack / pad / scale-fold
    z = jax.random.normal(kz, (S, B, latent_dim), jnp.float32)

    out = decoder_forward(z, slab, static)
    out = jax.block_until_ready(out)

    assert out.shape == (S, B, neuron_num), out.shape
    assert bool(jnp.all(jnp.isfinite(out)))
    assert bool(jnp.all((out >= 0.0) & (out <= 1.0)))  # sigmoid range
    print("KERNEL_OK")
</pallas_src>

<mosaic_0001>
module attributes {stable_mosaic.version = 11 : i64} {
  func.func @_decoder_kernel(%arg0: memref<16x16xf32, #tpu.memory_space<vmem>>, %arg1: memref<880x128xf32, #tpu.memory_space<vmem>>, %arg2: memref<16x128xf32, #tpu.memory_space<vmem>>) attributes {dimension_semantics = [], scalar_prefetch = 0 : i64, scratch_operands = 0 : i64, tpu.core_type = #tpu.core_type<tc>} {
    %c0 = arith.constant 0 : index
    %c0_0 = arith.constant 0 : index
    %0 = vector.load %arg0[%c0, %c0_0] : memref<16x16xf32, #tpu.memory_space<vmem>>, vector<16x16xf32>
    %c0_1 = arith.constant 0 : index
    %c0_2 = arith.constant 0 : index
    %1 = vector.load %arg1[%c0_1, %c0_2] : memref<880x128xf32, #tpu.memory_space<vmem>>, vector<32x16xf32>
    %cst = arith.constant dense<0.000000e+00> : vector<16x32xf32>
    %2 = tpu.matmul %0, %1, %cst {dimension_numbers = #tpu.dot_dimension_numbers<[1], [1], [0], [0], [0, 0, 1, 0], [], []>} : vector<16x16xf32>, vector<32x16xf32>, vector<16x32xf32> -> vector<16x32xf32>
    %c32 = arith.constant 32 : index
    %c0_3 = arith.constant 0 : index
    %3 = vector.load %arg1[%c32, %c0_3] : memref<880x128xf32, #tpu.memory_space<vmem>>, vector<1x32xf32>
    %4 = vector.broadcast %3 : vector<1x32xf32> to vector<16x32xf32>
    %5 = arith.addf %2, %4 : vector<16x32xf32>
    %6 = tpu.iota {dimensions = array<i32: 0>} : vector<8x8xi32>
    %7 = tpu.iota {dimensions = array<i32: 1>} : vector<8x8xi32>
    %8 = arith.cmpi sgt, %7, %6 : vector<8x8xi32>
    %cst_4 = arith.constant -1.000000e+30 : f32
    %cst_5 = arith.constant 0.000000e+00 : f32
    %9 = vector.broadcast %cst_4 : f32 to vector<8x8xf32>
    %10 = vector.broadcast %cst_5 : f32 to vector<8x8xf32>
    %11 = arith.select %8, %9, %10 : vector<8x8xi1>, vector<8x8xf32>
    %12 = vector.shape_cast %11 : vector<8x8xf32> to vector<1x8x8xf32>
    %13 = vector.shape_cast %12 : vector<1x8x8xf32> to vector<1x8x8xf32>
    %14 = vector.broadcast %13 : vector<1x8x8xf32> to vector<8x8x8xf32>
    %c40 = arith.constant 40 : index
    %c0_6 = arith.constant 0 : index
    %15 = vector.load %arg1[%c40, %c0_6] : memref<880x128xf32, #tpu.memory_space<vmem>>, vector<96x32xf32>
    %cst_7 = arith.constant dense<0.000000e+00> : vector<16x96xf32>
    %16 = tpu.matmul %5, %15, %cst_7 {dimension_numbers = #tpu.dot_dimension_numbers<[1], [1], [0], [0], [0, 0, 1, 0], [], []>} : vector<16x32xf32>, vector<96x32xf32>, vector<16x96xf32> -> vector<16x96xf32>
    %c136 = arith.constant 136 : index
    %c0_8 = arith.constant 0 : index
    %17 = vector.load %arg1[%c136, %c0_8] : memref<880x128xf32, #tpu.memory_space<vmem>>, vector<1x96xf32>
    %18 = vector.broadcast %17 : vector<1x96xf32> to vector<16x96xf32>
    %19 = arith.addf %16, %18 : vector<16x96xf32>
    %20 = vector.extract_strided_slice %19 {offsets = [0, 0], sizes = [16, 8], strides = [1, 1]} : vector<16x96xf32> to vector<16x8xf32>
    %21 = vector.shape_cast %20 : vector<16x8xf32> to vector<2x8x8xf32>
    %22 = vector.extract_strided_slice %19 {offsets = [0, 32], sizes = [16, 8], strides = [1, 1]} : vector<16x96xf32> to vector<16x8xf32>
    %23 = vector.shape_cast %22 : vector<16x8xf32> to vector<2x8x8xf32>
    %24 = vector.extract_strided_slice %19 {offsets = [0, 64], sizes = [16, 8], strides = [1, 1]} : vector<16x96xf32> to vector<16x8xf32>
    %25 = vector.shape_cast %24 : vector<16x8xf32> to vector<2x8x8xf32>
    %26 = vector.extract_strided_slice %19 {offsets = [0, 8], sizes = [16, 8], strides = [1, 1]} : vector<16x96xf32> to vector<16x8xf32>
    %27 = vector.shape_cast %26 : vector<16x8xf32> to vector<2x8x8xf32>
    %28 = vector.extract_strided_slice %19 {offsets = [0, 40], sizes = [16, 8], strides = [1, 1]} : vector<16x96xf32> to vector<16x8xf32>
    %29 = vector.shape_cast %28 : vector<16x8xf32> to vector<2x8x8xf32>
    %30 = vector.extract_strided_slice %19 {offsets = [0, 72], sizes = [16, 8], strides = [1, 1]} : vector<16x96xf32> to vector<16x8xf32>
    %31 = vector.shape_cast %30 : vector<16x8xf32> to vector<2x8x8xf32>
    %32 = vector.extract_strided_slice %19 {offsets = [0, 16], sizes = [16, 8], strides = [1, 1]} : vector<16x96xf32> to vector<16x8xf32>
    %33 = vector.shape_cast %32 : vector<16x8xf32> to vector<2x8x8xf32>
    %34 = vector.extract_strided_slice %19 {offsets = [0, 48], sizes = [16, 8], strides = [1, 1]} : vector<16x96xf32> to vector<16x8xf32>
    %35 = vector.shape_cast %34 : vector<16x8xf32> to vector<2x8x8xf32>
    %36 = vector.extract_strided_slice %19 {offsets = [0, 80], sizes = [16, 8], strides = [1, 1]} : vector<16x96xf32> to vector<16x8xf32>
    %37 = vector.shape_cast %36 : vector<16x8xf32> to vector<2x8x8xf32>
    %38 = vector.extract_strided_slice %19 {offsets = [0, 24], sizes = [16, 8], strides = [1, 1]} : vector<16x96xf32> to vector<16x8xf32>
    %39 = vector.shape_cast %38 : vector<16x8xf32> to vector<2x8x8xf32>
    %40 = vector.extract_strided_slice %19 {offsets = [0, 56], sizes = [16, 8], strides = [1, 1]} : vector<16x96xf32> to vector<16x8xf32>
    %41 = vector.shape_cast %40 : vector<16x8xf32> to vector<2x8x8xf32>
    %42 = vector.extract_strided_slice %19 {offsets = [0, 88], sizes = [16, 8], strides = [1, 1]} : vector<16x96xf32> to vector<16x8xf32>
    %43 = vector.shape_cast %42 : vector<16x8xf32> to vector<2x8x8xf32>
    %44 = tpu.concatenate %21, %27, %33, %39 in 0 : vector<2x8x8xf32>, vector<2x8x8xf32>, vector<2x8x8xf32>, vector<2x8x8xf32> -> vector<8x8x8xf32>
    %45 = tpu.concatenate %23, %29, %35, %41 in 0 : vector<2x8x8xf32>, vector<2x8x8xf32>, vector<2x8x8xf32>, vector<2x8x8xf32> -> vector<8x8x8xf32>
    %46 = tpu.concatenate %25, %31, %37, %43 in 0 : vector<2x8x8xf32>, vector<2x8x8xf32>, vector<2x8x8xf32>, vector<2x8x8xf32> -> vector<8x8x8xf32>
    "tpu.trace_start"() <{level = 10 : i32, message = "zqd,zkd->zqk"}> : () -> ()
    %cst_9 = arith.constant dense<0.000000e+00> : vector<8x8x8xf32>
    %47 = tpu.matmul %44, %45, %cst_9 {dimension_numbers = #tpu.dot_dimension_numbers<[2], [2], [1], [1], [0, 0, 0, 1, 1, 1], [0], [0]>} : vector<8x8x8xf32>, vector<8x8x8xf32>, vector<8x8x8xf32> -> vector<8x8x8xf32>
    "tpu.trace_stop"() : () -> ()
    %48 = arith.addf %47, %14 : vector<8x8x8xf32>
    %cst_10 = arith.constant dense<0xFF800000> : vector<8x8xf32>
    %49 = vector.multi_reduction <maximumf>, %48, %cst_10 [2] : vector<8x8x8xf32> to vector<8x8xf32>
    %50 = vector.shape_cast %49 : vector<8x8xf32> to vector<8x8x1xf32>
    %51 = vector.broadcast %50 : vector<8x8x1xf32> to vector<8x8x8xf32>
    %52 = arith.subf %48, %51 : vector<8x8x8xf32>
    %53 = math.exp %52 : vector<8x8x8xf32>
    %cst_11 = arith.constant dense<0.000000e+00> : vector<8x8xf32>
    %54 = vector.multi_reduction <add>, %53, %cst_11 [2] : vector<8x8x8xf32> to vector<8x8xf32>
    %55 = vector.shape_cast %54 : vector<8x8xf32> to vector<8x8x1xf32>
    %56 = tpu.reciprocal %55 {approx = true} : vector<8x8x1xf32> -> vector<8x8x1xf32>
    %57 = vector.broadcast %56 : vector<8x8x1xf32> to vector<8x8x8xf32>
    %58 = arith.mulf %53, %57 : vector<8x8x8xf32>
    "tpu.trace_start"() <{level = 10 : i32, message = "zqk,zkd->zqd"}> : () -> ()
    %cst_12 = arith.constant dense<0.000000e+00> : vector<8x8x8xf32>
    %59 = tpu.matmul %58, %46, %cst_12 {dimension_numbers = #tpu.dot_dimension_numbers<[2], [1], [1], [2], [0, 0, 0, 1, 1, 2], [0], [0]>} : vector<8x8x8xf32>, vector<8x8x8xf32>, vector<8x8x8xf32> -> vector<8x8x8xf32>
    "tpu.trace_stop"() : () -> ()
    %60 = vector.extract_strided_slice %59 {offsets = [0, 0, 0], sizes = [2, 8, 8], strides = [1, 1, 1]} : vector<8x8x8xf32> to vector<2x8x8xf32>
    %61 = vector.shape_cast %60 : vector<2x8x8xf32> to vector<16x8xf32>
    %62 = vector.extract_strided_slice %59 {offsets = [2, 0, 0], sizes = [2, 8, 8], strides = [1, 1, 1]} : vector<8x8x8xf32> to vector<2x8x8xf32>
    %63 = vector.shape_cast %62 : vector<2x8x8xf32> to vector<16x8xf32>
    %64 = vector.extract_strided_slice %59 {offsets = [4, 0, 0], sizes = [2, 8, 8], strides = [1, 1, 1]} : vector<8x8x8xf32> to vector<2x8x8xf32>
    %65 = vector.shape_cast %64 : vector<2x8x8xf32> to vector<16x8xf32>
    %66 = vector.extract_strided_slice %59 {offsets = [6, 0, 0], sizes = [2, 8, 8], strides = [1, 1, 1]} : vector<8x8x8xf32> to vector<2x8x8xf32>
    %67 = vector.shape_cast %66 : vector<2x8x8xf32> to vector<16x8xf32>
    %68 = tpu.concatenate %61, %63, %65, %67 in 1 : vector<16x8xf32>, vector<16x8xf32>, vector<16x8xf32>, vector<16x8xf32> -> vector<16x32xf32>
    %c144 = arith.constant 144 : index
    %c0_13 = arith.constant 0 : index
    %69 = vector.load %arg1[%c144, %c0_13] : memref<880x128xf32, #tpu.memory_space<vmem>>, vector<32x32xf32>
    %cst_14 = arith.constant dense<0.000000e+00> : vector<16x32xf32>
    %70 = tpu.matmul %68, %69, %cst_14 {dimension_numbers = #tpu.dot_dimension_numbers<[1], [1], [0], [0], [0, 0, 1, 0], [], []>} : vector<16x32xf32>, vector<32x32xf32>, vector<16x32xf32> -> vector<16x32xf32>
    %c176 = arith.constant 176 : index
    %c0_15 = arith.constant 0 : index
    %71 = vector.load %arg1[%c176, %c0_15] : memref<880x128xf32, #tpu.memory_space<vmem>>, vector<1x32xf32>
    %72 = vector.broadcast %71 : vector<1x32xf32> to vector<16x32xf32>
    %73 = arith.addf %70, %72 : vector<16x32xf32>
    %74 = arith.addf %5, %73 : vector<16x32xf32>
    %c184 = arith.constant 184 : index
    %c0_16 = arith.constant 0 : index
    %75 = vector.load %arg1[%c184, %c0_16] : memref<880x128xf32, #tpu.memory_space<vmem>>, vector<1x32xf32>
    %c192 = arith.constant 192 : index
    %c0_17 = arith.constant 0 : index
    %76 = vector.load %arg1[%c192, %c0_17] : memref<880x128xf32, #tpu.memory_space<vmem>>, vector<1x32xf32>
    %cst_18 = arith.constant dense<0.000000e+00> : vector<16xf32>
    %77 = vector.multi_reduction <add>, %74, %cst_18 [1] : vector<16x32xf32> to vector<16xf32>
    %78 = vector.shape_cast %77 : vector<16xf32> to vector<16x1xf32>
    %cst_19 = arith.constant 3.200000e+01 : f32
    %79 = vector.broadcast %cst_19 : f32 to vector<16x1xf32>
    %80 = arith.divf %78, %79 : vector<16x1xf32>
    %81 = vector.broadcast %80 : vector<16x1xf32> to vector<16x32xf32>
    %82 = arith.subf %74, %81 : vector<16x32xf32>
    %83 = arith.mulf %82, %82 : vector<16x32xf32>
    %cst_20 = arith.constant dense<0.000000e+00> : vector<16xf32>
    %84 = vector.multi_reduction <add>, %83, %cst_20 [1] : vector<16x32xf32> to vector<16xf32>
    %85 = vector.shape_cast %84 : vector<16xf32> to vector<16x1xf32>
    %cst_21 = arith.constant 3.200000e+01 : f32
    %86 = vector.broadcast %cst_21 : f32 to vector<16x1xf32>
    %87 = arith.divf %85, %86 : vector<16x1xf32>
    %88 = vector.broadcast %80 : vector<16x1xf32> to vector<16x32xf32>
    %89 = arith.subf %74, %88 : vector<16x32xf32>
    %cst_22 = arith.constant 9.99999974E-6 : f32
    %90 = vector.broadcast %cst_22 : f32 to vector<16x1xf32>
    %91 = arith.addf %87, %90 : vector<16x1xf32>
    %92 = math.rsqrt %91 : vector<16x1xf32>
    %93 = vector.broadcast %92 : vector<16x1xf32> to vector<16x32xf32>
    %94 = arith.mulf %89, %93 : vector<16x32xf32>
    %95 = vector.broadcast %75 : vector<1x32xf32> to vector<16x32xf32>
    %96 = arith.mulf %94, %95 : vector<16x32xf32>
    %97 = vector.broadcast %76 : vector<1x32xf32> to vector<16x32xf32>
    %98 = arith.addf %96, %97 : vector<16x32xf32>
    %c200 = arith.constant 200 : index
    %c0_23 = arith.constant 0 : index
    %99 = vector.load %arg1[%c200, %c0_23] : memref<880x128xf32, #tpu.memory_space<vmem>>, vector<128x32xf32>
    %cst_24 = arith.constant dense<0.000000e+00> : vector<16x128xf32>
    %100 = tpu.matmul %98, %99, %cst_24 {dimension_numbers = #tpu.dot_dimension_numbers<[1], [1], [0], [0], [0, 0, 1, 0], [], []>} : vector<16x32xf32>, vector<128x32xf32>, vector<16x128xf32> -> vector<16x128xf32>
    %c328 = arith.constant 328 : index
    %c0_25 = arith.constant 0 : index
    %101 = vector.load %arg1[%c328, %c0_25] : memref<880x128xf32, #tpu.memory_space<vmem>>, vector<1x128xf32>
    %102 = vector.broadcast %101 : vector<1x128xf32> to vector<16x128xf32>
    %103 = arith.addf %100, %102 : vector<16x128xf32>
    %cst_26 = arith.constant 0.000000e+00 : f32
    %104 = vector.broadcast %cst_26 : f32 to vector<16x128xf32>
    %105 = arith.maximumf %103, %104 : vector<16x128xf32>
    %c336 = arith.constant 336 : index
    %c0_27 = arith.constant 0 : index
    %106 = vector.load %arg1[%c336, %c0_27] : memref<880x128xf32, #tpu.memory_space<vmem>>, vector<32x128xf32>
    %cst_28 = arith.constant dense<0.000000e+00> : vector<16x32xf32>
    %107 = tpu.matmul %105, %106, %cst_28 {dimension_numbers = #tpu.dot_dimension_numbers<[1], [1], [0], [0], [0, 0, 1, 0], [], []>} : vector<16x128xf32>, vector<32x128xf32>, vector<16x32xf32> -> vector<16x32xf32>
    %c368 = arith.constant 368 : index
    %c0_29 = arith.constant 0 : index
    %108 = vector.load %arg1[%c368, %c0_29] : memref<880x128xf32, #tpu.memory_space<vmem>>, vector<1x32xf32>
    %109 = vector.broadcast %108 : vector<1x32xf32> to vector<16x32xf32>
    %110 = arith.addf %107, %109 : vector<16x32xf32>
    %111 = arith.addf %98, %110 : vector<16x32xf32>
    %c376 = arith.constant 376 : index
    %c0_30 = arith.constant 0 : index
    %112 = vector.load %arg1[%c376, %c0_30] : memref<880x128xf32, #tpu.memory_space<vmem>>, vector<1x32xf32>
    %c384 = arith.constant 384 : index
    %c0_31 = arith.constant 0 : index
    %113 = vector.load %arg1[%c384, %c0_31] : memref<880x128xf32, #tpu.memory_space<vmem>>, vector<1x32xf32>
    %cst_32 = arith.constant dense<0.000000e+00> : vector<16xf32>
    %114 = vector.multi_reduction <add>, %111, %cst_32 [1] : vector<16x32xf32> to vector<16xf32>
    %115 = vector.shape_cast %114 : vector<16xf32> to vector<16x1xf32>
    %cst_33 = arith.constant 3.200000e+01 : f32
    %116 = vector.broadcast %cst_33 : f32 to vector<16x1xf32>
    %117 = arith.divf %115, %116 : vector<16x1xf32>
    %118 = vector.broadcast %117 : vector<16x1xf32> to vector<16x32xf32>
    %119 = arith.subf %111, %118 : vector<16x32xf32>
    %120 = arith.mulf %119, %119 : vector<16x32xf32>
    %cst_34 = arith.constant dense<0.000000e+00> : vector<16xf32>
    %121 = vector.multi_reduction <add>, %120, %cst_34 [1] : vector<16x32xf32> to vector<16xf32>
    %122 = vector.shape_cast %121 : vector<16xf32> to vector<16x1xf32>
    %cst_35 = arith.constant 3.200000e+01 : f32
    %123 = vector.broadcast %cst_35 : f32 to vector<16x1xf32>
    %124 = arith.divf %122, %123 : vector<16x1xf32>
    %125 = vector.broadcast %117 : vector<16x1xf32> to vector<16x32xf32>
    %126 = arith.subf %111, %125 : vector<16x32xf32>
    %cst_36 = arith.constant 9.99999974E-6 : f32
    %127 = vector.broadcast %cst_36 : f32 to vector<16x1xf32>
    %128 = arith.addf %124, %127 : vector<16x1xf32>
    %129 = math.rsqrt %128 : vector<16x1xf32>
    %130 = vector.broadcast %129 : vector<16x1xf32> to vector<16x32xf32>
    %131 = arith.mulf %126, %130 : vector<16x32xf32>
    %132 = vector.broadcast %112 : vector<1x32xf32> to vector<16x32xf32>
    %133 = arith.mulf %131, %132 : vector<16x32xf32>
    %134 = vector.broadcast %113 : vector<1x32xf32> to vector<16x32xf32>
    %135 = arith.addf %133, %134 : vector<16x32xf32>
    %c392 = arith.constant 392 : index
    %c0_37 = arith.constant 0 : index
    %136 = vector.load %arg1[%c392, %c0_37] : memref<880x128xf32, #tpu.memory_space<vmem>>, vector<96x32xf32>
    %cst_38 = arith.constant dense<0.000000e+00> : vector<16x96xf32>
    %137 = tpu.matmul %135, %136, %cst_38 {dimension_numbers = #tpu.dot_dimension_numbers<[1], [1], [0], [0], [0, 0, 1, 0], [], []>} : vector<16x32xf32>, vector<96x32xf32>, vector<16x96xf32> -> vector<16x96xf32>
    %c488 = arith.constant 488 : index
    %c0_39 = arith.constant 0 : index
    %138 = vector.load %arg1[%c488, %c0_39] : memref<880x128xf32, #tpu.memory_space<vmem>>, vector<1x96xf32>
    %139 = vector.broadcast %138 : vector<1x96xf32> to vector<16x96xf32>
    %140 = arith.addf %137, %139 : vector<16x96xf32>
    %141 = vector.extract_strided_slice %140 {offsets = [0, 0], sizes = [16, 8], strides = [1, 1]} : vector<16x96xf32> to vector<16x8xf32>
    %142 = vector.shape_cast %141 : vector<16x8xf32> to vector<2x8x8xf32>
    %143 = vector.extract_strided_slice %140 {offsets = [0, 32], sizes = [16, 8], strides = [1, 1]} : vector<16x96xf32> to vector<16x8xf32>
    %144 = vector.shape_cast %143 : vector<16x8xf32> to vector<2x8x8xf32>
    %145 = vector.extract_strided_slice %140 {offsets = [0, 64], sizes = [16, 8], strides = [1, 1]} : vector<16x96xf32> to vector<16x8xf32>
    %146 = vector.shape_cast %145 : vector<16x8xf32> to vector<2x8x8xf32>
    %147 = vector.extract_strided_slice %140 {offsets = [0, 8], sizes = [16, 8], strides = [1, 1]} : vector<16x96xf32> to vector<16x8xf32>
    %148 = vector.shape_cast %147 : vector<16x8xf32> to vector<2x8x8xf32>
    %149 = vector.extract_strided_slice %140 {offsets = [0, 40], sizes = [16, 8], strides = [1, 1]} : vector<16x96xf32> to vector<16x8xf32>
    %150 = vector.shape_cast %149 : vector<16x8xf32> to vector<2x8x8xf32>
    %151 = vector.extract_strided_slice %140 {offsets = [0, 72], sizes = [16, 8], strides = [1, 1]} : vector<16x96xf32> to vector<16x8xf32>
    %152 = vector.shape_cast %151 : vector<16x8xf32> to vector<2x8x8xf32>
    %153 = vector.extract_strided_slice %140 {offsets = [0, 16], sizes = [16, 8], strides = [1, 1]} : vector<16x96xf32> to vector<16x8xf32>
    %154 = vector.shape_cast %153 : vector<16x8xf32> to vector<2x8x8xf32>
    %155 = vector.extract_strided_slice %140 {offsets = [0, 48], sizes = [16, 8], strides = [1, 1]} : vector<16x96xf32> to vector<16x8xf32>
    %156 = vector.shape_cast %155 : vector<16x8xf32> to vector<2x8x8xf32>
    %157 = vector.extract_strided_slice %140 {offsets = [0, 80], sizes = [16, 8], strides = [1, 1]} : vector<16x96xf32> to vector<16x8xf32>
    %158 = vector.shape_cast %157 : vector<16x8xf32> to vector<2x8x8xf32>
    %159 = vector.extract_strided_slice %140 {offsets = [0, 24], sizes = [16, 8], strides = [1, 1]} : vector<16x96xf32> to vector<16x8xf32>
    %160 = vector.shape_cast %159 : vector<16x8xf32> to vector<2x8x8xf32>
    %161 = vector.extract_strided_slice %140 {offsets = [0, 56], sizes = [16, 8], strides = [1, 1]} : vector<16x96xf32> to vector<16x8xf32>
    %162 = vector.shape_cast %161 : vector<16x8xf32> to vector<2x8x8xf32>
    %163 = vector.extract_strided_slice %140 {offsets = [0, 88], sizes = [16, 8], strides = [1, 1]} : vector<16x96xf32> to vector<16x8xf32>
    %164 = vector.shape_cast %163 : vector<16x8xf32> to vector<2x8x8xf32>
    %165 = tpu.concatenate %142, %148, %154, %160 in 0 : vector<2x8x8xf32>, vector<2x8x8xf32>, vector<2x8x8xf32>, vector<2x8x8xf32> -> vector<8x8x8xf32>
    %166 = tpu.concatenate %144, %150, %156, %162 in 0 : vector<2x8x8xf32>, vector<2x8x8xf32>, vector<2x8x8xf32>, vector<2x8x8xf32> -> vector<8x8x8xf32>
    %167 = tpu.concatenate %146, %152, %158, %164 in 0 : vector<2x8x8xf32>, vector<2x8x8xf32>, vector<2x8x8xf32>, vector<2x8x8xf32> -> vector<8x8x8xf32>
    "tpu.trace_start"() <{level = 10 : i32, message = "zqd,zkd->zqk"}> : () -> ()
    %cst_40 = arith.constant dense<0.000000e+00> : vector<8x8x8xf32>
    %168 = tpu.matmul %165, %166, %cst_40 {dimension_numbers = #tpu.dot_dimension_numbers<[2], [2], [1], [1], [0, 0, 0, 1, 1, 1], [0], [0]>} : vector<8x8x8xf32>, vector<8x8x8xf32>, vector<8x8x8xf32> -> vector<8x8x8xf32>
    "tpu.trace_stop"() : () -> ()
    %169 = arith.addf %168, %14 : vector<8x8x8xf32>
    %cst_41 = arith.constant dense<0xFF800000> : vector<8x8xf32>
    %170 = vector.multi_reduction <maximumf>, %169, %cst_41 [2] : vector<8x8x8xf32> to vector<8x8xf32>
    %171 = vector.shape_cast %170 : vector<8x8xf32> to vector<8x8x1xf32>
    %172 = vector.broadcast %171 : vector<8x8x1xf32> to vector<8x8x8xf32>
    %173 = arith.subf %169, %172 : vector<8x8x8xf32>
    %174 = math.exp %173 : vector<8x8x8xf32>
    %cst_42 = arith.constant dense<0.000000e+00> : vector<8x8xf32>
    %175 = vector.multi_reduction <add>, %174, %cst_42 [2] : vector<8x8x8xf32> to vector<8x8xf32>
    %176 = vector.shape_cast %175 : vector<8x8xf32> to vector<8x8x1xf32>
    %177 = tpu.reciprocal %176 {approx = true} : vector<8x8x1xf32> -> vector<8x8x1xf32>
    %178 = vector.broadcast %177 : vector<8x8x1xf32> to vector<8x8x8xf32>
    %179 = arith.mulf %174, %178 : vector<8x8x8xf32>
    "tpu.trace_start"() <{level = 10 : i32, message = "zqk,zkd->zqd"}> : () -> ()
    %cst_43 = arith.constant dense<0.000000e+00> : vector<8x8x8xf32>
    %180 = tpu.matmul %179, %167, %cst_43 {dimension_numbers = #tpu.dot_dimension_numbers<[2], [1], [1], [2], [0, 0, 0, 1, 1, 2], [0], [0]>} : vector<8x8x8xf32>, vector<8x8x8xf32>, vector<8x8x8xf32> -> vector<8x8x8xf32>
    "tpu.trace_stop"() : () -> ()
    %181 = vector.extract_strided_slice %180 {offsets = [0, 0, 0], sizes = [2, 8, 8], strides = [1, 1, 1]} : vector<8x8x8xf32> to vector<2x8x8xf32>
    %182 = vector.shape_cast %181 : vector<2x8x8xf32> to vector<16x8xf32>
    %183 = vector.extract_strided_slice %180 {offsets = [2, 0, 0], sizes = [2, 8, 8], strides = [1, 1, 1]} : vector<8x8x8xf32> to vector<2x8x8xf32>
    %184 = vector.shape_cast %183 : vector<2x8x8xf32> to vector<16x8xf32>
    %185 = vector.extract_strided_slice %180 {offsets = [4, 0, 0], sizes = [2, 8, 8], strides = [1, 1, 1]} : vector<8x8x8xf32> to vector<2x8x8xf32>
    %186 = vector.shape_cast %185 : vector<2x8x8xf32> to vector<16x8xf32>
    %187 = vector.extract_strided_slice %180 {offsets = [6, 0, 0], sizes = [2, 8, 8], strides = [1, 1, 1]} : vector<8x8x8xf32> to vector<2x8x8xf32>
    %188 = vector.shape_cast %187 : vector<2x8x8xf32> to vector<16x8xf32>
    %189 = tpu.concatenate %182, %184, %186, %188 in 1 : vector<16x8xf32>, vector<16x8xf32>, vector<16x8xf32>, vector<16x8xf32> -> vector<16x32xf32>
    %c496 = arith.constant 496 : index
    %c0_44 = arith.constant 0 : index
    %190 = vector.load %arg1[%c496, %c0_44] : memref<880x128xf32, #tpu.memory_space<vmem>>, vector<32x32xf32>
    %cst_45 = arith.constant dense<0.000000e+00> : vector<16x32xf32>
    %191 = tpu.matmul %189, %190, %cst_45 {dimension_numbers = #tpu.dot_dimension_numbers<[1], [1], [0], [0], [0, 0, 1, 0], [], []>} : vector<16x32xf32>, vector<32x32xf32>, vector<16x32xf32> -> vector<16x32xf32>
    %c528 = arith.constant 528 : index
    %c0_46 = arith.constant 0 : index
    %192 = vector.load %arg1[%c528, %c0_46] : memref<880x128xf32, #tpu.memory_space<vmem>>, vector<1x32xf32>
    %193 = vector.broadcast %192 : vector<1x32xf32> to vector<16x32xf32>
    %194 = arith.addf %191, %193 : vector<16x32xf32>
    %195 = arith.addf %135, %194 : vector<16x32xf32>
    %c536 = arith.constant 536 : index
    %c0_47 = arith.constant 0 : index
    %196 = vector.load %arg1[%c536, %c0_47] : memref<880x128xf32, #tpu.memory_space<vmem>>, vector<1x32xf32>
    %c544 = arith.constant 544 : index
    %c0_48 = arith.constant 0 : index
    %197 = vector.load %arg1[%c544, %c0_48] : memref<880x128xf32, #tpu.memory_space<vmem>>, vector<1x32xf32>
    %cst_49 = arith.constant dense<0.000000e+00> : vector<16xf32>
    %198 = vector.multi_reduction <add>, %195, %cst_49 [1] : vector<16x32xf32> to vector<16xf32>
    %199 = vector.shape_cast %198 : vector<16xf32> to vector<16x1xf32>
    %cst_50 = arith.constant 3.200000e+01 : f32
    %200 = vector.broadcast %cst_50 : f32 to vector<16x1xf32>
    %201 = arith.divf %199, %200 : vector<16x1xf32>
    %202 = vector.broadcast %201 : vector<16x1xf32> to vector<16x32xf32>
    %203 = arith.subf %195, %202 : vector<16x32xf32>
    %204 = arith.mulf %203, %203 : vector<16x32xf32>
    %cst_51 = arith.constant dense<0.000000e+00> : vector<16xf32>
    %205 = vector.multi_reduction <add>, %204, %cst_51 [1] : vector<16x32xf32> to vector<16xf32>
    %206 = vector.shape_cast %205 : vector<16xf32> to vector<16x1xf32>
    %cst_52 = arith.constant 3.200000e+01 : f32
    %207 = vector.broadcast %cst_52 : f32 to vector<16x1xf32>
    %208 = arith.divf %206, %207 : vector<16x1xf32>
    %209 = vector.broadcast %201 : vector<16x1xf32> to vector<16x32xf32>
    %210 = arith.subf %195, %209 : vector<16x32xf32>
    %cst_53 = arith.constant 9.99999974E-6 : f32
    %211 = vector.broadcast %cst_53 : f32 to vector<16x1xf32>
    %212 = arith.addf %208, %211 : vector<16x1xf32>
    %213 = math.rsqrt %212 : vector<16x1xf32>
    %214 = vector.broadcast %213 : vector<16x1xf32> to vector<16x32xf32>
    %215 = arith.mulf %210, %214 : vector<16x32xf32>
    %216 = vector.broadcast %196 : vector<1x32xf32> to vector<16x32xf32>
    %217 = arith.mulf %215, %216 : vector<16x32xf32>
    %218 = vector.broadcast %197 : vector<1x32xf32> to vector<16x32xf32>
    %219 = arith.addf %217, %218 : vector<16x32xf32>
    %c552 = arith.constant 552 : index
    %c0_54 = arith.constant 0 : index
    %220 = vector.load %arg1[%c552, %c0_54] : memref<880x128xf32, #tpu.memory_space<vmem>>, vector<128x32xf32>
    %cst_55 = arith.constant dense<0.000000e+00> : vector<16x128xf32>
    %221 = tpu.matmul %219, %220, %cst_55 {dimension_numbers = #tpu.dot_dimension_numbers<[1], [1], [0], [0], [0, 0, 1, 0], [], []>} : vector<16x32xf32>, vector<128x32xf32>, vector<16x128xf32> -> vector<16x128xf32>
    %c680 = arith.constant 680 : index
    %c0_56 = arith.constant 0 : index
    %222 = vector.load %arg1[%c680, %c0_56] : memref<880x128xf32, #tpu.memory_space<vmem>>, vector<1x128xf32>
    %223 = vector.broadcast %222 : vector<1x128xf32> to vector<16x128xf32>
    %224 = arith.addf %221, %223 : vector<16x128xf32>
    %cst_57 = arith.constant 0.000000e+00 : f32
    %225 = vector.broadcast %cst_57 : f32 to vector<16x128xf32>
    %226 = arith.maximumf %224, %225 : vector<16x128xf32>
    %c688 = arith.constant 688 : index
    %c0_58 = arith.constant 0 : index
    %227 = vector.load %arg1[%c688, %c0_58] : memref<880x128xf32, #tpu.memory_space<vmem>>, vector<32x128xf32>
    %cst_59 = arith.constant dense<0.000000e+00> : vector<16x32xf32>
    %228 = tpu.matmul %226, %227, %cst_59 {dimension_numbers = #tpu.dot_dimension_numbers<[1], [1], [0], [0], [0, 0, 1, 0], [], []>} : vector<16x128xf32>, vector<32x128xf32>, vector<16x32xf32> -> vector<16x32xf32>
    %c720 = arith.constant 720 : index
    %c0_60 = arith.constant 0 : index
    %229 = vector.load %arg1[%c720, %c0_60] : memref<880x128xf32, #tpu.memory_space<vmem>>, vector<1x32xf32>
    %230 = vector.broadcast %229 : vector<1x32xf32> to vector<16x32xf32>
    %231 = arith.addf %228, %230 : vector<16x32xf32>
    %232 = arith.addf %219, %231 : vector<16x32xf32>
    %c728 = arith.constant 728 : index
    %c0_61 = arith.constant 0 : index
    %233 = vector.load %arg1[%c728, %c0_61] : memref<880x128xf32, #tpu.memory_space<vmem>>, vector<1x32xf32>
    %c736 = arith.constant 736 : index
    %c0_62 = arith.constant 0 : index
    %234 = vector.load %arg1[%c736, %c0_62] : memref<880x128xf32, #tpu.memory_space<vmem>>, vector<1x32xf32>
    %cst_63 = arith.constant dense<0.000000e+00> : vector<16xf32>
    %235 = vector.multi_reduction <add>, %232, %cst_63 [1] : vector<16x32xf32> to vector<16xf32>
    %236 = vector.shape_cast %235 : vector<16xf32> to vector<16x1xf32>
    %cst_64 = arith.constant 3.200000e+01 : f32
    %237 = vector.broadcast %cst_64 : f32 to vector<16x1xf32>
    %238 = arith.divf %236, %237 : vector<16x1xf32>
    %239 = vector.broadcast %238 : vector<16x1xf32> to vector<16x32xf32>
    %240 = arith.subf %232, %239 : vector<16x32xf32>
    %241 = arith.mulf %240, %240 : vector<16x32xf32>
    %cst_65 = arith.constant dense<0.000000e+00> : vector<16xf32>
    %242 = vector.multi_reduction <add>, %241, %cst_65 [1] : vector<16x32xf32> to vector<16xf32>
    %243 = vector.shape_cast %242 : vector<16xf32> to vector<16x1xf32>
    %cst_66 = arith.constant 3.200000e+01 : f32
    %244 = vector.broadcast %cst_66 : f32 to vector<16x1xf32>
    %245 = arith.divf %243, %244 : vector<16x1xf32>
    %246 = vector.broadcast %238 : vector<16x1xf32> to vector<16x32xf32>
    %247 = arith.subf %232, %246 : vector<16x32xf32>
    %cst_67 = arith.constant 9.99999974E-6 : f32
    %248 = vector.broadcast %cst_67 : f32 to vector<16x1xf32>
    %249 = arith.addf %245, %248 : vector<16x1xf32>
    %250 = math.rsqrt %249 : vector<16x1xf32>
    %251 = vector.broadcast %250 : vector<16x1xf32> to vector<16x32xf32>
    %252 = arith.mulf %247, %251 : vector<16x32xf32>
    %253 = vector.broadcast %233 : vector<1x32xf32> to vector<16x32xf32>
    %254 = arith.mulf %252, %253 : vector<16x32xf32>
    %255 = vector.broadcast %234 : vector<1x32xf32> to vector<16x32xf32>
    %256 = arith.addf %254, %255 : vector<16x32xf32>
    %c744 = arith.constant 744 : index
    %c0_68 = arith.constant 0 : index
    %257 = vector.load %arg1[%c744, %c0_68] : memref<880x128xf32, #tpu.memory_space<vmem>>, vector<128x32xf32>
    %cst_69 = arith.constant dense<0.000000e+00> : vector<16x128xf32>
    %258 = tpu.matmul %256, %257, %cst_69 {dimension_numbers = #tpu.dot_dimension_numbers<[1], [1], [0], [0], [0, 0, 1, 0], [], []>} : vector<16x32xf32>, vector<128x32xf32>, vector<16x128xf32> -> vector<16x128xf32>
    %c872 = arith.constant 872 : index
    %c0_70 = arith.constant 0 : index
    %259 = vector.load %arg1[%c872, %c0_70] : memref<880x128xf32, #tpu.memory_space<vmem>>, vector<1x128xf32>
    %260 = vector.broadcast %259 : vector<1x128xf32> to vector<16x128xf32>
    %261 = arith.addf %258, %260 : vector<16x128xf32>
    %262 = arith.negf %261 : vector<16x128xf32>
    %263 = math.exp %262 : vector<16x128xf32>
    %cst_71 = arith.constant 1.000000e+00 : f32
    %264 = vector.broadcast %cst_71 : f32 to vector<16x128xf32>
    %265 = arith.addf %264, %263 : vector<16x128xf32>
    %266 = arith.divf %264, %265 : vector<16x128xf32>
    %c0_72 = arith.constant 0 : index
    %c0_73 = arith.constant 0 : index
    %267 = vector.load %arg2[%c0_72, %c0_73] : memref<16x128xf32, #tpu.memory_space<vmem>>, vector<16x128xf32>
    tpu.vector_store %arg2[%c0_72, %c0_73], %266 {strides = array<i32>} : memref<16x128xf32, #tpu.memory_space<vmem>>, vector<16x128xf32>,
    return
  }
}

</mosaic_0001>

<llo_original>
// kernel: tpu_custom_call.1
$region0: #{tpu_custom_call.1}
  #allocation0 [shape = 'u32[]', space=smem, size = 0x4, offset = 0x4, fixed_abs, tag = 'smem constant byte address 0x4 - core index']
  #allocation1 [shape = 'u32[144,128]{1,0:T(1,128)}', space=vmem, size = 0x12000, scoped, tag = 'internal scratch']
  %s0 = inlined_call_operand.hbm [shape: f32[16,16], index: 0, kind: input, shape index: {}]
  %s1 = inlined_call_operand.hbm [shape: f32[880,128], index: 1, kind: input, shape index: {}]
  %s2 = inlined_call_operand.hbm [shape: f32[16,128], index: 2, kind: output, shape index: {}]
  %s3 = sld [smem:[#allocation0]]
  $region26: #{tpu_custom_call.1} parent=0
    _
  %s5 = ssub.s32 1, %s3
  %s6 = scalar_select 0, %s5, %s3
  $region1: #{tpu_custom_call.1} parent=0
    #allocation2 [shape = 'u8[8192]{0}', space=vmem, size = 0x2000, scoped, tag = 'input window, operand 0, single buffered']
    #allocation3 [shape = 's32[1]{0}', space=sflag, size = 0x4, scoped, tag = 'scoped memory for tpu_custom_call.1']
    #allocation4 [shape = 's32[1]{0}', space=sflag, size = 0x4, scoped, tag = 'scoped memory for tpu_custom_call.1']
    #allocation5 [shape = 'u8[450560]{0}', space=vmem, size = 0x6e000, scoped, tag = 'input window, operand 1, single buffered']
    #allocation6 [shape = 's32[1]{0}', space=sflag, size = 0x4, scoped, tag = 'scoped memory for tpu_custom_call.1']
    #allocation7 [shape = 'u8[8192]{0}', space=vmem, size = 0x2000, scoped, tag = 'output window, operand 0, single buffered']
    %7 = vsyncpa [#allocation3], 0
    %8 = vsyncpa [#allocation6], 0
    %9 = vsyncpa [#allocation4], 0
    // Predicated region
    $region2: #{tpu_custom_call.1} parent=1 // pred_check
      _
    $region3: #{tpu_custom_call.1} parent=1 // pred_check_branch
      %11 = sbr.rel (0) target = $region5
    $region4: #{tpu_custom_call.1} parent=1 // pred_region
      %s13 = ssub.s32 256, 256
      %14 = vsyncadd [#allocation3], %s13
      %s15 = sshll.u32 [#allocation2], 4
      %s16 = int_to_ptr.vmem [resolvable:$true] %s15
      %21 = dma.hbm_to_vmem [thread:$0]  %s0, 256, %s16, [#allocation3], 128, 128, 8
    $region5: #{tpu_custom_call.1} parent=1 // pred_fallthru
      _
    // Predicated region
    $region6: #{tpu_custom_call.1} parent=1 // pred_check
      _
    $region7: #{tpu_custom_call.1} parent=1 // pred_check_branch
      %23 = sbr.rel (0) target = $region9
    $region8: #{tpu_custom_call.1} parent=1 // pred_region
      %s25 = ssub.s32 14080, 14080
      %26 = vsyncadd [#allocation6], %s25
      %s27 = sshll.u32 [#allocation5], 4
      %s28 = int_to_ptr.vmem [resolvable:$true] %s27
      %33 = dma.hbm_to_vmem [thread:$0]  %s1, 14080, %s28, [#allocation6], 128, 128, 8
    $region9: #{tpu_custom_call.1} parent=1 // pred_fallthru
      _
    // Predicated region
    $region10: #{tpu_custom_call.1} parent=1 // pred_check
      _
    $region11: #{tpu_custom_call.1} parent=1 // pred_check_branch
      %35 = sbr.rel (0) target = $region13
    $region12: #{tpu_custom_call.1} parent=1 // pred_region
      %36 = dma.done [#allocation3], 256
    $region13: #{tpu_custom_call.1} parent=1 // pred_fallthru
      _
    // Predicated region
    $region14: #{tpu_custom_call.1} parent=1 // pred_check
      _
    $region15: #{tpu_custom_call.1} parent=1 // pred_check_branch
      %38 = sbr.rel (0) target = $region17
    $region16: #{tpu_custom_call.1} parent=1 // pred_region
      %39 = dma.done [#allocation6], 14080
    $region17: #{tpu_custom_call.1} parent=1 // pred_fallthru
      _
    %v40 = vld [vmem:[#allocation2] sm:$0xff]
    %v41 = vld [vmem:[#allocation2 + $0x8] sm:$0xff]
    %v42 = vld [vmem:[#allocation5] sm:$0xff]
    %v43 = vld [vmem:[#allocation5 + $0x8] sm:$0xff]
    %v44 = vld [vmem:[#allocation5 + $0x10] sm:$0xff]
    %v45 = vld [vmem:[#allocation5 + $0x18] sm:$0xff]
    %v46 = vld [vmem:[#allocation5 + $0x20] sm:$0x1]
    %v47 = vlaneseq
    %v48 = vshrl.u32 %v47, 7
    %v49 = vsub.s32 0, %v48
    %v50 = vrot.slane %v46, %v49
    %vm51 = vcmask 130048
    %v53 = vsel %vm51, %v40, 0
    %v56 = vsel %vm51, %v41, 0
    %v59 = vsel %vm51, %v42, 0
    %v62 = vsel %vm51, %v43, 0
    %v65 = vsel %vm51, %v44, 0
    %v68 = vsel %vm51, %v45, 0
    %70 = vmatprep.subr.mxu0 0.0
    %71 = vmatpush1.xpose.msra.mxu0 %v59
    %72 = vmatprep.subr.mxu0 0.0
    %73 = vmatpush1.xpose.msra.mxu0 %v62
    %74 = vmatprep.subr.mxu0 0.0
    %75 = vmatpush1.xpose.msra.mxu0 %v65
    %76 = vmatprep.subr.mxu0 0.0
    %77 = vmatpush1.xpose.msra.mxu0 %v68
    %78 = vmatprep.subr.mxu0 0.0
    %79 = vmatpush1.xpose.msra.mxu0 0.0
    %80 = vmatprep.subr.mxu0 0.0
    %81 = vmatpush1.xpose.msra.mxu0 0.0
    %82 = vmatprep.subr.mxu0 0.0
    %83 = vmatpush1.xpose.msra.mxu0 0.0
    %84 = vmatprep.subr.mxu0 0.0
    %85 = vmatpush1.xpose.msra.mxu0 0.0
    %86 = vmatprep.subr.mxu0 0.0
    %87 = vmatpush1.xpose.msra.mxu0 0.0
    %88 = vmatprep.subr.mxu0 0.0
    %89 = vmatpush1.xpose.msra.mxu0 0.0
    %90 = vmatprep.subr.mxu0 0.0
    %91 = vmatpush1.xpose.msra.mxu0 0.0
    %92 = vmatprep.subr.mxu0 0.0
    %93 = vmatpush1.xpose.msra.mxu0 0.0
    %94 = vmatprep.subr.mxu0 0.0
    %95 = vmatpush1.xpose.msra.mxu0 0.0
    %96 = vmatprep.subr.mxu0 0.0
    %97 = vmatpush1.xpose.msra.mxu0 0.0
    %98 = vmatprep.subr.mxu0 0.0
    %99 = vmatpush1.xpose.msra.mxu0 0.0
    %100 = vmatprep.subr.mxu0 0.0
    %101 = vmatpush1.xpose.msra.mxu0 0.0
    %102 = vmatprep.subr.mxu0 0.0
    %103 = vmatpush1.xpose.msra.mxu0 0.0
    %104 = vmatprep.subr.mxu0 0.0
    %105 = vmatpush1.xpose.msra.mxu0 0.0
    %106 = vmatprep.subr.mxu0 0.0
    %107 = vmatpush1.xpose.msra.mxu0 0.0
    %108 = vmatprep.subr.mxu0 0.0
    %109 = vmatpush1.xpose.msra.mxu0 0.0
    %110 = vmatprep.subr.mxu0 0.0
    %111 = vmatpush1.xpose.msra.mxu0 0.0
    %112 = vmatprep.subr.mxu0 0.0
    %113 = vmatpush1.xpose.msra.mxu0 0.0
    %114 = vmatprep.subr.mxu0 0.0
    %115 = vmatpush1.xpose.msra.mxu0 0.0
    %116 = vmatprep.subr.mxu0 0.0
    %117 = vmatpush1.xpose.msra.mxu0 0.0
    %118 = vmatprep.subr.mxu0 0.0
    %119 = vmatpush1.xpose.msra.mxu0 0.0
    %120 = vmatprep.subr.mxu0 0.0
    %121 = vmatpush1.xpose.msra.mxu0 0.0
    %122 = vmatprep.subr.mxu0 0.0
    %123 = vmatpush1.xpose.msra.mxu0 0.0
    %124 = vmatprep.subr.mxu0 0.0
    %125 = vmatpush1.xpose.msra.mxu0 0.0
    %126 = vmatprep.subr.mxu0 0.0
    %127 = vmatpush1.xpose.msra.mxu0 0.0
    %128 = vmatprep.subr.mxu0 0.0
    %129 = vmatpush1.xpose.msra.mxu0 0.0
    %130 = vmatprep.subr.mxu0 0.0
    %131 = vmatpush1.xpose.msra.mxu0 0.0
    %132 = vmatprep.subr.mxu0 0.0
    %133 = vmatpush1.xpose.msra.mxu0 0.0
    %134 = vmatprep.mubr.f32.mxu0 0.0
    %135 = vmatmul.mubr.f32.gmra.mrb[0].mxu0 %v53
    %v136 = vpop.f32.mrb[0].mxu0
    %v137 = vadd.f32 %v50, %v136
    %v138 = vpop.f32.mrb[0].mxu0
    %139 = vmatprep.mubr.f32.mxu0 0.0
    %140 = vmatmul.mubr.f32.gmra.mrb[0].mxu0 %v56
    %v141 = vpop.f32.mrb[0].mxu0
    %v142 = vadd.f32 %v50, %v141
    %v143 = vpop.f32.mrb[0].mxu0
    %144 = vdwg.mxu0
    %v145 = vlaneseq
    %v146 = vshrl.u32 %v145, 7
    %v147 = vlaneseq
    %v148 = vand.u32 %v147, 127
    %vm149 = vcmp.gt.s32.totalorder %v148, %v146
    %v150 = vsel %vm149, -1e+30, 0.0
    %v151 = vld [vmem:[#allocation5 + $0x28] sm:$0xff]
    %v152 = vld [vmem:[#allocation5 + $0x30] sm:$0xff]
    %v153 = vld [vmem:[#allocation5 + $0x38] sm:$0xff]
    %v154 = vld [vmem:[#allocation5 + $0x40] sm:$0xff]
    %v155 = vld [vmem:[#allocation5 + $0x48] sm:$0xff]
    %v156 = vld [vmem:[#allocation5 + $0x50] sm:$0xff]
    %v157 = vld [vmem:[#allocation5 + $0x58] sm:$0xff]
    %v158 = vld [vmem:[#allocation5 + $0x60] sm:$0xff]
    %v159 = vld [vmem:[#allocation5 + $0x68] sm:$0xff]
    %v160 = vld [vmem:[#allocation5 + $0x70] sm:$0xff]
    %v161 = vld [vmem:[#allocation5 + $0x78] sm:$0xff]
    %v162 = vld [vmem:[#allocation5 + $0x80] sm:$0xff]
    %v163 = vld [vmem:[#allocation5 + $0x88] sm:$0x1]
    %v164 = vlaneseq
    %v165 = vshrl.u32 %v164, 7
    %v166 = vsub.s32 0, %v165
    %v167 = vrot.slane %v163, %v166
    %vm168 = vcmask 261120
    %v170 = vsel %vm168, %v137, 0
    %v173 = vsel %vm168, %v142, 0
    %v176 = vsel %vm168, %v151, 0
    %v179 = vsel %vm168, %v152, 0
    %v182 = vsel %vm168, %v153, 0
    %v185 = vsel %vm168, %v154, 0
    %v188 = vsel %vm168, %v155, 0
    %v191 = vsel %vm168, %v156, 0
    %v194 = vsel %vm168, %v157, 0
    %v197 = vsel %vm168, %v158, 0
    %v200 = vsel %vm168, %v159, 0
    %v203 = vsel %vm168, %v160, 0
    %v206 = vsel %vm168, %v161, 0
    %v209 = vsel %vm168, %v162, 0
    %211 = vmatprep.subr.mxu0 0.0
    %212 = vmatpush1.xpose.msra.mxu0 %v176
    %213 = vmatprep.subr.mxu0 0.0
    %214 = vmatpush1.xpose.msra.mxu0 %v179
    %215 = vmatprep.subr.mxu0 0.0
    %216 = vmatpush1.xpose.msra.mxu0 %v182
    %217 = vmatprep.subr.mxu0 0.0
    %218 = vmatpush1.xpose.msra.mxu0 %v185
    %219 = vmatprep.subr.mxu0 0.0
    %220 = vmatpush1.xpose.msra.mxu0 %v188
    %221 = vmatprep.subr.mxu0 0.0
    %222 = vmatpush1.xpose.msra.mxu0 %v191
    %223 = vmatprep.subr.mxu0 0.0
    %224 = vmatpush1.xpose.msra.mxu0 %v194
    %225 = vmatprep.subr.mxu0 0.0
    %226 = vmatpush1.xpose.msra.mxu0 %v197
    %227 = vmatprep.subr.mxu0 0.0
    %228 = vmatpush1.xpose.msra.mxu0 %v200
    %229 = vmatprep.subr.mxu0 0.0
    %230 = vmatpush1.xpose.msra.mxu0 %v203
    %231 = vmatprep.subr.mxu0 0.0
    %232 = vmatpush1.xpose.msra.mxu0 %v206
    %233 = vmatprep.subr.mxu0 0.0
    %234 = vmatpush1.xpose.msra.mxu0 %v209
    %235 = vmatprep.subr.mxu0 0.0
    %236 = vmatpush1.xpose.msra.mxu0 0.0
    %237 = vmatprep.subr.mxu0 0.0
    %238 = vmatpush1.xpose.msra.mxu0 0.0
    %239 = vmatprep.subr.mxu0 0.0
    %240 = vmatpush1.xpose.msra.mxu0 0.0
    %241 = vmatprep.subr.mxu0 0.0
    %242 = vmatpush1.xpose.msra.mxu0 0.0
    %243 = vmatprep.subr.mxu0 0.0
    %244 = vmatpush1.xpose.msra.mxu0 0.0
    %245 = vmatprep.subr.mxu0 0.0
    %246 = vmatpush1.xpose.msra.mxu0 0.0
    %247 = vmatprep.subr.mxu0 0.0
    %248 = vmatpush1.xpose.msra.mxu0 0.0
    %249 = vmatprep.subr.mxu0 0.0
    %250 = vmatpush1.xpose.msra.mxu0 0.0
    %251 = vmatprep.subr.mxu0 0.0
    %252 = vmatpush1.xpose.msra.mxu0 0.0
    %253 = vmatprep.subr.mxu0 0.0
    %254 = vmatpush1.xpose.msra.mxu0 0.0
    %255 = vmatprep.subr.mxu0 0.0
    %256 = vmatpush1.xpose.msra.mxu0 0.0
    %257 = vmatprep.subr.mxu0 0.0
    %258 = vmatpush1.xpose.msra.mxu0 0.0
    %259 = vmatprep.subr.mxu0 0.0
    %260 = vmatpush1.xpose.msra.mxu0 0.0
    %261 = vmatprep.subr.mxu0 0.0
    %262 = vmatpush1.xpose.msra.mxu0 0.0
    %263 = vmatprep.subr.mxu0 0.0
    %264 = vmatpush1.xpose.msra.mxu0 0.0
    %265 = vmatprep.subr.mxu0 0.0
    %266 = vmatpush1.xpose.msra.mxu0 0.0
    %267 = vmatprep.subr.mxu0 0.0
    %268 = vmatpush1.xpose.msra.mxu0 0.0
    %269 = vmatprep.subr.mxu0 0.0
    %270 = vmatpush1.xpose.msra.mxu0 0.0
    %271 = vmatprep.subr.mxu0 0.0
    %272 = vmatpush1.xpose.msra.mxu0 0.0
    %273 = vmatprep.subr.mxu0 0.0
    %274 = vmatpush1.xpose.msra.mxu0 0.0
    %275 = vmatprep.mubr.f32.mxu0 0.0
    %276 = vmatmul.mubr.f32.gmra.mrb[0].mxu0 %v170
    %v277 = vpop.f32.mrb[0].mxu0
    %v278 = vadd.f32 %v167, %v277
    %v279 = vpop.f32.mrb[0].mxu0
    %280 = vmatprep.mubr.f32.mxu0 0.0
    %281 = vmatmul.mubr.f32.gmra.mrb[0].mxu0 %v173
    %v282 = vpop.f32.mrb[0].mxu0
    %v283 = vadd.f32 %v167, %v282
    %v284 = vpop.f32.mrb[0].mxu0
    %285 = vdwg.mxu0
    %288 = vrot.lane.b32.xlu0 %v278, 120
    %v289 = vpop.permute.xlu0 %288
    %290 = vrot.lane.b32.xlu0 %v283, 120
    %v291 = vpop.permute.xlu0 %290
    %292 = vrot.lane.b32.xlu0 %v278, 112
    %v293 = vpop.permute.xlu0 %292
    %294 = vrot.lane.b32.xlu0 %v283, 112
    %v295 = vpop.permute.xlu0 %294
    %296 = vrot.lane.b32.xlu0 %v278, 104
    %v297 = vpop.permute.xlu0 %296
    %298 = vrot.lane.b32.xlu0 %v283, 104
    %v299 = vpop.permute.xlu0 %298
    %300 = vrot.lane.b32.xlu0 %v278, 96
    %v301 = vpop.permute.xlu0 %300
    %vm302 = vcmask 64512
    %v303 = vsel %vm302, %v278, 0
    %v305 = vsel %vm302, %v301, 0
    %307 = vmatprep.subr.mxu0 0.0
    %308 = vmatpush1.xpose.msra.mxu0 %v305
    %309 = vmatprep.subr.mxu0 0.0
    %310 = vmatpush1.xpose.msra.mxu0 0.0
    %311 = vmatprep.subr.mxu0 0.0
    %312 = vmatpush1.xpose.msra.mxu0 0.0
    %313 = vmatprep.subr.mxu0 0.0
    %314 = vmatpush1.xpose.msra.mxu0 0.0
    %315 = vmatprep.subr.mxu0 0.0
    %316 = vmatpush1.xpose.msra.mxu0 0.0
    %317 = vmatprep.subr.mxu0 0.0
    %318 = vmatpush1.xpose.msra.mxu0 0.0
    %319 = vmatprep.subr.mxu0 0.0
    %320 = vmatpush1.xpose.msra.mxu0 0.0
    %321 = vmatprep.subr.mxu0 0.0
    %322 = vmatpush1.xpose.msra.mxu0 0.0
    %323 = vmatprep.subr.mxu0 0.0
    %324 = vmatpush1.xpose.msra.mxu0 0.0
    %325 = vmatprep.subr.mxu0 0.0
    %326 = vmatpush1.xpose.msra.mxu0 0.0
    %327 = vmatprep.subr.mxu0 0.0
    %328 = vmatpush1.xpose.msra.mxu0 0.0
    %329 = vmatprep.subr.mxu0 0.0
    %330 = vmatpush1.xpose.msra.mxu0 0.0
    %331 = vmatprep.subr.mxu0 0.0
    %332 = vmatpush1.xpose.msra.mxu0 0.0
    %333 = vmatprep.subr.mxu0 0.0
    %334 = vmatpush1.xpose.msra.mxu0 0.0
    %335 = vmatprep.subr.mxu0 0.0
    %336 = vmatpush1.xpose.msra.mxu0 0.0
    %337 = vmatprep.subr.mxu0 0.0
    %338 = vmatpush1.xpose.msra.mxu0 0.0
    %339 = vmatprep.subr.mxu0 0.0
    %340 = vmatpush1.xpose.msra.mxu0 0.0
    %341 = vmatprep.subr.mxu0 0.0
    %342 = vmatpush1.xpose.msra.mxu0 0.0
    %343 = vmatprep.subr.mxu0 0.0
    %344 = vmatpush1.xpose.msra.mxu0 0.0
    %345 = vmatprep.subr.mxu0 0.0
    %346 = vmatpush1.xpose.msra.mxu0 0.0
    %347 = vmatprep.subr.mxu0 0.0
    %348 = vmatpush1.xpose.msra.mxu0 0.0
    %349 = vmatprep.subr.mxu0 0.0
    %350 = vmatpush1.xpose.msra.mxu0 0.0
    %351 = vmatprep.subr.mxu0 0.0
    %352 = vmatpush1.xpose.msra.mxu0 0.0
    %353 = vmatprep.subr.mxu0 0.0
    %354 = vmatpush1.xpose.msra.mxu0 0.0
    %355 = vmatprep.subr.mxu0 0.0
    %356 = vmatpush1.xpose.msra.mxu0 0.0
    %357 = vmatprep.subr.mxu0 0.0
    %358 = vmatpush1.xpose.msra.mxu0 0.0
    %359 = vmatprep.subr.mxu0 0.0
    %360 = vmatpush1.xpose.msra.mxu0 0.0
    %361 = vmatprep.subr.mxu0 0.0
    %362 = vmatpush1.xpose.msra.mxu0 0.0
    %363 = vmatprep.subr.mxu0 0.0
    %364 = vmatpush1.xpose.msra.mxu0 0.0
    %365 = vmatprep.subr.mxu0 0.0
    %366 = vmatpush1.xpose.msra.mxu0 0.0
    %367 = vmatprep.subr.mxu0 0.0
    %368 = vmatpush1.xpose.msra.mxu0 0.0
    %369 = vmatprep.subr.mxu0 0.0
    %370 = vmatpush1.xpose.msra.mxu0 0.0
    %371 = vmatprep.mubr.f32.mxu0 0.0
    %372 = vmatmul.mubr.f32.gmra.mrb[0].mxu0 %v303
    %v373 = vpop.f32.mrb[0].mxu0
    %v374 = vadd.f32 %v150, %v373
    %v375 = vpop.f32.mrb[0].mxu0
    %376 = vdwg.mxu0
    %377 = vrot.lane.b32.xlu0 %v283, 96
    %v378 = vpop.permute.xlu0 %377
    %v379 = vsel %vm302, %v283, 0
    %v381 = vsel %vm302, %v378, 0
    %383 = vmatprep.subr.mxu0 0.0
    %384 = vmatpush1.xpose.msra.mxu0 %v381
    %385 = vmatprep.subr.mxu0 0.0
    %386 = vmatpush1.xpose.msra.mxu0 0.0
    %387 = vmatprep.subr.mxu0 0.0
    %388 = vmatpush1.xpose.msra.mxu0 0.0
    %389 = vmatprep.subr.mxu0 0.0
    %390 = vmatpush1.xpose.msra.mxu0 0.0
    %391 = vmatprep.subr.mxu0 0.0
    %392 = vmatpush1.xpose.msra.mxu0 0.0
    %393 = vmatprep.subr.mxu0 0.0
    %394 = vmatpush1.xpose.msra.mxu0 0.0
    %395 = vmatprep.subr.mxu0 0.0
    %396 = vmatpush1.xpose.msra.mxu0 0.0
    %397 = vmatprep.subr.mxu0 0.0
    %398 = vmatpush1.xpose.msra.mxu0 0.0
    %399 = vmatprep.subr.mxu0 0.0
    %400 = vmatpush1.xpose.msra.mxu0 0.0
    %401 = vmatprep.subr.mxu0 0.0
    %402 = vmatpush1.xpose.msra.mxu0 0.0
    %403 = vmatprep.subr.mxu0 0.0
    %404 = vmatpush1.xpose.msra.mxu0 0.0
    %405 = vmatprep.subr.mxu0 0.0
    %406 = vmatpush1.xpose.msra.mxu0 0.0
    %407 = vmatprep.subr.mxu0 0.0
    %408 = vmatpush1.xpose.msra.mxu0 0.0
    %409 = vmatprep.subr.mxu0 0.0
    %410 = vmatpush1.xpose.msra.mxu0 0.0
    %411 = vmatprep.subr.mxu0 0.0
    %412 = vmatpush1.xpose.msra.mxu0 0.0
    %413 = vmatprep.subr.mxu0 0.0
    %414 = vmatpush1.xpose.msra.mxu0 0.0
    %415 = vmatprep.subr.mxu0 0.0
    %416 = vmatpush1.xpose.msra.mxu0 0.0
    %417 = vmatprep.subr.mxu0 0.0
    %418 = vmatpush1.xpose.msra.mxu0 0.0
    %419 = vmatprep.subr.mxu0 0.0
    %420 = vmatpush1.xpose.msra.mxu0 0.0
    %421 = vmatprep.subr.mxu0 0.0
    %422 = vmatpush1.xpose.msra.mxu0 0.0
    %423 = vmatprep.subr.mxu0 0.0
    %424 = vmatpush1.xpose.msra.mxu0 0.0
    %425 = vmatprep.subr.mxu0 0.0
    %426 = vmatpush1.xpose.msra.mxu0 0.0
    %427 = vmatprep.subr.mxu0 0.0
    %428 = vmatpush1.xpose.msra.mxu0 0.0
    %429 = vmatprep.subr.mxu0 0.0
    %430 = vmatpush1.xpose.msra.mxu0 0.0
    %431 = vmatprep.subr.mxu0 0.0
    %432 = vmatpush1.xpose.msra.mxu0 0.0
    %433 = vmatprep.subr.mxu0 0.0
    %434 = vmatpush1.xpose.msra.mxu0 0.0
    %435 = vmatprep.subr.mxu0 0.0
    %436 = vmatpush1.xpose.msra.mxu0 0.0
    %437 = vmatprep.subr.mxu0 0.0
    %438 = vmatpush1.xpose.msra.mxu0 0.0
    %439 = vmatprep.subr.mxu0 0.0
    %440 = vmatpush1.xpose.msra.mxu0 0.0
    %441 = vmatprep.subr.mxu0 0.0
    %442 = vmatpush1.xpose.msra.mxu0 0.0
    %443 = vmatprep.subr.mxu0 0.0
    %444 = vmatpush1.xpose.msra.mxu0 0.0
    %445 = vmatprep.subr.mxu0 0.0
    %446 = vmatpush1.xpose.msra.mxu0 0.0
    %447 = vmatprep.mubr.f32.mxu0 0.0
    %448 = vmatmul.mubr.f32.gmra.mrb[0].mxu0 %v379
    %v449 = vpop.f32.mrb[0].mxu0
    %v450 = vadd.f32 %v150, %v449
    %v451 = vpop.f32.mrb[0].mxu0
    %452 = vdwg.mxu0
    %453 = vrot.lane.b32.xlu0 %v289, 96
    %v454 = vpop.permute.xlu0 %453
    %v455 = vsel %vm302, %v289, 0
    %v457 = vsel %vm302, %v454, 0
    %459 = vmatprep.subr.mxu0 0.0
    %460 = vmatpush1.xpose.msra.mxu0 %v457
    %461 = vmatprep.subr.mxu0 0.0
    %462 = vmatpush1.xpose.msra.mxu0 0.0
    %463 = vmatprep.subr.mxu0 0.0
    %464 = vmatpush1.xpose.msra.mxu0 0.0
    %465 = vmatprep.subr.mxu0 0.0
    %466 = vmatpush1.xpose.msra.mxu0 0.0
    %467 = vmatprep.subr.mxu0 0.0
    %468 = vmatpush1.xpose.msra.mxu0 0.0
    %469 = vmatprep.subr.mxu0 0.0
    %470 = vmatpush1.xpose.msra.mxu0 0.0
    %471 = vmatprep.subr.mxu0 0.0
    %472 = vmatpush1.xpose.msra.mxu0 0.0
    %473 = vmatprep.subr.mxu0 0.0
    %474 = vmatpush1.xpose.msra.mxu0 0.0
    %475 = vmatprep.subr.mxu0 0.0
    %476 = vmatpush1.xpose.msra.mxu0 0.0
    %477 = vmatprep.subr.mxu0 0.0
    %478 = vmatpush1.xpose.msra.mxu0 0.0
    %479 = vmatprep.subr.mxu0 0.0
    %480 = vmatpush1.xpose.msra.mxu0 0.0
    %481 = vmatprep.subr.mxu0 0.0
    %482 = vmatpush1.xpose.msra.mxu0 0.0
    %483 = vmatprep.subr.mxu0 0.0
    %484 = vmatpush1.xpose.msra.mxu0 0.0
    %485 = vmatprep.subr.mxu0 0.0
    %486 = vmatpush1.xpose.msra.mxu0 0.0
    %487 = vmatprep.subr.mxu0 0.0
    %488 = vmatpush1.xpose.msra.mxu0 0.0
    %489 = vmatprep.subr.mxu0 0.0
    %490 = vmatpush1.xpose.msra.mxu0 0.0
    %491 = vmatprep.subr.mxu0 0.0
    %492 = vmatpush1.xpose.msra.mxu0 0.0
    %493 = vmatprep.subr.mxu0 0.0
    %494 = vmatpush1.xpose.msra.mxu0 0.0
    %495 = vmatprep.subr.mxu0 0.0
    %496 = vmatpush1.xpose.msra.mxu0 0.0
    %497 = vmatprep.subr.mxu0 0.0
    %498 = vmatpush1.xpose.msra.mxu0 0.0
    %499 = vmatprep.subr.mxu0 0.0
    %500 = vmatpush1.xpose.msra.mxu0 0.0
    %501 = vmatprep.subr.mxu0 0.0
    %502 = vmatpush1.xpose.msra.mxu0 0.0
    %503 = vmatprep.subr.mxu0 0.0
    %504 = vmatpush1.xpose.msra.mxu0 0.0
    %505 = vmatprep.subr.mxu0 0.0
    %506 = vmatpush1.xpose.msra.mxu0 0.0
    %507 = vmatprep.subr.mxu0 0.0
    %508 = vmatpush1.xpose.msra.mxu0 0.0
    %509 = vmatprep.subr.mxu0 0.0
    %510 = vmatpush1.xpose.msra.mxu0 0.0
    %511 = vmatprep.subr.mxu0 0.0
    %512 = vmatpush1.xpose.msra.mxu0 0.0
    %513 = vmatprep.subr.mxu0 0.0
    %514 = vmatpush1.xpose.msra.mxu0 0.0
    %515 = vmatprep.subr.mxu0 0.0
    %516 = vmatpush1.xpose.msra.mxu0 0.0
    %517 = vmatprep.subr.mxu0 0.0
    %518 = vmatpush1.xpose.msra.mxu0 0.0
    %519 = vmatprep.subr.mxu0 0.0
    %520 = vmatpush1.xpose.msra.mxu0 0.0
    %521 = vmatprep.subr.mxu0 0.0
    %522 = vmatpush1.xpose.msra.mxu0 0.0
    %523 = vmatprep.mubr.f32.mxu0 0.0
    %524 = vmatmul.mubr.f32.gmra.mrb[0].mxu0 %v455
    %v525 = vpop.f32.mrb[0].mxu0
    %v526 = vadd.f32 %v150, %v525
    %v527 = vpop.f32.mrb[0].mxu0
    %528 = vdwg.mxu0
    %529 = vrot.lane.b32.xlu0 %v291, 96
    %v530 = vpop.permute.xlu0 %529
    %v531 = vsel %vm302, %v291, 0
    %v533 = vsel %vm302, %v530, 0
    %535 = vmatprep.subr.mxu0 0.0
    %536 = vmatpush1.xpose.msra.mxu0 %v533
    %537 = vmatprep.subr.mxu0 0.0
    %538 = vmatpush1.xpose.msra.mxu0 0.0
    %539 = vmatprep.subr.mxu0 0.0
    %540 = vmatpush1.xpose.msra.mxu0 0.0
    %541 = vmatprep.subr.mxu0 0.0
    %542 = vmatpush1.xpose.msra.mxu0 0.0
    %543 = vmatprep.subr.mxu0 0.0
    %544 = vmatpush1.xpose.msra.mxu0 0.0
    %545 = vmatprep.subr.mxu0 0.0
    %546 = vmatpush1.xpose.msra.mxu0 0.0
    %547 = vmatprep.subr.mxu0 0.0
    %548 = vmatpush1.xpose.msra.mxu0 0.0
    %549 = vmatprep.subr.mxu0 0.0
    %550 = vmatpush1.xpose.msra.mxu0 0.0
    %551 = vmatprep.subr.mxu0 0.0
    %552 = vmatpush1.xpose.msra.mxu0 0.0
    %553 = vmatprep.subr.mxu0 0.0
    %554 = vmatpush1.xpose.msra.mxu0 0.0
    %555 = vmatprep.subr.mxu0 0.0
    %556 = vmatpush1.xpose.msra.mxu0 0.0
    %557 = vmatprep.subr.mxu0 0.0
    %558 = vmatpush1.xpose.msra.mxu0 0.0
    %559 = vmatprep.subr.mxu0 0.0
    %560 = vmatpush1.xpose.msra.mxu0 0.0
    %561 = vmatprep.subr.mxu0 0.0
    %562 = vmatpush1.xpose.msra.mxu0 0.0
    %563 = vmatprep.subr.mxu0 0.0
    %564 = vmatpush1.xpose.msra.mxu0 0.0
    %565 = vmatprep.subr.mxu0 0.0
    %566 = vmatpush1.xpose.msra.mxu0 0.0
    %567 = vmatprep.subr.mxu0 0.0
    %568 = vmatpush1.xpose.msra.mxu0 0.0
    %569 = vmatprep.subr.mxu0 0.0
    %570 = vmatpush1.xpose.msra.mxu0 0.0
    %571 = vmatprep.subr.mxu0 0.0
    %572 = vmatpush1.xpose.msra.mxu0 0.0
    %573 = vmatprep.subr.mxu0 0.0
    %574 = vmatpush1.xpose.msra.mxu0 0.0
    %575 = vmatprep.subr.mxu0 0.0
    %576 = vmatpush1.xpose.msra.mxu0 0.0
    %577 = vmatprep.subr.mxu0 0.0
    %578 = vmatpush1.xpose.msra.mxu0 0.0
    %579 = vmatprep.subr.mxu0 0.0
    %580 = vmatpush1.xpose.msra.mxu0 0.0
    %581 = vmatprep.subr.mxu0 0.0
    %582 = vmatpush1.xpose.msra.mxu0 0.0
    %583 = vmatprep.subr.mxu0 0.0
    %584 = vmatpush1.xpose.msra.mxu0 0.0
    %585 = vmatprep.subr.mxu0 0.0
    %586 = vmatpush1.xpose.msra.mxu0 0.0
    %587 = vmatprep.subr.mxu0 0.0
    %588 = vmatpush1.xpose.msra.mxu0 0.0
    %589 = vmatprep.subr.mxu0 0.0
    %590 = vmatpush1.xpose.msra.mxu0 0.0
    %591 = vmatprep.subr.mxu0 0.0
    %592 = vmatpush1.xpose.msra.mxu0 0.0
    %593 = vmatprep.subr.mxu0 0.0
    %594 = vmatpush1.xpose.msra.mxu0 0.0
    %595 = vmatprep.subr.mxu0 0.0
    %596 = vmatpush1.xpose.msra.mxu0 0.0
    %597 = vmatprep.subr.mxu0 0.0
    %598 = vmatpush1.xpose.msra.mxu0 0.0
    %599 = vmatprep.mubr.f32.mxu0 0.0
    %600 = vmatmul.mubr.f32.gmra.mrb[0].mxu0 %v531
    %v601 = vpop.f32.mrb[0].mxu0
    %v602 = vadd.f32 %v150, %v601
    %v603 = vpop.f32.mrb[0].mxu0
    %604 = vdwg.mxu0
    %605 = vrot.lane.b32.xlu0 %v293, 96
    %v606 = vpop.permute.xlu0 %605
    %v607 = vsel %vm302, %v293, 0
    %v609 = vsel %vm302, %v606, 0
    %611 = vmatprep.subr.mxu0 0.0
    %612 = vmatpush1.xpose.msra.mxu0 %v609
    %613 = vmatprep.subr.mxu0 0.0
    %614 = vmatpush1.xpose.msra.mxu0 0.0
    %615 = vmatprep.subr.mxu0 0.0
    %616 = vmatpush1.xpose.msra.mxu0 0.0
    %617 = vmatprep.subr.mxu0 0.0
    %618 = vmatpush1.xpose.msra.mxu0 0.0
    %619 = vmatprep.subr.mxu0 0.0
    %620 = vmatpush1.xpose.msra.mxu0 0.0
    %621 = vmatprep.subr.mxu0 0.0
    %622 = vmatpush1.xpose.msra.mxu0 0.0
    %623 = vmatprep.subr.mxu0 0.0
    %624 = vmatpush1.xpose.msra.mxu0 0.0
    %625 = vmatprep.subr.mxu0 0.0
    %626 = vmatpush1.xpose.msra.mxu0 0.0
    %627 = vmatprep.subr.mxu0 0.0
    %628 = vmatpush1.xpose.msra.mxu0 0.0
    %629 = vmatprep.subr.mxu0 0.0
    %630 = vmatpush1.xpose.msra.mxu0 0.0
    %631 = vmatprep.subr.mxu0 0.0
    %632 = vmatpush1.xpose.msra.mxu0 0.0
    %633 = vmatprep.subr.mxu0 0.0
    %634 = vmatpush1.xpose.msra.mxu0 0.0
    %635 = vmatprep.subr.mxu0 0.0
    %636 = vmatpush1.xpose.msra.mxu0 0.0
    %637 = vmatprep.subr.mxu0 0.0
    %638 = vmatpush1.xpose.msra.mxu0 0.0
    %639 = vmatprep.subr.mxu0 0.0
    %640 = vmatpush1.xpose.msra.mxu0 0.0
    %641 = vmatprep.subr.mxu0 0.0
    %642 = vmatpush1.xpose.msra.mxu0 0.0
    %643 = vmatprep.subr.mxu0 0.0
    %644 = vmatpush1.xpose.msra.mxu0 0.0
    %645 = vmatprep.subr.mxu0 0.0
    %646 = vmatpush1.xpose.msra.mxu0 0.0
    %647 = vmatprep.subr.mxu0 0.0
    %648 = vmatpush1.xpose.msra.mxu0 0.0
    %649 = vmatprep.subr.mxu0 0.0
    %650 = vmatpush1.xpose.msra.mxu0 0.0
    %651 = vmatprep.subr.mxu0 0.0
    %652 = vmatpush1.xpose.msra.mxu0 0.0
    %653 = vmatprep.subr.mxu0 0.0
    %654 = vmatpush1.xpose.msra.mxu0 0.0
    %655 = vmatprep.subr.mxu0 0.0
    %656 = vmatpush1.xpose.msra.mxu0 0.0
    %657 = vmatprep.subr.mxu0 0.0
    %658 = vmatpush1.xpose.msra.mxu0 0.0
    %659 = vmatprep.subr.mxu0 0.0
    %660 = vmatpush1.xpose.msra.mxu0 0.0
    %661 = vmatprep.subr.mxu0 0.0
    %662 = vmatpush1.xpose.msra.mxu0 0.0
    %663 = vmatprep.subr.mxu0 0.0
    %664 = vmatpush1.xpose.msra.mxu0 0.0
    %665 = vmatprep.subr.mxu0 0.0
    %666 = vmatpush1.xpose.msra.mxu0 0.0
    %667 = vmatprep.subr.mxu0 0.0
    %668 = vmatpush1.xpose.msra.mxu0 0.0
    %669 = vmatprep.subr.mxu0 0.0
    %670 = vmatpush1.xpose.msra.mxu0 0.0
    %671 = vmatprep.subr.mxu0 0.0
    %672 = vmatpush1.xpose.msra.mxu0 0.0
    %673 = vmatprep.subr.mxu0 0.0
    %674 = vmatpush1.xpose.msra.mxu0 0.0
    %675 = vmatprep.mubr.f32.mxu0 0.0
    %676 = vmatmul.mubr.f32.gmra.mrb[0].mxu0 %v607
    %v677 = vpop.f32.mrb[0].mxu0
    %v678 = vadd.f32 %v150, %v677
    %v679 = vpop.f32.mrb[0].mxu0
    %680 = vdwg.mxu0
    %681 = vrot.lane.b32.xlu0 %v295, 96
    %v682 = vpop.permute.xlu0 %681
    %v683 = vsel %vm302, %v295, 0
    %v685 = vsel %vm302, %v682, 0
    %687 = vmatprep.subr.mxu0 0.0
    %688 = vmatpush1.xpose.msra.mxu0 %v685
    %689 = vmatprep.subr.mxu0 0.0
    %690 = vmatpush1.xpose.msra.mxu0 0.0
    %691 = vmatprep.subr.mxu0 0.0
    %692 = vmatpush1.xpose.msra.mxu0 0.0
    %693 = vmatprep.subr.mxu0 0.0
    %694 = vmatpush1.xpose.msra.mxu0 0.0
    %695 = vmatprep.subr.mxu0 0.0
    %696 = vmatpush1.xpose.msra.mxu0 0.0
    %697 = vmatprep.subr.mxu0 0.0
    %698 = vmatpush1.xpose.msra.mxu0 0.0
    %699 = vmatprep.subr.mxu0 0.0
    %700 = vmatpush1.xpose.msra.mxu0 0.0
    %701 = vmatprep.subr.mxu0 0.0
    %702 = vmatpush1.xpose.msra.mxu0 0.0
    %703 = vmatprep.subr.mxu0 0.0
    %704 = vmatpush1.xpose.msra.mxu0 0.0
    %705 = vmatprep.subr.mxu0 0.0
    %706 = vmatpush1.xpose.msra.mxu0 0.0
    %707 = vmatprep.subr.mxu0 0.0
    %708 = vmatpush1.xpose.msra.mxu0 0.0
    %709 = vmatprep.subr.mxu0 0.0
    %710 = vmatpush1.xpose.msra.mxu0 0.0
    %711 = vmatprep.subr.mxu0 0.0
    %712 = vmatpush1.xpose.msra.mxu0 0.0
    %713 = vmatprep.subr.mxu0 0.0
    %714 = vmatpush1.xpose.msra.mxu0 0.0
    %715 = vmatprep.subr.mxu0 0.0
    %716 = vmatpush1.xpose.msra.mxu0 0.0
    %717 = vmatprep.subr.mxu0 0.0
    %718 = vmatpush1.xpose.msra.mxu0 0.0
    %719 = vmatprep.subr.mxu0 0.0
    %720 = vmatpush1.xpose.msra.mxu0 0.0
    %721 = vmatprep.subr.mxu0 0.0
    %722 = vmatpush1.xpose.msra.mxu0 0.0
    %723 = vmatprep.subr.mxu0 0.0
    %724 = vmatpush1.xpose.msra.mxu0 0.0
    %725 = vmatprep.subr.mxu0 0.0
    %726 = vmatpush1.xpose.msra.mxu0 0.0
    %727 = vmatprep.subr.mxu0 0.0
    %728 = vmatpush1.xpose.msra.mxu0 0.0
    %729 = vmatprep.subr.mxu0 0.0
    %730 = vmatpush1.xpose.msra.mxu0 0.0
    %731 = vmatprep.subr.mxu0 0.0
    %732 = vmatpush1.xpose.msra.mxu0 0.0
    %733 = vmatprep.subr.mxu0 0.0
    %734 = vmatpush1.xpose.msra.mxu0 0.0
    %735 = vmatprep.subr.mxu0 0.0
    %736 = vmatpush1.xpose.msra.mxu0 0.0
    %737 = vmatprep.subr.mxu0 0.0
    %738 = vmatpush1.xpose.msra.mxu0 0.0
    %739 = vmatprep.subr.mxu0 0.0
    %740 = vmatpush1.xpose.msra.mxu0 0.0
    %741 = vmatprep.subr.mxu0 0.0
    %742 = vmatpush1.xpose.msra.mxu0 0.0
    %743 = vmatprep.subr.mxu0 0.0
    %744 = vmatpush1.xpose.msra.mxu0 0.0
    %745 = vmatprep.subr.mxu0 0.0
    %746 = vmatpush1.xpose.msra.mxu0 0.0
    %747 = vmatprep.subr.mxu0 0.0
    %748 = vmatpush1.xpose.msra.mxu0 0.0
    %749 = vmatprep.subr.mxu0 0.0
    %750 = vmatpush1.xpose.msra.mxu0 0.0
    %751 = vmatprep.mubr.f32.mxu0 0.0
    %752 = vmatmul.mubr.f32.gmra.mrb[0].mxu0 %v683
    %v753 = vpop.f32.mrb[0].mxu0
    %v754 = vadd.f32 %v150, %v753
    %v755 = vpop.f32.mrb[0].mxu0
    %756 = vdwg.mxu0
    %757 = vrot.lane.b32.xlu0 %v297, 96
    %v758 = vpop.permute.xlu0 %757
    %v759 = vsel %vm302, %v297, 0
    %v761 = vsel %vm302, %v758, 0
    %763 = vmatprep.subr.mxu0 0.0
    %764 = vmatpush1.xpose.msra.mxu0 %v761
    %765 = vmatprep.subr.mxu0 0.0
    %766 = vmatpush1.xpose.msra.mxu0 0.0
    %767 = vmatprep.subr.mxu0 0.0
    %768 = vmatpush1.xpose.msra.mxu0 0.0
    %769 = vmatprep.subr.mxu0 0.0
    %770 = vmatpush1.xpose.msra.mxu0 0.0
    %771 = vmatprep.subr.mxu0 0.0
    %772 = vmatpush1.xpose.msra.mxu0 0.0
    %773 = vmatprep.subr.mxu0 0.0
    %774 = vmatpush1.xpose.msra.mxu0 0.0
    %775 = vmatprep.subr.mxu0 0.0
    %776 = vmatpush1.xpose.msra.mxu0 0.0
    %777 = vmatprep.subr.mxu0 0.0
    %778 = vmatpush1.xpose.msra.mxu0 0.0
    %779 = vmatprep.subr.mxu0 0.0
    %780 = vmatpush1.xpose.msra.mxu0 0.0
    %781 = vmatprep.subr.mxu0 0.0
    %782 = vmatpush1.xpose.msra.mxu0 0.0
    %783 = vmatprep.subr.mxu0 0.0
    %784 = vmatpush1.xpose.msra.mxu0 0.0
    %785 = vmatprep.subr.mxu0 0.0
    %786 = vmatpush1.xpose.msra.mxu0 0.0
    %787 = vmatprep.subr.mxu0 0.0
    %788 = vmatpush1.xpose.msra.mxu0 0.0
    %789 = vmatprep.subr.mxu0 0.0
    %790 = vmatpush1.xpose.msra.mxu0 0.0
    %791 = vmatprep.subr.mxu0 0.0
    %792 = vmatpush1.xpose.msra.mxu0 0.0
    %793 = vmatprep.subr.mxu0 0.0
    %794 = vmatpush1.xpose.msra.mxu0 0.0
    %795 = vmatprep.subr.mxu0 0.0
    %796 = vmatpush1.xpose.msra.mxu0 0.0
    %797 = vmatprep.subr.mxu0 0.0
    %798 = vmatpush1.xpose.msra.mxu0 0.0
    %799 = vmatprep.subr.mxu0 0.0
    %800 = vmatpush1.xpose.msra.mxu0 0.0
    %801 = vmatprep.subr.mxu0 0.0
    %802 = vmatpush1.xpose.msra.mxu0 0.0
    %803 = vmatprep.subr.mxu0 0.0
    %804 = vmatpush1.xpose.msra.mxu0 0.0
    %805 = vmatprep.subr.mxu0 0.0
    %806 = vmatpush1.xpose.msra.mxu0 0.0
    %807 = vmatprep.subr.mxu0 0.0
    %808 = vmatpush1.xpose.msra.mxu0 0.0
    %809 = vmatprep.subr.mxu0 0.0
    %810 = vmatpush1.xpose.msra.mxu0 0.0
    %811 = vmatprep.subr.mxu0 0.0
    %812 = vmatpush1.xpose.msra.mxu0 0.0
    %813 = vmatprep.subr.mxu0 0.0
    %814 = vmatpush1.xpose.msra.mxu0 0.0
    %815 = vmatprep.subr.mxu0 0.0
    %816 = vmatpush1.xpose.msra.mxu0 0.0
    %817 = vmatprep.subr.mxu0 0.0
    %818 = vmatpush1.xpose.msra.mxu0 0.0
    %819 = vmatprep.subr.mxu0 0.0
    %820 = vmatpush1.xpose.msra.mxu0 0.0
    %821 = vmatprep.subr.mxu0 0.0
    %822 = vmatpush1.xpose.msra.mxu0 0.0
    %823 = vmatprep.subr.mxu0 0.0
    %824 = vmatpush1.xpose.msra.mxu0 0.0
    %825 = vmatprep.subr.mxu0 0.0
    %826 = vmatpush1.xpose.msra.mxu0 0.0
    %827 = vmatprep.mubr.f32.mxu0 0.0
    %828 = vmatmul.mubr.f32.gmra.mrb[0].mxu0 %v759
    %v829 = vpop.f32.mrb[0].mxu0
    %v830 = vadd.f32 %v150, %v829
    %v831 = vpop.f32.mrb[0].mxu0
    %832 = vdwg.mxu0
    %833 = vrot.lane.b32.xlu0 %v299, 96
    %v834 = vpop.permute.xlu0 %833
    %v835 = vsel %vm302, %v299, 0
    %v837 = vsel %vm302, %v834, 0
    %839 = vmatprep.subr.mxu0 0.0
    %840 = vmatpush1.xpose.msra.mxu0 %v837
    %841 = vmatprep.subr.mxu0 0.0
    %842 = vmatpush1.xpose.msra.mxu0 0.0
    %843 = vmatprep.subr.mxu0 0.0
    %844 = vmatpush1.xpose.msra.mxu0 0.0
    %845 = vmatprep.subr.mxu0 0.0
    %846 = vmatpush1.xpose.msra.mxu0 0.0
    %847 = vmatprep.subr.mxu0 0.0
    %848 = vmatpush1.xpose.msra.mxu0 0.0
    %849 = vmatprep.subr.mxu0 0.0
    %850 = vmatpush1.xpose.msra.mxu0 0.0
    %851 = vmatprep.subr.mxu0 0.0
    %852 = vmatpush1.xpose.msra.mxu0 0.0
    %853 = vmatprep.subr.mxu0 0.0
    %854 = vmatpush1.xpose.msra.mxu0 0.0
    %855 = vmatprep.subr.mxu0 0.0
    %856 = vmatpush1.xpose.msra.mxu0 0.0
    %857 = vmatprep.subr.mxu0 0.0
    %858 = vmatpush1.xpose.msra.mxu0 0.0
    %859 = vmatprep.subr.mxu0 0.0
    %860 = vmatpush1.xpose.msra.mxu0 0.0
    %861 = vmatprep.subr.mxu0 0.0
    %862 = vmatpush1.xpose.msra.mxu0 0.0
    %863 = vmatprep.subr.mxu0 0.0
    %864 = vmatpush1.xpose.msra.mxu0 0.0
    %865 = vmatprep.subr.mxu0 0.0
    %866 = vmatpush1.xpose.msra.mxu0 0.0
    %867 = vmatprep.subr.mxu0 0.0
    %868 = vmatpush1.xpose.msra.mxu0 0.0
    %869 = vmatprep.subr.mxu0 0.0
    %870 = vmatpush1.xpose.msra.mxu0 0.0
    %871 = vmatprep.subr.mxu0 0.0
    %872 = vmatpush1.xpose.msra.mxu0 0.0
    %873 = vmatprep.subr.mxu0 0.0
    %874 = vmatpush1.xpose.msra.mxu0 0.0
    %875 = vmatprep.subr.mxu0 0.0
    %876 = vmatpush1.xpose.msra.mxu0 0.0
    %877 = vmatprep.subr.mxu0 0.0
    %878 = vmatpush1.xpose.msra.mxu0 0.0
    %879 = vmatprep.subr.mxu0 0.0
    %880 = vmatpush1.xpose.msra.mxu0 0.0
    %881 = vmatprep.subr.mxu0 0.0
    %882 = vmatpush1.xpose.msra.mxu0 0.0
    %883 = vmatprep.subr.mxu0 0.0
    %884 = vmatpush1.xpose.msra.mxu0 0.0
    %885 = vmatprep.subr.mxu0 0.0
    %886 = vmatpush1.xpose.msra.mxu0 0.0
    %887 = vmatprep.subr.mxu0 0.0
    %888 = vmatpush1.xpose.msra.mxu0 0.0
    %889 = vmatprep.subr.mxu0 0.0
    %890 = vmatpush1.xpose.msra.mxu0 0.0
    %891 = vmatprep.subr.mxu0 0.0
    %892 = vmatpush1.xpose.msra.mxu0 0.0
    %893 = vmatprep.subr.mxu0 0.0
    %894 = vmatpush1.xpose.msra.mxu0 0.0
    %895 = vmatprep.subr.mxu0 0.0
    %896 = vmatpush1.xpose.msra.mxu0 0.0
    %897 = vmatprep.subr.mxu0 0.0
    %898 = vmatpush1.xpose.msra.mxu0 0.0
    %899 = vmatprep.subr.mxu0 0.0
    %900 = vmatpush1.xpose.msra.mxu0 0.0
    %901 = vmatprep.subr.mxu0 0.0
    %902 = vmatpush1.xpose.msra.mxu0 0.0
    %903 = vmatprep.mubr.f32.mxu0 0.0
    %904 = vmatmul.mubr.f32.gmra.mrb[0].mxu0 %v835
    %v905 = vpop.f32.mrb[0].mxu0
    %v906 = vadd.f32 %v150, %v905
    %v907 = vpop.f32.mrb[0].mxu0
    %908 = vdwg.mxu0
    %v909 = vsel %vm302, %v374, -inf
    %910 = vmax.xlane.f32.xlu0 %v909
    %v911 = vpop.xlane.xlu0 %910
    %v912 = vsel %vm302, %v450, -inf
    %913 = vmax.xlane.f32.xlu0 %v912
    %v914 = vpop.xlane.xlu0 %913
    %v915 = vsel %vm302, %v526, -inf
    %916 = vmax.xlane.f32.xlu0 %v915
    %v917 = vpop.xlane.xlu0 %916
    %v918 = vsel %vm302, %v602, -inf
    %919 = vmax.xlane.f32.xlu0 %v918
    %v920 = vpop.xlane.xlu0 %919
    %v921 = vsel %vm302, %v678, -inf
    %922 = vmax.xlane.f32.xlu0 %v921
    %v923 = vpop.xlane.xlu0 %922
    %v924 = vsel %vm302, %v754, -inf
    %925 = vmax.xlane.f32.xlu0 %v924
    %v926 = vpop.xlane.xlu0 %925
    %v927 = vsel %vm302, %v830, -inf
    %928 = vmax.xlane.f32.xlu0 %v927
    %v929 = vpop.xlane.xlu0 %928
    %v930 = vsel %vm302, %v906, -inf
    %931 = vmax.xlane.f32.xlu0 %v930
    %v932 = vpop.xlane.xlu0 %931
    %v933 = vsub.f32 %v374, %v911
    %v934 = vsub.f32 %v450, %v914
    %v935 = vsub.f32 %v526, %v917
    %v936 = vsub.f32 %v602, %v920
    %v937 = vsub.f32 %v678, %v923
    %v938 = vsub.f32 %v754, %v926
    %v939 = vsub.f32 %v830, %v929
    %v940 = vsub.f32 %v906, %v932
    %v941 = vmul.f32 %v933, 1.442695
    %v942 = vpow.pop %v941
    %v943 = vmul.f32 %v934, 1.442695
    %v944 = vpow.pop %v943
    %v945 = vmul.f32 %v935, 1.442695
    %v946 = vpow.pop %v945
    %v947 = vmul.f32 %v936, 1.442695
    %v948 = vpow.pop %v947
    %v949 = vmul.f32 %v937, 1.442695
    %v950 = vpow.pop %v949
    %v951 = vmul.f32 %v938, 1.442695
    %v952 = vpow.pop %v951
    %v953 = vmul.f32 %v939, 1.442695
    %v954 = vpow.pop %v953
    %v955 = vmul.f32 %v940, 1.442695
    %v956 = vpow.pop %v955
    %v957 = vsel %vm302, %v942, 0.0
    %958 = vadd.xlane.f32.xlu0 %v957
    %v959 = vpop.xlane.xlu0 %958
    %v960 = vsel %vm302, %v944, 0.0
    %961 = vadd.xlane.f32.xlu0 %v960
    %v962 = vpop.xlane.xlu0 %961
    %v963 = vsel %vm302, %v946, 0.0
    %964 = vadd.xlane.f32.xlu0 %v963
    %v965 = vpop.xlane.xlu0 %964
    %v966 = vsel %vm302, %v948, 0.0
    %967 = vadd.xlane.f32.xlu0 %v966
    %v968 = vpop.xlane.xlu0 %967
    %v969 = vsel %vm302, %v950, 0.0
    %970 = vadd.xlane.f32.xlu0 %v969
    %v971 = vpop.xlane.xlu0 %970
    %v972 = vsel %vm302, %v952, 0.0
    %973 = vadd.xlane.f32.xlu0 %v972
    %v974 = vpop.xlane.xlu0 %973
    %v975 = vsel %vm302, %v954, 0.0
    %976 = vadd.xlane.f32.xlu0 %v975
    %v977 = vpop.xlane.xlu0 %976
    %v978 = vsel %vm302, %v956, 0.0
    %979 = vadd.xlane.f32.xlu0 %v978
    %v980 = vpop.xlane.xlu0 %979
    %v981 = vrcp.pop %v959
    %v982 = vrcp.pop %v962
    %v983 = vrcp.pop %v965
    %v984 = vrcp.pop %v968
    %v985 = vrcp.pop %v971
    %v986 = vrcp.pop %v974
    %v987 = vrcp.pop %v977
    %v988 = vrcp.pop %v980
    %v989 = vmul.f32 %v942, %v981
    %v990 = vmul.f32 %v944, %v982
    %v991 = vmul.f32 %v946, %v983
    %v992 = vmul.f32 %v948, %v984
    %v993 = vmul.f32 %v950, %v985
    %v994 = vmul.f32 %v952, %v986
    %v995 = vmul.f32 %v954, %v987
    %v996 = vmul.f32 %v956, %v988
    %997 = vrot.lane.b32.xlu0 %v278, 64
    %v998 = vpop.permute.xlu0 %997
    %v1001 = vsel %vm302, %v989, 0
    %1003 = vmatprep.subr.mxu0 0.0
    %1004 = vmatpush1.msra.mxu0 %v998
    %1005 = vmatprep.subr.mxu0 0.0
    %1006 = vmatpush1.msra.mxu0 0.0
    %1007 = vmatprep.subr.mxu0 0.0
    %1008 = vmatpush1.msra.mxu0 0.0
    %1009 = vmatprep.subr.mxu0 0.0
    %1010 = vmatpush1.msra.mxu0 0.0
    %1011 = vmatprep.subr.mxu0 0.0
    %1012 = vmatpush1.msra.mxu0 0.0
    %1013 = vmatprep.subr.mxu0 0.0
    %1014 = vmatpush1.msra.mxu0 0.0
    %1015 = vmatprep.subr.mxu0 0.0
    %1016 = vmatpush1.msra.mxu0 0.0
    %1017 = vmatprep.subr.mxu0 0.0
    %1018 = vmatpush1.msra.mxu0 0.0
    %1019 = vmatprep.subr.mxu0 0.0
    %1020 = vmatpush1.msra.mxu0 0.0
    %1021 = vmatprep.subr.mxu0 0.0
    %1022 = vmatpush1.msra.mxu0 0.0
    %1023 = vmatprep.subr.mxu0 0.0
    %1024 = vmatpush1.msra.mxu0 0.0
    %1025 = vmatprep.subr.mxu0 0.0
    %1026 = vmatpush1.msra.mxu0 0.0
    %1027 = vmatprep.subr.mxu0 0.0
    %1028 = vmatpush1.msra.mxu0 0.0
    %1029 = vmatprep.subr.mxu0 0.0
    %1030 = vmatpush1.msra.mxu0 0.0
    %1031 = vmatprep.subr.mxu0 0.0
    %1032 = vmatpush1.msra.mxu0 0.0
    %1033 = vmatprep.subr.mxu0 0.0
    %1034 = vmatpush1.msra.mxu0 0.0
    %1035 = vmatprep.subr.mxu0 0.0
    %1036 = vmatpush1.msra.mxu0 0.0
    %1037 = vmatprep.subr.mxu0 0.0
    %1038 = vmatpush1.msra.mxu0 0.0
    %1039 = vmatprep.subr.mxu0 0.0
    %1040 = vmatpush1.msra.mxu0 0.0
    %1041 = vmatprep.subr.mxu0 0.0
    %1042 = vmatpush1.msra.mxu0 0.0
    %1043 = vmatprep.subr.mxu0 0.0
    %1044 = vmatpush1.msra.mxu0 0.0
    %1045 = vmatprep.subr.mxu0 0.0
    %1046 = vmatpush1.msra.mxu0 0.0
    %1047 = vmatprep.subr.mxu0 0.0
    %1048 = vmatpush1.msra.mxu0 0.0
    %1049 = vmatprep.subr.mxu0 0.0
    %1050 = vmatpush1.msra.mxu0 0.0
    %1051 = vmatprep.subr.mxu0 0.0
    %1052 = vmatpush1.msra.mxu0 0.0
    %1053 = vmatprep.subr.mxu0 0.0
    %1054 = vmatpush1.msra.mxu0 0.0
    %1055 = vmatprep.subr.mxu0 0.0
    %1056 = vmatpush1.msra.mxu0 0.0
    %1057 = vmatprep.subr.mxu0 0.0
    %1058 = vmatpush1.msra.mxu0 0.0
    %1059 = vmatprep.subr.mxu0 0.0
    %1060 = vmatpush1.msra.mxu0 0.0
    %1061 = vmatprep.subr.mxu0 0.0
    %1062 = vmatpush1.msra.mxu0 0.0
    %1063 = vmatprep.subr.mxu0 0.0
    %1064 = vmatpush1.msra.mxu0 0.0
    %1065 = vmatprep.subr.mxu0 0.0
    %1066 = vmatpush1.msra.mxu0 0.0
    %1067 = vmatprep.mubr.f32.mxu0 0.0
    %1068 = vmatmul.mubr.f32.gmra.mrb[0].mxu0 %v1001
    %v1069 = vpop.f32.mrb[0].mxu0
    %v1070 = vadd.f32 0.0, %v1069
    %v1071 = vpop.f32.mrb[0].mxu0
    %1072 = vdwg.mxu0
    %1073 = vrot.lane.b32.xlu0 %v283, 64
    %v1074 = vpop.permute.xlu0 %1073
    %v1077 = vsel %vm302, %v990, 0
    %1079 = vmatprep.subr.mxu0 0.0
    %1080 = vmatpush1.msra.mxu0 %v1074
    %1081 = vmatprep.subr.mxu0 0.0
    %1082 = vmatpush1.msra.mxu0 0.0
    %1083 = vmatprep.subr.mxu0 0.0
    %1084 = vmatpush1.msra.mxu0 0.0
    %1085 = vmatprep.subr.mxu0 0.0
    %1086 = vmatpush1.msra.mxu0 0.0
    %1087 = vmatprep.subr.mxu0 0.0
    %1088 = vmatpush1.msra.mxu0 0.0
    %1089 = vmatprep.subr.mxu0 0.0
    %1090 = vmatpush1.msra.mxu0 0.0
    %1091 = vmatprep.subr.mxu0 0.0
    %1092 = vmatpush1.msra.mxu0 0.0
    %1093 = vmatprep.subr.mxu0 0.0
    %1094 = vmatpush1.msra.mxu0 0.0
    %1095 = vmatprep.subr.mxu0 0.0
    %1096 = vmatpush1.msra.mxu0 0.0
    %1097 = vmatprep.subr.mxu0 0.0
    %1098 = vmatpush1.msra.mxu0 0.0
    %1099 = vmatprep.subr.mxu0 0.0
    %1100 = vmatpush1.msra.mxu0 0.0
    %1101 = vmatprep.subr.mxu0 0.0
    %1102 = vmatpush1.msra.mxu0 0.0
    %1103 = vmatprep.subr.mxu0 0.0
    %1104 = vmatpush1.msra.mxu0 0.0
    %1105 = vmatprep.subr.mxu0 0.0
    %1106 = vmatpush1.msra.mxu0 0.0
    %1107 = vmatprep.subr.mxu0 0.0
    %1108 = vmatpush1.msra.mxu0 0.0
    %1109 = vmatprep.subr.mxu0 0.0
    %1110 = vmatpush1.msra.mxu0 0.0
    %1111 = vmatprep.subr.mxu0 0.0
    %1112 = vmatpush1.msra.mxu0 0.0
    %1113 = vmatprep.subr.mxu0 0.0
    %1114 = vmatpush1.msra.mxu0 0.0
    %1115 = vmatprep.subr.mxu0 0.0
    %1116 = vmatpush1.msra.mxu0 0.0
    %1117 = vmatprep.subr.mxu0 0.0
    %1118 = vmatpush1.msra.mxu0 0.0
    %1119 = vmatprep.subr.mxu0 0.0
    %1120 = vmatpush1.msra.mxu0 0.0
    %1121 = vmatprep.subr.mxu0 0.0
    %1122 = vmatpush1.msra.mxu0 0.0
    %1123 = vmatprep.subr.mxu0 0.0
    %1124 = vmatpush1.msra.mxu0 0.0
    %1125 = vmatprep.subr.mxu0 0.0
    %1126 = vmatpush1.msra.mxu0 0.0
    %1127 = vmatprep.subr.mxu0 0.0
    %1128 = vmatpush1.msra.mxu0 0.0
    %1129 = vmatprep.subr.mxu0 0.0
    %1130 = vmatpush1.msra.mxu0 0.0
    %1131 = vmatprep.subr.mxu0 0.0
    %1132 = vmatpush1.msra.mxu0 0.0
    %1133 = vmatprep.subr.mxu0 0.0
    %1134 = vmatpush1.msra.mxu0 0.0
    %1135 = vmatprep.subr.mxu0 0.0
    %1136 = vmatpush1.msra.mxu0 0.0
    %1137 = vmatprep.subr.mxu0 0.0
    %1138 = vmatpush1.msra.mxu0 0.0
    %1139 = vmatprep.subr.mxu0 0.0
    %1140 = vmatpush1.msra.mxu0 0.0
    %1141 = vmatprep.subr.mxu0 0.0
    %1142 = vmatpush1.msra.mxu0 0.0
    %1143 = vmatprep.mubr.f32.mxu0 0.0
    %1144 = vmatmul.mubr.f32.gmra.mrb[0].mxu0 %v1077
    %v1145 = vpop.f32.mrb[0].mxu0
    %v1146 = vadd.f32 0.0, %v1145
    %v1147 = vpop.f32.mrb[0].mxu0
    %1148 = vdwg.mxu0
    %1149 = vrot.lane.b32.xlu0 %v289, 64
    %v1150 = vpop.permute.xlu0 %1149
    %v1153 = vsel %vm302, %v991, 0
    %1155 = vmatprep.subr.mxu0 0.0
    %1156 = vmatpush1.msra.mxu0 %v1150
    %1157 = vmatprep.subr.mxu0 0.0
    %1158 = vmatpush1.msra.mxu0 0.0
    %1159 = vmatprep.subr.mxu0 0.0
    %1160 = vmatpush1.msra.mxu0 0.0
    %1161 = vmatprep.subr.mxu0 0.0
    %1162 = vmatpush1.msra.mxu0 0.0
    %1163 = vmatprep.subr.mxu0 0.0
    %1164 = vmatpush1.msra.mxu0 0.0
    %1165 = vmatprep.subr.mxu0 0.0
    %1166 = vmatpush1.msra.mxu0 0.0
    %1167 = vmatprep.subr.mxu0 0.0
    %1168 = vmatpush1.msra.mxu0 0.0
    %1169 = vmatprep.subr.mxu0 0.0
    %1170 = vmatpush1.msra.mxu0 0.0
    %1171 = vmatprep.subr.mxu0 0.0
    %1172 = vmatpush1.msra.mxu0 0.0
    %1173 = vmatprep.subr.mxu0 0.0
    %1174 = vmatpush1.msra.mxu0 0.0
    %1175 = vmatprep.subr.mxu0 0.0
    %1176 = vmatpush1.msra.mxu0 0.0
    %1177 = vmatprep.subr.mxu0 0.0
    %1178 = vmatpush1.msra.mxu0 0.0
    %1179 = vmatprep.subr.mxu0 0.0
    %1180 = vmatpush1.msra.mxu0 0.0
    %1181 = vmatprep.subr.mxu0 0.0
    %1182 = vmatpush1.msra.mxu0 0.0
    %1183 = vmatprep.subr.mxu0 0.0
    %1184 = vmatpush1.msra.mxu0 0.0
    %1185 = vmatprep.subr.mxu0 0.0
    %1186 = vmatpush1.msra.mxu0 0.0
    %1187 = vmatprep.subr.mxu0 0.0
    %1188 = vmatpush1.msra.mxu0 0.0
    %1189 = vmatprep.subr.mxu0 0.0
    %1190 = vmatpush1.msra.mxu0 0.0
    %1191 = vmatprep.subr.mxu0 0.0
    %1192 = vmatpush1.msra.mxu0 0.0
    %1193 = vmatprep.subr.mxu0 0.0
    %1194 = vmatpush1.msra.mxu0 0.0
    %1195 = vmatprep.subr.mxu0 0.0
    %1196 = vmatpush1.msra.mxu0 0.0
    %1197 = vmatprep.subr.mxu0 0.0
    %1198 = vmatpush1.msra.mxu0 0.0
    %1199 = vmatprep.subr.mxu0 0.0
    %1200 = vmatpush1.msra.mxu0 0.0
    %1201 = vmatprep.subr.mxu0 0.0
    %1202 = vmatpush1.msra.mxu0 0.0
    %1203 = vmatprep.subr.mxu0 0.0
    %1204 = vmatpush1.msra.mxu0 0.0
    %1205 = vmatprep.subr.mxu0 0.0
    %1206 = vmatpush1.msra.mxu0 0.0
    %1207 = vmatprep.subr.mxu0 0.0
    %1208 = vmatpush1.msra.mxu0 0.0
    %1209 = vmatprep.subr.mxu0 0.0
    %1210 = vmatpush1.msra.mxu0 0.0
    %1211 = vmatprep.subr.mxu0 0.0
    %1212 = vmatpush1.msra.mxu0 0.0
    %1213 = vmatprep.subr.mxu0 0.0
    %1214 = vmatpush1.msra.mxu0 0.0
    %1215 = vmatprep.subr.mxu0 0.0
    %1216 = vmatpush1.msra.mxu0 0.0
    %1217 = vmatprep.subr.mxu0 0.0
    %1218 = vmatpush1.msra.mxu0 0.0
    %1219 = vmatprep.mubr.f32.mxu0 0.0
    %1220 = vmatmul.mubr.f32.gmra.mrb[0].mxu0 %v1153
    %v1221 = vpop.f32.mrb[0].mxu0
    %v1222 = vadd.f32 0.0, %v1221
    %v1223 = vpop.f32.mrb[0].mxu0
    %1224 = vdwg.mxu0
    %1225 = vrot.lane.b32.xlu0 %v291, 64
    %v1226 = vpop.permute.xlu0 %1225
    %v1229 = vsel %vm302, %v992, 0
    %1231 = vmatprep.subr.mxu0 0.0
    %1232 = vmatpush1.msra.mxu0 %v1226
    %1233 = vmatprep.subr.mxu0 0.0
    %1234 = vmatpush1.msra.mxu0 0.0
    %1235 = vmatprep.subr.mxu0 0.0
    %1236 = vmatpush1.msra.mxu0 0.0
    %1237 = vmatprep.subr.mxu0 0.0
    %1238 = vmatpush1.msra.mxu0 0.0
    %1239 = vmatprep.subr.mxu0 0.0
    %1240 = vmatpush1.msra.mxu0 0.0
    %1241 = vmatprep.subr.mxu0 0.0
    %1242 = vmatpush1.msra.mxu0 0.0
    %1243 = vmatprep.subr.mxu0 0.0
    %1244 = vmatpush1.msra.mxu0 0.0
    %1245 = vmatprep.subr.mxu0 0.0
    %1246 = vmatpush1.msra.mxu0 0.0
    %1247 = vmatprep.subr.mxu0 0.0
    %1248 = vmatpush1.msra.mxu0 0.0
    %1249 = vmatprep.subr.mxu0 0.0
    %1250 = vmatpush1.msra.mxu0 0.0
    %1251 = vmatprep.subr.mxu0 0.0
    %1252 = vmatpush1.msra.mxu0 0.0
    %1253 = vmatprep.subr.mxu0 0.0
    %1254 = vmatpush1.msra.mxu0 0.0
    %1255 = vmatprep.subr.mxu0 0.0
    %1256 = vmatpush1.msra.mxu0 0.0
    %1257 = vmatprep.subr.mxu0 0.0
    %1258 = vmatpush1.msra.mxu0 0.0
    %1259 = vmatprep.subr.mxu0 0.0
    %1260 = vmatpush1.msra.mxu0 0.0
    %1261 = vmatprep.subr.mxu0 0.0
    %1262 = vmatpush1.msra.mxu0 0.0
    %1263 = vmatprep.subr.mxu0 0.0
    %1264 = vmatpush1.msra.mxu0 0.0
    %1265 = vmatprep.subr.mxu0 0.0
    %1266 = vmatpush1.msra.mxu0 0.0
    %1267 = vmatprep.subr.mxu0 0.0
    %1268 = vmatpush1.msra.mxu0 0.0
    %1269 = vmatprep.subr.mxu0 0.0
    %1270 = vmatpush1.msra.mxu0 0.0
    %1271 = vmatprep.subr.mxu0 0.0
    %1272 = vmatpush1.msra.mxu0 0.0
    %1273 = vmatprep.subr.mxu0 0.0
    %1274 = vmatpush1.msra.mxu0 0.0
    %1275 = vmatprep.subr.mxu0 0.0
    %1276 = vmatpush1.msra.mxu0 0.0
    %1277 = vmatprep.subr.mxu0 0.0
    %1278 = vmatpush1.msra.mxu0 0.0
    %1279 = vmatprep.subr.mxu0 0.0
    %1280 = vmatpush1.msra.mxu0 0.0
    %1281 = vmatprep.subr.mxu0 0.0
    %1282 = vmatpush1.msra.mxu0 0.0
    %1283 = vmatprep.subr.mxu0 0.0
    %1284 = vmatpush1.msra.mxu0 0.0
    %1285 = vmatprep.subr.mxu0 0.0
    %1286 = vmatpush1.msra.mxu0 0.0
    %1287 = vmatprep.subr.mxu0 0.0
    %1288 = vmatpush1.msra.mxu0 0.0
    %1289 = vmatprep.subr.mxu0 0.0
    %1290 = vmatpush1.msra.mxu0 0.0
    %1291 = vmatprep.subr.mxu0 0.0
    %1292 = vmatpush1.msra.mxu0 0.0
    %1293 = vmatprep.subr.mxu0 0.0
    %1294 = vmatpush1.msra.mxu0 0.0
    %1295 = vmatprep.mubr.f32.mxu0 0.0
    %1296 = vmatmul.mubr.f32.gmra.mrb[0].mxu0 %v1229
    %v1297 = vpop.f32.mrb[0].mxu0
    %v1298 = vadd.f32 0.0, %v1297
    %v1299 = vpop.f32.mrb[0].mxu0
    %1300 = vdwg.mxu0
    %1301 = vrot.lane.b32.xlu0 %v293, 64
    %v1302 = vpop.permute.xlu0 %1301
    %v1305 = vsel %vm302, %v993, 0
    %1307 = vmatprep.subr.mxu0 0.0
    %1308 = vmatpush1.msra.mxu0 %v1302
    %1309 = vmatprep.subr.mxu0 0.0
    %1310 = vmatpush1.msra.mxu0 0.0
    %1311 = vmatprep.subr.mxu0 0.0
    %1312 = vmatpush1.msra.mxu0 0.0
    %1313 = vmatprep.subr.mxu0 0.0
    %1314 = vmatpush1.msra.mxu0 0.0
    %1315 = vmatprep.subr.mxu0 0.0
    %1316 = vmatpush1.msra.mxu0 0.0
    %1317 = vmatprep.subr.mxu0 0.0
    %1318 = vmatpush1.msra.mxu0 0.0
    %1319 = vmatprep.subr.mxu0 0.0
    %1320 = vmatpush1.msra.mxu0 0.0
    %1321 = vmatprep.subr.mxu0 0.0
    %1322 = vmatpush1.msra.mxu0 0.0
    %1323 = vmatprep.subr.mxu0 0.0
    %1324 = vmatpush1.msra.mxu0 0.0
    %1325 = vmatprep.subr.mxu0 0.0
    %1326 = vmatpush1.msra.mxu0 0.0
    %1327 = vmatprep.subr.mxu0 0.0
    %1328 = vmatpush1.msra.mxu0 0.0
    %1329 = vmatprep.subr.mxu0 0.0
    %1330 = vmatpush1.msra.mxu0 0.0
    %1331 = vmatprep.subr.mxu0 0.0
    %1332 = vmatpush1.msra.mxu0 0.0
    %1333 = vmatprep.subr.mxu0 0.0
    %1334 = vmatpush1.msra.mxu0 0.0
    %1335 = vmatprep.subr.mxu0 0.0
    %1336 = vmatpush1.msra.mxu0 0.0
    %1337 = vmatprep.subr.mxu0 0.0
    %1338 = vmatpush1.msra.mxu0 0.0
    %1339 = vmatprep.subr.mxu0 0.0
    %1340 = vmatpush1.msra.mxu0 0.0
    %1341 = vmatprep.subr.mxu0 0.0
    %1342 = vmatpush1.msra.mxu0 0.0
    %1343 = vmatprep.subr.mxu0 0.0
    %1344 = vmatpush1.msra.mxu0 0.0
    %1345 = vmatprep.subr.mxu0 0.0
    %1346 = vmatpush1.msra.mxu0 0.0
    %1347 = vmatprep.subr.mxu0 0.0
    %1348 = vmatpush1.msra.mxu0 0.0
    %1349 = vmatprep.subr.mxu0 0.0
    %1350 = vmatpush1.msra.mxu0 0.0
    %1351 = vmatprep.subr.mxu0 0.0
    %1352 = vmatpush1.msra.mxu0 0.0
    %1353 = vmatprep.subr.mxu0 0.0
    %1354 = vmatpush1.msra.mxu0 0.0
    %1355 = vmatprep.subr.mxu0 0.0
    %1356 = vmatpush1.msra.mxu0 0.0
    %1357 = vmatprep.subr.mxu0 0.0
    %1358 = vmatpush1.msra.mxu0 0.0
    %1359 = vmatprep.subr.mxu0 0.0
    %1360 = vmatpush1.msra.mxu0 0.0
    %1361 = vmatprep.subr.mxu0 0.0
    %1362 = vmatpush1.msra.mxu0 0.0
    %1363 = vmatprep.subr.mxu0 0.0
    %1364 = vmatpush1.msra.mxu0 0.0
    %1365 = vmatprep.subr.mxu0 0.0
    %1366 = vmatpush1.msra.mxu0 0.0
    %1367 = vmatprep.subr.mxu0 0.0
    %1368 = vmatpush1.msra.mxu0 0.0
    %1369 = vmatprep.subr.mxu0 0.0
    %1370 = vmatpush1.msra.mxu0 0.0
    %1371 = vmatprep.mubr.f32.mxu0 0.0
    %1372 = vmatmul.mubr.f32.gmra.mrb[0].mxu0 %v1305
    %v1373 = vpop.f32.mrb[0].mxu0
    %v1374 = vadd.f32 0.0, %v1373
    %v1375 = vpop.f32.mrb[0].mxu0
    %1376 = vdwg.mxu0
    %1377 = vrot.lane.b32.xlu0 %v295, 64
    %v1378 = vpop.permute.xlu0 %1377
    %v1381 = vsel %vm302, %v994, 0
    %1383 = vmatprep.subr.mxu0 0.0
    %1384 = vmatpush1.msra.mxu0 %v1378
    %1385 = vmatprep.subr.mxu0 0.0
    %1386 = vmatpush1.msra.mxu0 0.0
    %1387 = vmatprep.subr.mxu0 0.0
    %1388 = vmatpush1.msra.mxu0 0.0
    %1389 = vmatprep.subr.mxu0 0.0
    %1390 = vmatpush1.msra.mxu0 0.0
    %1391 = vmatprep.subr.mxu0 0.0
    %1392 = vmatpush1.msra.mxu0 0.0
    %1393 = vmatprep.subr.mxu0 0.0
    %1394 = vmatpush1.msra.mxu0 0.0
    %1395 = vmatprep.subr.mxu0 0.0
    %1396 = vmatpush1.msra.mxu0 0.0
    %1397 = vmatprep.subr.mxu0 0.0
    %1398 = vmatpush1.msra.mxu0 0.0
    %1399 = vmatprep.subr.mxu0 0.0
    %1400 = vmatpush1.msra.mxu0 0.0
    %1401 = vmatprep.subr.mxu0 0.0
    %1402 = vmatpush1.msra.mxu0 0.0
    %1403 = vmatprep.subr.mxu0 0.0
    %1404 = vmatpush1.msra.mxu0 0.0
    %1405 = vmatprep.subr.mxu0 0.0
    %1406 = vmatpush1.msra.mxu0 0.0
    %1407 = vmatprep.subr.mxu0 0.0
    %1408 = vmatpush1.msra.mxu0 0.0
    %1409 = vmatprep.subr.mxu0 0.0
    %1410 = vmatpush1.msra.mxu0 0.0
    %1411 = vmatprep.subr.mxu0 0.0
    %1412 = vmatpush1.msra.mxu0 0.0
    %1413 = vmatprep.subr.mxu0 0.0
    %1414 = vmatpush1.msra.mxu0 0.0
    %1415 = vmatprep.subr.mxu0 0.0
    %1416 = vmatpush1.msra.mxu0 0.0
    %1417 = vmatprep.subr.mxu0 0.0
    %1418 = vmatpush1.msra.mxu0 0.0
    %1419 = vmatprep.subr.mxu0 0.0
    %1420 = vmatpush1.msra.mxu0 0.0
    %1421 = vmatprep.subr.mxu0 0.0
    %1422 = vmatpush1.msra.mxu0 0.0
    %1423 = vmatprep.subr.mxu0 0.0
    %1424 = vmatpush1.msra.mxu0 0.0
    %1425 = vmatprep.subr.mxu0 0.0
    %1426 = vmatpush1.msra.mxu0 0.0
    %1427 = vmatprep.subr.mxu0 0.0
    %1428 = vmatpush1.msra.mxu0 0.0
    %1429 = vmatprep.subr.mxu0 0.0
    %1430 = vmatpush1.msra.mxu0 0.0
    %1431 = vmatprep.subr.mxu0 0.0
    %1432 = vmatpush1.msra.mxu0 0.0
    %1433 = vmatprep.subr.mxu0 0.0
    %1434 = vmatpush1.msra.mxu0 0.0
    %1435 = vmatprep.subr.mxu0 0.0
    %1436 = vmatpush1.msra.mxu0 0.0
    %1437 = vmatprep.subr.mxu0 0.0
    %1438 = vmatpush1.msra.mxu0 0.0
    %1439 = vmatprep.subr.mxu0 0.0
    %1440 = vmatpush1.msra.mxu0 0.0
    %1441 = vmatprep.subr.mxu0 0.0
    %1442 = vmatpush1.msra.mxu0 0.0
    %1443 = vmatprep.subr.mxu0 0.0
    %1444 = vmatpush1.msra.mxu0 0.0
    %1445 = vmatprep.subr.mxu0 0.0
    %1446 = vmatpush1.msra.mxu0 0.0
    %1447 = vmatprep.mubr.f32.mxu0 0.0
    %1448 = vmatmul.mubr.f32.gmra.mrb[0].mxu0 %v1381
    %v1449 = vpop.f32.mrb[0].mxu0
    %v1450 = vadd.f32 0.0, %v1449
    %v1451 = vpop.f32.mrb[0].mxu0
    %1452 = vdwg.mxu0
    %1453 = vrot.lane.b32.xlu0 %v297, 64
    %v1454 = vpop.permute.xlu0 %1453
    %v1457 = vsel %vm302, %v995, 0
    %1459 = vmatprep.subr.mxu0 0.0
    %1460 = vmatpush1.msra.mxu0 %v1454
    %1461 = vmatprep.subr.mxu0 0.0
    %1462 = vmatpush1.msra.mxu0 0.0
    %1463 = vmatprep.subr.mxu0 0.0
    %1464 = vmatpush1.msra.mxu0 0.0
    %1465 = vmatprep.subr.mxu0 0.0
    %1466 = vmatpush1.msra.mxu0 0.0
    %1467 = vmatprep.subr.mxu0 0.0
    %1468 = vmatpush1.msra.mxu0 0.0
    %1469 = vmatprep.subr.mxu0 0.0
    %1470 = vmatpush1.msra.mxu0 0.0
    %1471 = vmatprep.subr.mxu0 0.0
    %1472 = vmatpush1.msra.mxu0 0.0
    %1473 = vmatprep.subr.mxu0 0.0
    %1474 = vmatpush1.msra.mxu0 0.0
    %1475 = vmatprep.subr.mxu0 0.0
    %1476 = vmatpush1.msra.mxu0 0.0
    %1477 = vmatprep.subr.mxu0 0.0
    %1478 = vmatpush1.msra.mxu0 0.0
    %1479 = vmatprep.subr.mxu0 0.0
    %1480 = vmatpush1.msra.mxu0 0.0
    %1481 = vmatprep.subr.mxu0 0.0
    %1482 = vmatpush1.msra.mxu0 0.0
    %1483 = vmatprep.subr.mxu0 0.0
    %1484 = vmatpush1.msra.mxu0 0.0
    %1485 = vmatprep.subr.mxu0 0.0
    %1486 = vmatpush1.msra.mxu0 0.0
    %1487 = vmatprep.subr.mxu0 0.0
    %1488 = vmatpush1.msra.mxu0 0.0
    %1489 = vmatprep.subr.mxu0 0.0
    %1490 = vmatpush1.msra.mxu0 0.0
    %1491 = vmatprep.subr.mxu0 0.0
    %1492 = vmatpush1.msra.mxu0 0.0
    %1493 = vmatprep.subr.mxu0 0.0
    %1494 = vmatpush1.msra.mxu0 0.0
    %1495 = vmatprep.subr.mxu0 0.0
    %1496 = vmatpush1.msra.mxu0 0.0
    %1497 = vmatprep.subr.mxu0 0.0
    %1498 = vmatpush1.msra.mxu0 0.0
    %1499 = vmatprep.subr.mxu0 0.0
    %1500 = vmatpush1.msra.mxu0 0.0
    %1501 = vmatprep.subr.mxu0 0.0
    %1502 = vmatpush1.msra.mxu0 0.0
    %1503 = vmatprep.subr.mxu0 0.0
    %1504 = vmatpush1.msra.mxu0 0.0
    %1505 = vmatprep.subr.mxu0 0.0
    %1506 = vmatpush1.msra.mxu0 0.0
    %1507 = vmatprep.subr.mxu0 0.0
    %1508 = vmatpush1.msra.mxu0 0.0
    %1509 = vmatprep.subr.mxu0 0.0
    %1510 = vmatpush1.msra.mxu0 0.0
    %1511 = vmatprep.subr.mxu0 0.0
    %1512 = vmatpush1.msra.mxu0 0.0
    %1513 = vmatprep.subr.mxu0 0.0
    %1514 = vmatpush1.msra.mxu0 0.0
    %1515 = vmatprep.subr.mxu0 0.0
    %1516 = vmatpush1.msra.mxu0 0.0
    %1517 = vmatprep.subr.mxu0 0.0
    %1518 = vmatpush1.msra.mxu0 0.0
    %1519 = vmatprep.subr.mxu0 0.0
    %1520 = vmatpush1.msra.mxu0 0.0
    %1521 = vmatprep.subr.mxu0 0.0
    %1522 = vmatpush1.msra.mxu0 0.0
    %1523 = vmatprep.mubr.f32.mxu0 0.0
    %1524 = vmatmul.mubr.f32.gmra.mrb[0].mxu0 %v1457
    %v1525 = vpop.f32.mrb[0].mxu0
    %v1526 = vadd.f32 0.0, %v1525
    %v1527 = vpop.f32.mrb[0].mxu0
    %1528 = vdwg.mxu0
    %1529 = vrot.lane.b32.xlu0 %v299, 64
    %v1530 = vpop.permute.xlu0 %1529
    %v1533 = vsel %vm302, %v996, 0
    %1535 = vmatprep.subr.mxu0 0.0
    %1536 = vmatpush1.msra.mxu0 %v1530
    %1537 = vmatprep.subr.mxu0 0.0
    %1538 = vmatpush1.msra.mxu0 0.0
    %1539 = vmatprep.subr.mxu0 0.0
    %1540 = vmatpush1.msra.mxu0 0.0
    %1541 = vmatprep.subr.mxu0 0.0
    %1542 = vmatpush1.msra.mxu0 0.0
    %1543 = vmatprep.subr.mxu0 0.0
    %1544 = vmatpush1.msra.mxu0 0.0
    %1545 = vmatprep.subr.mxu0 0.0
    %1546 = vmatpush1.msra.mxu0 0.0
    %1547 = vmatprep.subr.mxu0 0.0
    %1548 = vmatpush1.msra.mxu0 0.0
    %1549 = vmatprep.subr.mxu0 0.0
    %1550 = vmatpush1.msra.mxu0 0.0
    %1551 = vmatprep.subr.mxu0 0.0
    %1552 = vmatpush1.msra.mxu0 0.0
    %1553 = vmatprep.subr.mxu0 0.0
    %1554 = vmatpush1.msra.mxu0 0.0
    %1555 = vmatprep.subr.mxu0 0.0
    %1556 = vmatpush1.msra.mxu0 0.0
    %1557 = vmatprep.subr.mxu0 0.0
    %1558 = vmatpush1.msra.mxu0 0.0
    %1559 = vmatprep.subr.mxu0 0.0
    %1560 = vmatpush1.msra.mxu0 0.0
    %1561 = vmatprep.subr.mxu0 0.0
    %1562 = vmatpush1.msra.mxu0 0.0
    %1563 = vmatprep.subr.mxu0 0.0
    %1564 = vmatpush1.msra.mxu0 0.0
    %1565 = vmatprep.subr.mxu0 0.0
    %1566 = vmatpush1.msra.mxu0 0.0
    %1567 = vmatprep.subr.mxu0 0.0
    %1568 = vmatpush1.msra.mxu0 0.0
    %1569 = vmatprep.subr.mxu0 0.0
    %1570 = vmatpush1.msra.mxu0 0.0
    %1571 = vmatprep.subr.mxu0 0.0
    %1572 = vmatpush1.msra.mxu0 0.0
    %1573 = vmatprep.subr.mxu0 0.0
    %1574 = vmatpush1.msra.mxu0 0.0
    %1575 = vmatprep.subr.mxu0 0.0
    %1576 = vmatpush1.msra.mxu0 0.0
    %1577 = vmatprep.subr.mxu0 0.0
    %1578 = vmatpush1.msra.mxu0 0.0
    %1579 = vmatprep.subr.mxu0 0.0
    %1580 = vmatpush1.msra.mxu0 0.0
    %1581 = vmatprep.subr.mxu0 0.0
    %1582 = vmatpush1.msra.mxu0 0.0
    %1583 = vmatprep.subr.mxu0 0.0
    %1584 = vmatpush1.msra.mxu0 0.0
    %1585 = vmatprep.subr.mxu0 0.0
    %1586 = vmatpush1.msra.mxu0 0.0
    %1587 = vmatprep.subr.mxu0 0.0
    %1588 = vmatpush1.msra.mxu0 0.0
    %1589 = vmatprep.subr.mxu0 0.0
    %1590 = vmatpush1.msra.mxu0 0.0
    %1591 = vmatprep.subr.mxu0 0.0
    %1592 = vmatpush1.msra.mxu0 0.0
    %1593 = vmatprep.subr.mxu0 0.0
    %1594 = vmatpush1.msra.mxu0 0.0
    %1595 = vmatprep.subr.mxu0 0.0
    %1596 = vmatpush1.msra.mxu0 0.0
    %1597 = vmatprep.subr.mxu0 0.0
    %1598 = vmatpush1.msra.mxu0 0.0
    %1599 = vmatprep.mubr.f32.mxu0 0.0
    %1600 = vmatmul.mubr.f32.gmra.mrb[0].mxu0 %v1533
    %v1601 = vpop.f32.mrb[0].mxu0
    %v1602 = vadd.f32 0.0, %v1601
    %v1603 = vpop.f32.mrb[0].mxu0
    %1604 = vdwg.mxu0
    %1607 = vrot.lane.b32.xlu0 %v1222, 8
    %v1608 = vpop.permute.xlu0 %1607
    %1609 = vrot.lane.b32.xlu0 %v1298, 8
    %v1610 = vpop.permute.xlu0 %1609
    %1615 = vrot.lane.b32.xlu0 %v1374, 16
    %v1616 = vpop.permute.xlu0 %1615
    %1617 = vrot.lane.b32.xlu0 %v1450, 16
    %v1618 = vpop.permute.xlu0 %1617
    %1623 = vrot.lane.b32.xlu0 %v1526, 24
    %v1624 = vpop.permute.xlu0 %1623
    %1625 = vrot.lane.b32.xlu0 %v1602, 24
    %v1626 = vpop.permute.xlu0 %1625
    %v1629 = vsel %vm302, %v1070, %v1608
    %v1630 = vsel %vm302, %v1146, %v1610
    %v1631 = vsel %vm51, %v1629, %v1616
    %v1632 = vsel %vm51, %v1630, %v1618
    %vm1633 = vcmask 195584
    %v1634 = vsel %vm1633, %v1631, %v1624
    %v1635 = vsel %vm1633, %v1632, %v1626
    %v1636 = vld [vmem:[#allocation5 + $0x90] sm:$0xff]
    %v1637 = vld [vmem:[#allocation5 + $0x98] sm:$0xff]
    %v1638 = vld [vmem:[#allocation5 + $0xa0] sm:$0xff]
    %v1639 = vld [vmem:[#allocation5 + $0xa8] sm:$0xff]
    %v1640 = vld [vmem:[#allocation5 + $0xb0] sm:$0x1]
    %v1641 = vlaneseq
    %v1642 = vshrl.u32 %v1641, 7
    %v1643 = vsub.s32 0, %v1642
    %v1644 = vrot.slane %v1640, %v1643
    %v1646 = vsel %vm168, %v1634, 0
    %v1649 = vsel %vm168, %v1635, 0
    %v1652 = vsel %vm168, %v1636, 0
    %v1655 = vsel %vm168, %v1637, 0
    %v1658 = vsel %vm168, %v1638, 0
    %v1661 = vsel %vm168, %v1639, 0
    %1663 = vmatprep.subr.mxu0 0.0
    %1664 = vmatpush1.xpose.msra.mxu0 %v1652
    %1665 = vmatprep.subr.mxu0 0.0
    %1666 = vmatpush1.xpose.msra.mxu0 %v1655
    %1667 = vmatprep.subr.mxu0 0.0
    %1668 = vmatpush1.xpose.msra.mxu0 %v1658
    %1669 = vmatprep.subr.mxu0 0.0
    %1670 = vmatpush1.xpose.msra.mxu0 %v1661
    %1671 = vmatprep.subr.mxu0 0.0
    %1672 = vmatpush1.xpose.msra.mxu0 0.0
    %1673 = vmatprep.subr.mxu0 0.0
    %1674 = vmatpush1.xpose.msra.mxu0 0.0
    %1675 = vmatprep.subr.mxu0 0.0
    %1676 = vmatpush1.xpose.msra.mxu0 0.0
    %1677 = vmatprep.subr.mxu0 0.0
    %1678 = vmatpush1.xpose.msra.mxu0 0.0
    %1679 = vmatprep.subr.mxu0 0.0
    %1680 = vmatpush1.xpose.msra.mxu0 0.0
    %1681 = vmatprep.subr.mxu0 0.0
    %1682 = vmatpush1.xpose.msra.mxu0 0.0
    %1683 = vmatprep.subr.mxu0 0.0
    %1684 = vmatpush1.xpose.msra.mxu0 0.0
    %1685 = vmatprep.subr.mxu0 0.0
    %1686 = vmatpush1.xpose.msra.mxu0 0.0
    %1687 = vmatprep.subr.mxu0 0.0
    %1688 = vmatpush1.xpose.msra.mxu0 0.0
    %1689 = vmatprep.subr.mxu0 0.0
    %1690 = vmatpush1.xpose.msra.mxu0 0.0
    %1691 = vmatprep.subr.mxu0 0.0
    %1692 = vmatpush1.xpose.msra.mxu0 0.0
    %1693 = vmatprep.subr.mxu0 0.0
    %1694 = vmatpush1.xpose.msra.mxu0 0.0
    %1695 = vmatprep.subr.mxu0 0.0
    %1696 = vmatpush1.xpose.msra.mxu0 0.0
    %1697 = vmatprep.subr.mxu0 0.0
    %1698 = vmatpush1.xpose.msra.mxu0 0.0
    %1699 = vmatprep.subr.mxu0 0.0
    %1700 = vmatpush1.xpose.msra.mxu0 0.0
    %1701 = vmatprep.subr.mxu0 0.0
    %1702 = vmatpush1.xpose.msra.mxu0 0.0
    %1703 = vmatprep.subr.mxu0 0.0
    %1704 = vmatpush1.xpose.msra.mxu0 0.0
    %1705 = vmatprep.subr.mxu0 0.0
    %1706 = vmatpush1.xpose.msra.mxu0 0.0
    %1707 = vmatprep.subr.mxu0 0.0
    %1708 = vmatpush1.xpose.msra.mxu0 0.0
    %1709 = vmatprep.subr.mxu0 0.0
    %1710 = vmatpush1.xpose.msra.mxu0 0.0
    %1711 = vmatprep.subr.mxu0 0.0
    %1712 = vmatpush1.xpose.msra.mxu0 0.0
    %1713 = vmatprep.subr.mxu0 0.0
    %1714 = vmatpush1.xpose.msra.mxu0 0.0
    %1715 = vmatprep.subr.mxu0 0.0
    %1716 = vmatpush1.xpose.msra.mxu0 0.0
    %1717 = vmatprep.subr.mxu0 0.0
    %1718 = vmatpush1.xpose.msra.mxu0 0.0
    %1719 = vmatprep.subr.mxu0 0.0
    %1720 = vmatpush1.xpose.msra.mxu0 0.0
    %1721 = vmatprep.subr.mxu0 0.0
    %1722 = vmatpush1.xpose.msra.mxu0 0.0
    %1723 = vmatprep.subr.mxu0 0.0
    %1724 = vmatpush1.xpose.msra.mxu0 0.0
    %1725 = vmatprep.subr.mxu0 0.0
    %1726 = vmatpush1.xpose.msra.mxu0 0.0
    %1727 = vmatprep.mubr.f32.mxu0 0.0
    %1728 = vmatmul.mubr.f32.gmra.mrb[0].mxu0 %v1646
    %v1729 = vpop.f32.mrb[0].mxu0
    %v1730 = vadd.f32 %v1644, %v1729
    %v1731 = vpop.f32.mrb[0].mxu0
    %1732 = vmatprep.mubr.f32.mxu0 0.0
    %1733 = vmatmul.mubr.f32.gmra.mrb[0].mxu0 %v1649
    %v1734 = vpop.f32.mrb[0].mxu0
    %v1735 = vadd.f32 %v1644, %v1734
    %v1736 = vpop.f32.mrb[0].mxu0
    %1737 = vdwg.mxu0
    %v1738 = vadd.f32 %v137, %v1730
    %v1739 = vadd.f32 %v142, %v1735
    %v1740 = vld [vmem:[#allocation5 + $0xb8] sm:$0x1]
    %v1741 = vld [vmem:[#allocation5 + $0xc0] sm:$0x1]
    %v1742 = vsel %vm168, %v1738, 0.0
    %1743 = vadd.xlane.f32.xlu0 %v1742
    %v1744 = vpop.xlane.xlu0 %1743
    %v1745 = vsel %vm168, %v1739, 0.0
    %1746 = vadd.xlane.f32.xlu0 %v1745
    %v1747 = vpop.xlane.xlu0 %1746
    %v1748 = vrcp.pop 32.0
    %v1749 = vmul.f32 %v1744, %v1748
    %v1750 = vmul.f32 %v1747, %v1748
    %v1751 = vsub.f32 %v1738, %v1749
    %v1752 = vsub.f32 %v1739, %v1750
    %v1753 = vmul.f32 %v1751, %v1751
    %v1754 = vmul.f32 %v1752, %v1752
    %v1755 = vsel %vm168, %v1753, 0.0
    %1756 = vadd.xlane.f32.xlu0 %v1755
    %v1757 = vpop.xlane.xlu0 %1756
    %v1758 = vsel %vm168, %v1754, 0.0
    %1759 = vadd.xlane.f32.xlu0 %v1758
    %v1760 = vpop.xlane.xlu0 %1759
    %v1761 = vmul.f32 %v1757, %v1748
    %v1762 = vmul.f32 %v1760, %v1748
    %v1763 = vadd.f32 %v1761, 1e-05
    %v1764 = vadd.f32 %v1762, 1e-05
    %v1765 = vrsqrt.pop %v1763
    %v1766 = vrsqrt.pop %v1764
    %v1767 = vmul.f32 %v1751, %v1765
    %v1768 = vmul.f32 %v1752, %v1766
    %v1769 = vlaneseq
    %v1770 = vshrl.u32 %v1769, 7
    %v1771 = vsub.s32 0, %v1770
    %v1772 = vrot.slane %v1740, %v1771
    %v1773 = vmul.f32 %v1767, %v1772
    %v1774 = vmul.f32 %v1768, %v1772
    %v1775 = vlaneseq
    %v1776 = vshrl.u32 %v1775, 7
    %v1777 = vsub.s32 0, %v1776
    %v1778 = vrot.slane %v1741, %v1777
    %v1779 = vadd.f32 %v1773, %v1778
    %v1780 = vadd.f32 %v1774, %v1778
    %v1781 = vld [vmem:[#allocation5 + $0xc8] sm:$0xff]
    %v1782 = vld [vmem:[#allocation5 + $0xd0] sm:$0xff]
    %v1783 = vld [vmem:[#allocation5 + $0xd8] sm:$0xff]
    %v1784 = vld [vmem:[#allocation5 + $0xe0] sm:$0xff]
    %v1785 = vld [vmem:[#allocation5 + $0xe8] sm:$0xff]
    %v1786 = vld [vmem:[#allocation5 + $0xf0] sm:$0xff]
    %v1787 = vld [vmem:[#allocation5 + $0xf8] sm:$0xff]
    %v1788 = vld [vmem:[#allocation5 + $0x100] sm:$0xff]
    %v1789 = vld [vmem:[#allocation5 + $0x108] sm:$0xff]
    %v1790 = vld [vmem:[#allocation5 + $0x110] sm:$0xff]
    %v1791 = vld [vmem:[#allocation5 + $0x118] sm:$0xff]
    %v1792 = vld [vmem:[#allocation5 + $0x120] sm:$0xff]
    %v1793 = vld [vmem:[#allocation5 + $0x128] sm:$0xff]
    %v1794 = vld [vmem:[#allocation5 + $0x130] sm:$0xff]
    %v1795 = vld [vmem:[#allocation5 + $0x138] sm:$0xff]
    %v1796 = vld [vmem:[#allocation5 + $0x140] sm:$0xff]
    %v1797 = vld [vmem:[#allocation5 + $0x148] sm:$0x1]
    %v1798 = vlaneseq
    %v1799 = vshrl.u32 %v1798, 7
    %v1800 = vsub.s32 0, %v1799
    %v1801 = vrot.slane %v1797, %v1800
    %v1803 = vsel %vm168, %v1779, 0
    %v1806 = vsel %vm168, %v1780, 0
    %v1809 = vsel %vm168, %v1781, 0
    %v1812 = vsel %vm168, %v1782, 0
    %v1815 = vsel %vm168, %v1783, 0
    %v1818 = vsel %vm168, %v1784, 0
    %v1821 = vsel %vm168, %v1785, 0
    %v1824 = vsel %vm168, %v1786, 0
    %v1827 = vsel %vm168, %v1787, 0
    %v1830 = vsel %vm168, %v1788, 0
    %v1833 = vsel %vm168, %v1789, 0
    %v1836 = vsel %vm168, %v1790, 0
    %v1839 = vsel %vm168, %v1791, 0
    %v1842 = vsel %vm168, %v1792, 0
    %v1845 = vsel %vm168, %v1793, 0
    %v1848 = vsel %vm168, %v1794, 0
    %v1851 = vsel %vm168, %v1795, 0
    %v1854 = vsel %vm168, %v1796, 0
    %1856 = vmatprep.subr.mxu0 0.0
    %1857 = vmatpush1.xpose.msra.mxu0 %v1809
    %1858 = vmatprep.subr.mxu0 0.0
    %1859 = vmatpush1.xpose.msra.mxu0 %v1812
    %1860 = vmatprep.subr.mxu0 0.0
    %1861 = vmatpush1.xpose.msra.mxu0 %v1815
    %1862 = vmatprep.subr.mxu0 0.0
    %1863 = vmatpush1.xpose.msra.mxu0 %v1818
    %1864 = vmatprep.subr.mxu0 0.0
    %1865 = vmatpush1.xpose.msra.mxu0 %v1821
    %1866 = vmatprep.subr.mxu0 0.0
    %1867 = vmatpush1.xpose.msra.mxu0 %v1824
    %1868 = vmatprep.subr.mxu0 0.0
    %1869 = vmatpush1.xpose.msra.mxu0 %v1827
    %1870 = vmatprep.subr.mxu0 0.0
    %1871 = vmatpush1.xpose.msra.mxu0 %v1830
    %1872 = vmatprep.subr.mxu0 0.0
    %1873 = vmatpush1.xpose.msra.mxu0 %v1833
    %1874 = vmatprep.subr.mxu0 0.0
    %1875 = vmatpush1.xpose.msra.mxu0 %v1836
    %1876 = vmatprep.subr.mxu0 0.0
    %1877 = vmatpush1.xpose.msra.mxu0 %v1839
    %1878 = vmatprep.subr.mxu0 0.0
    %1879 = vmatpush1.xpose.msra.mxu0 %v1842
    %1880 = vmatprep.subr.mxu0 0.0
    %1881 = vmatpush1.xpose.msra.mxu0 %v1845
    %1882 = vmatprep.subr.mxu0 0.0
    %1883 = vmatpush1.xpose.msra.mxu0 %v1848
    %1884 = vmatprep.subr.mxu0 0.0
    %1885 = vmatpush1.xpose.msra.mxu0 %v1851
    %1886 = vmatprep.subr.mxu0 0.0
    %1887 = vmatpush1.xpose.msra.mxu0 %v1854
    %1888 = vmatprep.subr.mxu0 0.0
    %1889 = vmatpush1.xpose.msra.mxu0 0.0
    %1890 = vmatprep.subr.mxu0 0.0
    %1891 = vmatpush1.xpose.msra.mxu0 0.0
    %1892 = vmatprep.subr.mxu0 0.0
    %1893 = vmatpush1.xpose.msra.mxu0 0.0
    %1894 = vmatprep.subr.mxu0 0.0
    %1895 = vmatpush1.xpose.msra.mxu0 0.0
    %1896 = vmatprep.subr.mxu0 0.0
    %1897 = vmatpush1.xpose.msra.mxu0 0.0
    %1898 = vmatprep.subr.mxu0 0.0
    %1899 = vmatpush1.xpose.msra.mxu0 0.0
    %1900 = vmatprep.subr.mxu0 0.0
    %1901 = vmatpush1.xpose.msra.mxu0 0.0
    %1902 = vmatprep.subr.mxu0 0.0
    %1903 = vmatpush1.xpose.msra.mxu0 0.0
    %1904 = vmatprep.subr.mxu0 0.0
    %1905 = vmatpush1.xpose.msra.mxu0 0.0
    %1906 = vmatprep.subr.mxu0 0.0
    %1907 = vmatpush1.xpose.msra.mxu0 0.0
    %1908 = vmatprep.subr.mxu0 0.0
    %1909 = vmatpush1.xpose.msra.mxu0 0.0
    %1910 = vmatprep.subr.mxu0 0.0
    %1911 = vmatpush1.xpose.msra.mxu0 0.0
    %1912 = vmatprep.subr.mxu0 0.0
    %1913 = vmatpush1.xpose.msra.mxu0 0.0
    %1914 = vmatprep.subr.mxu0 0.0
    %1915 = vmatpush1.xpose.msra.mxu0 0.0
    %1916 = vmatprep.subr.mxu0 0.0
    %1917 = vmatpush1.xpose.msra.mxu0 0.0
    %1918 = vmatprep.subr.mxu0 0.0
    %1919 = vmatpush1.xpose.msra.mxu0 0.0
    %1920 = vmatprep.mubr.f32.mxu0 0.0
    %1921 = vmatmul.mubr.f32.gmra.mrb[0].mxu0 %v1803
    %v1922 = vpop.f32.mrb[0].mxu0
    %v1923 = vadd.f32 %v1801, %v1922
    %v1924 = vpop.f32.mrb[0].mxu0
    %1925 = vmatprep.mubr.f32.mxu0 0.0
    %1926 = vmatmul.mubr.f32.gmra.mrb[0].mxu0 %v1806
    %v1927 = vpop.f32.mrb[0].mxu0
    %v1928 = vadd.f32 %v1801, %v1927
    %v1929 = vpop.f32.mrb[0].mxu0
    %1930 = vdwg.mxu0
    %v1931 = vmax.f32 %v1923, 0.0
    %v1932 = vmax.f32 %v1928, 0.0
    %v1933 = vld [vmem:[#allocation5 + $0x150] sm:$0xff]
    %v1934 = vld [vmem:[#allocation5 + $0x158] sm:$0xff]
    %v1935 = vld [vmem:[#allocation5 + $0x160] sm:$0xff]
    %v1936 = vld [vmem:[#allocation5 + $0x168] sm:$0xff]
    %v1937 = vld [vmem:[#allocation5 + $0x170] sm:$0x1]
    %v1938 = vlaneseq
    %v1939 = vshrl.u32 %v1938, 7
    %v1940 = vsub.s32 0, %v1939
    %v1941 = vrot.slane %v1937, %v1940
    %1942 = vmatprep.subr.mxu0 0.0
    %1943 = vmatpush1.xpose.msra.mxu0 %v1933
    %1944 = vmatprep.subr.mxu0 0.0
    %1945 = vmatpush1.xpose.msra.mxu0 %v1934
    %1946 = vmatprep.subr.mxu0 0.0
    %1947 = vmatpush1.xpose.msra.mxu0 %v1935
    %1948 = vmatprep.subr.mxu0 0.0
    %1949 = vmatpush1.xpose.msra.mxu0 %v1936
    %1950 = vmatprep.subr.mxu0 0.0
    %1951 = vmatpush1.xpose.msra.mxu0 0.0
    %1952 = vmatprep.subr.mxu0 0.0
    %1953 = vmatpush1.xpose.msra.mxu0 0.0
    %1954 = vmatprep.subr.mxu0 0.0
    %1955 = vmatpush1.xpose.msra.mxu0 0.0
    %1956 = vmatprep.subr.mxu0 0.0
    %1957 = vmatpush1.xpose.msra.mxu0 0.0
    %1958 = vmatprep.subr.mxu0 0.0
    %1959 = vmatpush1.xpose.msra.mxu0 0.0
    %1960 = vmatprep.subr.mxu0 0.0
    %1961 = vmatpush1.xpose.msra.mxu0 0.0
    %1962 = vmatprep.subr.mxu0 0.0
    %1963 = vmatpush1.xpose.msra.mxu0 0.0
    %1964 = vmatprep.subr.mxu0 0.0
    %1965 = vmatpush1.xpose.msra.mxu0 0.0
    %1966 = vmatprep.subr.mxu0 0.0
    %1967 = vmatpush1.xpose.msra.mxu0 0.0
    %1968 = vmatprep.subr.mxu0 0.0
    %1969 = vmatpush1.xpose.msra.mxu0 0.0
    %1970 = vmatprep.subr.mxu0 0.0
    %1971 = vmatpush1.xpose.msra.mxu0 0.0
    %1972 = vmatprep.subr.mxu0 0.0
    %1973 = vmatpush1.xpose.msra.mxu0 0.0
    %1974 = vmatprep.subr.mxu0 0.0
    %1975 = vmatpush1.xpose.msra.mxu0 0.0
    %1976 = vmatprep.subr.mxu0 0.0
    %1977 = vmatpush1.xpose.msra.mxu0 0.0
    %1978 = vmatprep.subr.mxu0 0.0
    %1979 = vmatpush1.xpose.msra.mxu0 0.0
    %1980 = vmatprep.subr.mxu0 0.0
    %1981 = vmatpush1.xpose.msra.mxu0 0.0
    %1982 = vmatprep.subr.mxu0 0.0
    %1983 = vmatpush1.xpose.msra.mxu0 0.0
    %1984 = vmatprep.subr.mxu0 0.0
    %1985 = vmatpush1.xpose.msra.mxu0 0.0
    %1986 = vmatprep.subr.mxu0 0.0
    %1987 = vmatpush1.xpose.msra.mxu0 0.0
    %1988 = vmatprep.subr.mxu0 0.0
    %1989 = vmatpush1.xpose.msra.mxu0 0.0
    %1990 = vmatprep.subr.mxu0 0.0
    %1991 = vmatpush1.xpose.msra.mxu0 0.0
    %1992 = vmatprep.subr.mxu0 0.0
    %1993 = vmatpush1.xpose.msra.mxu0 0.0
    %1994 = vmatprep.subr.mxu0 0.0
    %1995 = vmatpush1.xpose.msra.mxu0 0.0
    %1996 = vmatprep.subr.mxu0 0.0
    %1997 = vmatpush1.xpose.msra.mxu0 0.0
    %1998 = vmatprep.subr.mxu0 0.0
    %1999 = vmatpush1.xpose.msra.mxu0 0.0
    %2000 = vmatprep.subr.mxu0 0.0
    %2001 = vmatpush1.xpose.msra.mxu0 0.0
    %2002 = vmatprep.subr.mxu0 0.0
    %2003 = vmatpush1.xpose.msra.mxu0 0.0
    %2004 = vmatprep.subr.mxu0 0.0
    %2005 = vmatpush1.xpose.msra.mxu0 0.0
    %2006 = vmatprep.mubr.f32.mxu0 0.0
    %2007 = vmatmul.mubr.f32.gmra.mrb[0].mxu0 %v1931
    %v2008 = vpop.f32.mrb[0].mxu0
    %v2009 = vadd.f32 %v1941, %v2008
    %v2010 = vpop.f32.mrb[0].mxu0
    %2011 = vmatprep.mubr.f32.mxu0 0.0
    %2012 = vmatmul.mubr.f32.gmra.mrb[0].mxu0 %v1932
    %v2013 = vpop.f32.mrb[0].mxu0
    %v2014 = vadd.f32 %v1941, %v2013
    %v2015 = vpop.f32.mrb[0].mxu0
    %2016 = vdwg.mxu0
    %v2017 = vadd.f32 %v1779, %v2009
    %v2018 = vadd.f32 %v1780, %v2014
    %v2019 = vld [vmem:[#allocation5 + $0x178] sm:$0x1]
    %v2020 = vld [vmem:[#allocation5 + $0x180] sm:$0x1]
    %v2021 = vsel %vm168, %v2017, 0.0
    %2022 = vadd.xlane.f32.xlu0 %v2021
    %v2023 = vpop.xlane.xlu0 %2022
    %v2024 = vsel %vm168, %v2018, 0.0
    %2025 = vadd.xlane.f32.xlu0 %v2024
    %v2026 = vpop.xlane.xlu0 %2025
    %v2027 = vmul.f32 %v2023, %v1748
    %v2028 = vmul.f32 %v2026, %v1748
    %v2029 = vsub.f32 %v2017, %v2027
    %v2030 = vsub.f32 %v2018, %v2028
    %v2031 = vmul.f32 %v2029, %v2029
    %v2032 = vmul.f32 %v2030, %v2030
    %v2033 = vsel %vm168, %v2031, 0.0
    %2034 = vadd.xlane.f32.xlu0 %v2033
    %v2035 = vpop.xlane.xlu0 %2034
    %v2036 = vsel %vm168, %v2032, 0.0
    %2037 = vadd.xlane.f32.xlu0 %v2036
    %v2038 = vpop.xlane.xlu0 %2037
    %v2039 = vmul.f32 %v2035, %v1748
    %v2040 = vmul.f32 %v2038, %v1748
    %v2041 = vadd.f32 %v2039, 1e-05
    %v2042 = vadd.f32 %v2040, 1e-05
    %v2043 = vrsqrt.pop %v2041
    %v2044 = vrsqrt.pop %v2042
    %v2045 = vmul.f32 %v2029, %v2043
    %v2046 = vmul.f32 %v2030, %v2044
    %v2047 = vlaneseq
    %v2048 = vshrl.u32 %v2047, 7
    %v2049 = vsub.s32 0, %v2048
    %v2050 = vrot.slane %v2019, %v2049
    %v2051 = vmul.f32 %v2045, %v2050
    %v2052 = vmul.f32 %v2046, %v2050
    %v2053 = vlaneseq
    %v2054 = vshrl.u32 %v2053, 7
    %v2055 = vsub.s32 0, %v2054
    %v2056 = vrot.slane %v2020, %v2055
    %v2057 = vadd.f32 %v2051, %v2056
    %v2058 = vadd.f32 %v2052, %v2056
    %v2059 = vld [vmem:[#allocation5 + $0x188] sm:$0xff]
    %v2060 = vld [vmem:[#allocation5 + $0x190] sm:$0xff]
    %v2061 = vld [vmem:[#allocation5 + $0x198] sm:$0xff]
    %v2062 = vld [vmem:[#allocation5 + $0x1a0] sm:$0xff]
    %v2063 = vld [vmem:[#allocation5 + $0x1a8] sm:$0xff]
    %v2064 = vld [vmem:[#allocation5 + $0x1b0] sm:$0xff]
    %v2065 = vld [vmem:[#allocation5 + $0x1b8] sm:$0xff]
    %v2066 = vld [vmem:[#allocation5 + $0x1c0] sm:$0xff]
    %v2067 = vld [vmem:[#allocation5 + $0x1c8] sm:$0xff]
    %v2068 = vld [vmem:[#allocation5 + $0x1d0] sm:$0xff]
    %v2069 = vld [vmem:[#allocation5 + $0x1d8] sm:$0xff]
    %v2070 = vld [vmem:[#allocation5 + $0x1e0] sm:$0xff]
    %v2071 = vld [vmem:[#allocation5 + $0x1e8] sm:$0x1]
    %v2072 = vlaneseq
    %v2073 = vshrl.u32 %v2072, 7
    %v2074 = vsub.s32 0, %v2073
    %v2075 = vrot.slane %v2071, %v2074
    %v2077 = vsel %vm168, %v2057, 0
    %v2080 = vsel %vm168, %v2058, 0
    %v2083 = vsel %vm168, %v2059, 0
    %v2086 = vsel %vm168, %v2060, 0
    %v2089 = vsel %vm168, %v2061, 0
    %v2092 = vsel %vm168, %v2062, 0
    %v2095 = vsel %vm168, %v2063, 0
    %v2098 = vsel %vm168, %v2064, 0
    %v2101 = vsel %vm168, %v2065, 0
    %v2104 = vsel %vm168, %v2066, 0
    %v2107 = vsel %vm168, %v2067, 0
    %v2110 = vsel %vm168, %v2068, 0
    %v2113 = vsel %vm168, %v2069, 0
    %v2116 = vsel %vm168, %v2070, 0
    %2118 = vmatprep.subr.mxu0 0.0
    %2119 = vmatpush1.xpose.msra.mxu0 %v2083
    %2120 = vmatprep.subr.mxu0 0.0
    %2121 = vmatpush1.xpose.msra.mxu0 %v2086
    %2122 = vmatprep.subr.mxu0 0.0
    %2123 = vmatpush1.xpose.msra.mxu0 %v2089
    %2124 = vmatprep.subr.mxu0 0.0
    %2125 = vmatpush1.xpose.msra.mxu0 %v2092
    %2126 = vmatprep.subr.mxu0 0.0
    %2127 = vmatpush1.xpose.msra.mxu0 %v2095
    %2128 = vmatprep.subr.mxu0 0.0
    %2129 = vmatpush1.xpose.msra.mxu0 %v2098
    %2130 = vmatprep.subr.mxu0 0.0
    %2131 = vmatpush1.xpose.msra.mxu0 %v2101
    %2132 = vmatprep.subr.mxu0 0.0
    %2133 = vmatpush1.xpose.msra.mxu0 %v2104
    %2134 = vmatprep.subr.mxu0 0.0
    %2135 = vmatpush1.xpose.msra.mxu0 %v2107
    %2136 = vmatprep.subr.mxu0 0.0
    %2137 = vmatpush1.xpose.msra.mxu0 %v2110
    %2138 = vmatprep.subr.mxu0 0.0
    %2139 = vmatpush1.xpose.msra.mxu0 %v2113
    %2140 = vmatprep.subr.mxu0 0.0
    %2141 = vmatpush1.xpose.msra.mxu0 %v2116
    %2142 = vmatprep.subr.mxu0 0.0
    %2143 = vmatpush1.xpose.msra.mxu0 0.0
    %2144 = vmatprep.subr.mxu0 0.0
    %2145 = vmatpush1.xpose.msra.mxu0 0.0
    %2146 = vmatprep.subr.mxu0 0.0
    %2147 = vmatpush1.xpose.msra.mxu0 0.0
    %2148 = vmatprep.subr.mxu0 0.0
    %2149 = vmatpush1.xpose.msra.mxu0 0.0
    %2150 = vmatprep.subr.mxu0 0.0
    %2151 = vmatpush1.xpose.msra.mxu0 0.0
    %2152 = vmatprep.subr.mxu0 0.0
    %2153 = vmatpush1.xpose.msra.mxu0 0.0
    %2154 = vmatprep.subr.mxu0 0.0
    %2155 = vmatpush1.xpose.msra.mxu0 0.0
    %2156 = vmatprep.subr.mxu0 0.0
    %2157 = vmatpush1.xpose.msra.mxu0 0.0
    %2158 = vmatprep.subr.mxu0 0.0
    %2159 = vmatpush1.xpose.msra.mxu0 0.0
    %2160 = vmatprep.subr.mxu0 0.0
    %2161 = vmatpush1.xpose.msra.mxu0 0.0
    %2162 = vmatprep.subr.mxu0 0.0
    %2163 = vmatpush1.xpose.msra.mxu0 0.0
    %2164 = vmatprep.subr.mxu0 0.0
    %2165 = vmatpush1.xpose.msra.mxu0 0.0
    %2166 = vmatprep.subr.mxu0 0.0
    %2167 = vmatpush1.xpose.msra.mxu0 0.0
    %2168 = vmatprep.subr.mxu0 0.0
    %2169 = vmatpush1.xpose.msra.mxu0 0.0
    %2170 = vmatprep.subr.mxu0 0.0
    %2171 = vmatpush1.xpose.msra.mxu0 0.0
    %2172 = vmatprep.subr.mxu0 0.0
    %2173 = vmatpush1.xpose.msra.mxu0 0.0
    %2174 = vmatprep.subr.mxu0 0.0
    %2175 = vmatpush1.xpose.msra.mxu0 0.0
    %2176 = vmatprep.subr.mxu0 0.0
    %2177 = vmatpush1.xpose.msra.mxu0 0.0
    %2178 = vmatprep.subr.mxu0 0.0
    %2179 = vmatpush1.xpose.msra.mxu0 0.0
    %2180 = vmatprep.subr.mxu0 0.0
    %2181 = vmatpush1.xpose.msra.mxu0 0.0
    %2182 = vmatprep.mubr.f32.mxu0 0.0
    %2183 = vmatmul.mubr.f32.gmra.mrb[0].mxu0 %v2077
    %v2184 = vpop.f32.mrb[0].mxu0
    %v2185 = vadd.f32 %v2075, %v2184
    %v2186 = vpop.f32.mrb[0].mxu0
    %2187 = vmatprep.mubr.f32.mxu0 0.0
    %2188 = vmatmul.mubr.f32.gmra.mrb[0].mxu0 %v2080
    %v2189 = vpop.f32.mrb[0].mxu0
    %v2190 = vadd.f32 %v2075, %v2189
    %v2191 = vpop.f32.mrb[0].mxu0
    %2192 = vdwg.mxu0
    %2195 = vrot.lane.b32.xlu0 %v2185, 120
    %v2196 = vpop.permute.xlu0 %2195
    %2197 = vrot.lane.b32.xlu0 %v2190, 120
    %v2198 = vpop.permute.xlu0 %2197
    %2199 = vrot.lane.b32.xlu0 %v2185, 112
    %v2200 = vpop.permute.xlu0 %2199
    %2201 = vrot.lane.b32.xlu0 %v2190, 112
    %v2202 = vpop.permute.xlu0 %2201
    %2203 = vrot.lane.b32.xlu0 %v2185, 104
    %v2204 = vpop.permute.xlu0 %2203
    %2205 = vrot.lane.b32.xlu0 %v2190, 104
    %v2206 = vpop.permute.xlu0 %2205
    %2207 = vrot.lane.b32.xlu0 %v2185, 96
    %v2208 = vpop.permute.xlu0 %2207
    %v2209 = vsel %vm302, %v2185, 0
    %v2211 = vsel %vm302, %v2208, 0
    %2213 = vmatprep.subr.mxu0 0.0
    %2214 = vmatpush1.xpose.msra.mxu0 %v2211
    %2215 = vmatprep.subr.mxu0 0.0
    %2216 = vmatpush1.xpose.msra.mxu0 0.0
    %2217 = vmatprep.subr.mxu0 0.0
    %2218 = vmatpush1.xpose.msra.mxu0 0.0
    %2219 = vmatprep.subr.mxu0 0.0
    %2220 = vmatpush1.xpose.msra.mxu0 0.0
    %2221 = vmatprep.subr.mxu0 0.0
    %2222 = vmatpush1.xpose.msra.mxu0 0.0
    %2223 = vmatprep.subr.mxu0 0.0
    %2224 = vmatpush1.xpose.msra.mxu0 0.0
    %2225 = vmatprep.subr.mxu0 0.0
    %2226 = vmatpush1.xpose.msra.mxu0 0.0
    %2227 = vmatprep.subr.mxu0 0.0
    %2228 = vmatpush1.xpose.msra.mxu0 0.0
    %2229 = vmatprep.subr.mxu0 0.0
    %2230 = vmatpush1.xpose.msra.mxu0 0.0
    %2231 = vmatprep.subr.mxu0 0.0
    %2232 = vmatpush1.xpose.msra.mxu0 0.0
    %2233 = vmatprep.subr.mxu0 0.0
    %2234 = vmatpush1.xpose.msra.mxu0 0.0
    %2235 = vmatprep.subr.mxu0 0.0
    %2236 = vmatpush1.xpose.msra.mxu0 0.0
    %2237 = vmatprep.subr.mxu0 0.0
    %2238 = vmatpush1.xpose.msra.mxu0 0.0
    %2239 = vmatprep.subr.mxu0 0.0
    %2240 = vmatpush1.xpose.msra.mxu0 0.0
    %2241 = vmatprep.subr.mxu0 0.0
    %2242 = vmatpush1.xpose.msra.mxu0 0.0
    %2243 = vmatprep.subr.mxu0 0.0
    %2244 = vmatpush1.xpose.msra.mxu0 0.0
    %2245 = vmatprep.subr.mxu0 0.0
    %2246 = vmatpush1.xpose.msra.mxu0 0.0
    %2247 = vmatprep.subr.mxu0 0.0
    %2248 = vmatpush1.xpose.msra.mxu0 0.0
    %2249 = vmatprep.subr.mxu0 0.0
    %2250 = vmatpush1.xpose.msra.mxu0 0.0
    %2251 = vmatprep.subr.mxu0 0.0
    %2252 = vmatpush1.xpose.msra.mxu0 0.0
    %2253 = vmatprep.subr.mxu0 0.0
    %2254 = vmatpush1.xpose.msra.mxu0 0.0
    %2255 = vmatprep.subr.mxu0 0.0
    %2256 = vmatpush1.xpose.msra.mxu0 0.0
    %2257 = vmatprep.subr.mxu0 0.0
    %2258 = vmatpush1.xpose.msra.mxu0 0.0
    %2259 = vmatprep.subr.mxu0 0.0
    %2260 = vmatpush1.xpose.msra.mxu0 0.0
    %2261 = vmatprep.subr.mxu0 0.0
    %2262 = vmatpush1.xpose.msra.mxu0 0.0
    %2263 = vmatprep.subr.mxu0 0.0
    %2264 = vmatpush1.xpose.msra.mxu0 0.0
    %2265 = vmatprep.subr.mxu0 0.0
    %2266 = vmatpush1.xpose.msra.mxu0 0.0
    %2267 = vmatprep.subr.mxu0 0.0
    %2268 = vmatpush1.xpose.msra.mxu0 0.0
    %2269 = vmatprep.subr.mxu0 0.0
    %2270 = vmatpush1.xpose.msra.mxu0 0.0
    %2271 = vmatprep.subr.mxu0 0.0
    %2272 = vmatpush1.xpose.msra.mxu0 0.0
    %2273 = vmatprep.subr.mxu0 0.0
    %2274 = vmatpush1.xpose.msra.mxu0 0.0
    %2275 = vmatprep.subr.mxu0 0.0
    %2276 = vmatpush1.xpose.msra.mxu0 0.0
    %2277 = vmatprep.mubr.f32.mxu0 0.0
    %2278 = vmatmul.mubr.f32.gmra.mrb[0].mxu0 %v2209
    %v2279 = vpop.f32.mrb[0].mxu0
    %v2280 = vadd.f32 %v150, %v2279
    %v2281 = vpop.f32.mrb[0].mxu0
    %2282 = vdwg.mxu0
    %2283 = vrot.lane.b32.xlu0 %v2190, 96
    %v2284 = vpop.permute.xlu0 %2283
    %v2285 = vsel %vm302, %v2190, 0
    %v2287 = vsel %vm302, %v2284, 0
    %2289 = vmatprep.subr.mxu0 0.0
    %2290 = vmatpush1.xpose.msra.mxu0 %v2287
    %2291 = vmatprep.subr.mxu0 0.0
    %2292 = vmatpush1.xpose.msra.mxu0 0.0
    %2293 = vmatprep.subr.mxu0 0.0
    %2294 = vmatpush1.xpose.msra.mxu0 0.0
    %2295 = vmatprep.subr.mxu0 0.0
    %2296 = vmatpush1.xpose.msra.mxu0 0.0
    %2297 = vmatprep.subr.mxu0 0.0
    %2298 = vmatpush1.xpose.msra.mxu0 0.0
    %2299 = vmatprep.subr.mxu0 0.0
    %2300 = vmatpush1.xpose.msra.mxu0 0.0
    %2301 = vmatprep.subr.mxu0 0.0
    %2302 = vmatpush1.xpose.msra.mxu0 0.0
    %2303 = vmatprep.subr.mxu0 0.0
    %2304 = vmatpush1.xpose.msra.mxu0 0.0
    %2305 = vmatprep.subr.mxu0 0.0
    %2306 = vmatpush1.xpose.msra.mxu0 0.0
    %2307 = vmatprep.subr.mxu0 0.0
    %2308 = vmatpush1.xpose.msra.mxu0 0.0
    %2309 = vmatprep.subr.mxu0 0.0
    %2310 = vmatpush1.xpose.msra.mxu0 0.0
    %2311 = vmatprep.subr.mxu0 0.0
    %2312 = vmatpush1.xpose.msra.mxu0 0.0
    %2313 = vmatprep.subr.mxu0 0.0
    %2314 = vmatpush1.xpose.msra.mxu0 0.0
    %2315 = vmatprep.subr.mxu0 0.0
    %2316 = vmatpush1.xpose.msra.mxu0 0.0
    %2317 = vmatprep.subr.mxu0 0.0
    %2318 = vmatpush1.xpose.msra.mxu0 0.0
    %2319 = vmatprep.subr.mxu0 0.0
    %2320 = vmatpush1.xpose.msra.mxu0 0.0
    %2321 = vmatprep.subr.mxu0 0.0
    %2322 = vmatpush1.xpose.msra.mxu0 0.0
    %2323 = vmatprep.subr.mxu0 0.0
    %2324 = vmatpush1.xpose.msra.mxu0 0.0
    %2325 = vmatprep.subr.mxu0 0.0
    %2326 = vmatpush1.xpose.msra.mxu0 0.0
    %2327 = vmatprep.subr.mxu0 0.0
    %2328 = vmatpush1.xpose.msra.mxu0 0.0
    %2329 = vmatprep.subr.mxu0 0.0
    %2330 = vmatpush1.xpose.msra.mxu0 0.0
    %2331 = vmatprep.subr.mxu0 0.0
    %2332 = vmatpush1.xpose.msra.mxu0 0.0
    %2333 = vmatprep.subr.mxu0 0.0
    %2334 = vmatpush1.xpose.msra.mxu0 0.0
    %2335 = vmatprep.subr.mxu0 0.0
    %2336 = vmatpush1.xpose.msra.mxu0 0.0
    %2337 = vmatprep.subr.mxu0 0.0
    %2338 = vmatpush1.xpose.msra.mxu0 0.0
    %2339 = vmatprep.subr.mxu0 0.0
    %2340 = vmatpush1.xpose.msra.mxu0 0.0
    %2341 = vmatprep.subr.mxu0 0.0
    %2342 = vmatpush1.xpose.msra.mxu0 0.0
    %2343 = vmatprep.subr.mxu0 0.0
    %2344 = vmatpush1.xpose.msra.mxu0 0.0
    %2345 = vmatprep.subr.mxu0 0.0
    %2346 = vmatpush1.xpose.msra.mxu0 0.0
    %2347 = vmatprep.subr.mxu0 0.0
    %2348 = vmatpush1.xpose.msra.mxu0 0.0
    %2349 = vmatprep.subr.mxu0 0.0
    %2350 = vmatpush1.xpose.msra.mxu0 0.0
    %2351 = vmatprep.subr.mxu0 0.0
    %2352 = vmatpush1.xpose.msra.mxu0 0.0
    %2353 = vmatprep.mubr.f32.mxu0 0.0
    %2354 = vmatmul.mubr.f32.gmra.mrb[0].mxu0 %v2285
    %v2355 = vpop.f32.mrb[0].mxu0
    %v2356 = vadd.f32 %v150, %v2355
    %v2357 = vpop.f32.mrb[0].mxu0
    %2358 = vdwg.mxu0
    %2359 = vrot.lane.b32.xlu0 %v2196, 96
    %v2360 = vpop.permute.xlu0 %2359
    %v2361 = vsel %vm302, %v2196, 0
    %v2363 = vsel %vm302, %v2360, 0
    %2365 = vmatprep.subr.mxu0 0.0
    %2366 = vmatpush1.xpose.msra.mxu0 %v2363
    %2367 = vmatprep.subr.mxu0 0.0
    %2368 = vmatpush1.xpose.msra.mxu0 0.0
    %2369 = vmatprep.subr.mxu0 0.0
    %2370 = vmatpush1.xpose.msra.mxu0 0.0
    %2371 = vmatprep.subr.mxu0 0.0
    %2372 = vmatpush1.xpose.msra.mxu0 0.0
    %2373 = vmatprep.subr.mxu0 0.0
    %2374 = vmatpush1.xpose.msra.mxu0 0.0
    %2375 = vmatprep.subr.mxu0 0.0
    %2376 = vmatpush1.xpose.msra.mxu0 0.0
    %2377 = vmatprep.subr.mxu0 0.0
    %2378 = vmatpush1.xpose.msra.mxu0 0.0
    %2379 = vmatprep.subr.mxu0 0.0
    %2380 = vmatpush1.xpose.msra.mxu0 0.0
    %2381 = vmatprep.subr.mxu0 0.0
    %2382 = vmatpush1.xpose.msra.mxu0 0.0
    %2383 = vmatprep.subr.mxu0 0.0
    %2384 = vmatpush1.xpose.msra.mxu0 0.0
    %2385 = vmatprep.subr.mxu0 0.0
    %2386 = vmatpush1.xpose.msra.mxu0 0.0
    %2387 = vmatprep.subr.mxu0 0.0
    %2388 = vmatpush1.xpose.msra.mxu0 0.0
    %2389 = vmatprep.subr.mxu0 0.0
    %2390 = vmatpush1.xpose.msra.mxu0 0.0
    %2391 = vmatprep.subr.mxu0 0.0
    %2392 = vmatpush1.xpose.msra.mxu0 0.0
    %2393 = vmatprep.subr.mxu0 0.0
    %2394 = vmatpush1.xpose.msra.mxu0 0.0
    %2395 = vmatprep.subr.mxu0 0.0
    %2396 = vmatpush1.xpose.msra.mxu0 0.0
    %2397 = vmatprep.subr.mxu0 0.0
    %2398 = vmatpush1.xpose.msra.mxu0 0.0
    %2399 = vmatprep.subr.mxu0 0.0
    %2400 = vmatpush1.xpose.msra.mxu0 0.0
    %2401 = vmatprep.subr.mxu0 0.0
    %2402 = vmatpush1.xpose.msra.mxu0 0.0
    %2403 = vmatprep.subr.mxu0 0.0
    %2404 = vmatpush1.xpose.msra.mxu0 0.0
    %2405 = vmatprep.subr.mxu0 0.0
    %2406 = vmatpush1.xpose.msra.mxu0 0.0
    %2407 = vmatprep.subr.mxu0 0.0
    %2408 = vmatpush1.xpose.msra.mxu0 0.0
    %2409 = vmatprep.subr.mxu0 0.0
    %2410 = vmatpush1.xpose.msra.mxu0 0.0
    %2411 = vmatprep.subr.mxu0 0.0
    %2412 = vmatpush1.xpose.msra.mxu0 0.0
    %2413 = vmatprep.subr.mxu0 0.0
    %2414 = vmatpush1.xpose.msra.mxu0 0.0
    %2415 = vmatprep.subr.mxu0 0.0
    %2416 = vmatpush1.xpose.msra.mxu0 0.0
    %2417 = vmatprep.subr.mxu0 0.0
    %2418 = vmatpush1.xpose.msra.mxu0 0.0
    %2419 = vmatprep.subr.mxu0 0.0
    %2420 = vmatpush1.xpose.msra.mxu0 0.0
    %2421 = vmatprep.subr.mxu0 0.0
    %2422 = vmatpush1.xpose.msra.mxu0 0.0
    %2423 = vmatprep.subr.mxu0 0.0
    %2424 = vmatpush1.xpose.msra.mxu0 0.0
    %2425 = vmatprep.subr.mxu0 0.0
    %2426 = vmatpush1.xpose.msra.mxu0 0.0
    %2427 = vmatprep.subr.mxu0 0.0
    %2428 = vmatpush1.xpose.msra.mxu0 0.0
    %2429 = vmatprep.mubr.f32.mxu0 0.0
    %2430 = vmatmul.mubr.f32.gmra.mrb[0].mxu0 %v2361
    %v2431 = vpop.f32.mrb[0].mxu0
    %v2432 = vadd.f32 %v150, %v2431
    %v2433 = vpop.f32.mrb[0].mxu0
    %2434 = vdwg.mxu0
    %2435 = vrot.lane.b32.xlu0 %v2198, 96
    %v2436 = vpop.permute.xlu0 %2435
    %v2437 = vsel %vm302, %v2198, 0
    %v2439 = vsel %vm302, %v2436, 0
    %2441 = vmatprep.subr.mxu0 0.0
    %2442 = vmatpush1.xpose.msra.mxu0 %v2439
    %2443 = vmatprep.subr.mxu0 0.0
    %2444 = vmatpush1.xpose.msra.mxu0 0.0
    %2445 = vmatprep.subr.mxu0 0.0
    %2446 = vmatpush1.xpose.msra.mxu0 0.0
    %2447 = vmatprep.subr.mxu0 0.0
    %2448 = vmatpush1.xpose.msra.mxu0 0.0
    %2449 = vmatprep.subr.mxu0 0.0
    %2450 = vmatpush1.xpose.msra.mxu0 0.0
    %2451 = vmatprep.subr.mxu0 0.0
    %2452 = vmatpush1.xpose.msra.mxu0 0.0
    %2453 = vmatprep.subr.mxu0 0.0
    %2454 = vmatpush1.xpose.msra.mxu0 0.0
    %2455 = vmatprep.subr.mxu0 0.0
    %2456 = vmatpush1.xpose.msra.mxu0 0.0
    %2457 = vmatprep.subr.mxu0 0.0
    %2458 = vmatpush1.xpose.msra.mxu0 0.0
    %2459 = vmatprep.subr.mxu0 0.0
    %2460 = vmatpush1.xpose.msra.mxu0 0.0
    %2461 = vmatprep.subr.mxu0 0.0
    %2462 = vmatpush1.xpose.msra.mxu0 0.0
    %2463 = vmatprep.subr.mxu0 0.0
    %2464 = vmatpush1.xpose.msra.mxu0 0.0
    %2465 = vmatprep.subr.mxu0 0.0
    %2466 = vmatpush1.xpose.msra.mxu0 0.0
    %2467 = vmatprep.subr.mxu0 0.0
    %2468 = vmatpush1.xpose.msra.mxu0 0.0
    %2469 = vmatprep.subr.mxu0 0.0
    %2470 = vmatpush1.xpose.msra.mxu0 0.0
    %2471 = vmatprep.subr.mxu0 0.0
    %2472 = vmatpush1.xpose.msra.mxu0 0.0
    %2473 = vmatprep.subr.mxu0 0.0
    %2474 = vmatpush1.xpose.msra.mxu0 0.0
    %2475 = vmatprep.subr.mxu0 0.0
    %2476 = vmatpush1.xpose.msra.mxu0 0.0
    %2477 = vmatprep.subr.mxu0 0.0
    %2478 = vmatpush1.xpose.msra.mxu0 0.0
    %2479 = vmatprep.subr.mxu0 0.0
    %2480 = vmatpush1.xpose.msra.mxu0 0.0
    %2481 = vmatprep.subr.mxu0 0.0
    %2482 = vmatpush1.xpose.msra.mxu0 0.0
    %2483 = vmatprep.subr.mxu0 0.0
    %2484 = vmatpush1.xpose.msra.mxu0 0.0
    %2485 = vmatprep.subr.mxu0 0.0
    %2486 = vmatpush1.xpose.msra.mxu0 0.0
    %2487 = vmatprep.subr.mxu0 0.0
    %2488 = vmatpush1.xpose.msra.mxu0 0.0
    %2489 = vmatprep.subr.mxu0 0.0
    %2490 = vmatpush1.xpose.msra.mxu0 0.0
    %2491 = vmatprep.subr.mxu0 0.0
    %2492 = vmatpush1.xpose.msra.mxu0 0.0
    %2493 = vmatprep.subr.mxu0 0.0
    %2494 = vmatpush1.xpose.msra.mxu0 0.0
    %2495 = vmatprep.subr.mxu0 0.0
    %2496 = vmatpush1.xpose.msra.mxu0 0.0
    %2497 = vmatprep.subr.mxu0 0.0
    %2498 = vmatpush1.xpose.msra.mxu0 0.0
    %2499 = vmatprep.subr.mxu0 0.0
    %2500 = vmatpush1.xpose.msra.mxu0 0.0
    %2501 = vmatprep.subr.mxu0 0.0
    %2502 = vmatpush1.xpose.msra.mxu0 0.0
    %2503 = vmatprep.subr.mxu0 0.0
    %2504 = vmatpush1.xpose.msra.mxu0 0.0
    %2505 = vmatprep.mubr.f32.mxu0 0.0
    %2506 = vmatmul.mubr.f32.gmra.mrb[0].mxu0 %v2437
    %v2507 = vpop.f32.mrb[0].mxu0
    %v2508 = vadd.f32 %v150, %v2507
    %v2509 = vpop.f32.mrb[0].mxu0
    %2510 = vdwg.mxu0
    %2511 = vrot.lane.b32.xlu0 %v2200, 96
    %v2512 = vpop.permute.xlu0 %2511
    %v2513 = vsel %vm302, %v2200, 0
    %v2515 = vsel %vm302, %v2512, 0
    %2517 = vmatprep.subr.mxu0 0.0
    %2518 = vmatpush1.xpose.msra.mxu0 %v2515
    %2519 = vmatprep.subr.mxu0 0.0
    %2520 = vmatpush1.xpose.msra.mxu0 0.0
    %2521 = vmatprep.subr.mxu0 0.0
    %2522 = vmatpush1.xpose.msra.mxu0 0.0
    %2523 = vmatprep.subr.mxu0 0.0
    %2524 = vmatpush1.xpose.msra.mxu0 0.0
    %2525 = vmatprep.subr.mxu0 0.0
    %2526 = vmatpush1.xpose.msra.mxu0 0.0
    %2527 = vmatprep.subr.mxu0 0.0
    %2528 = vmatpush1.xpose.msra.mxu0 0.0
    %2529 = vmatprep.subr.mxu0 0.0
    %2530 = vmatpush1.xpose.msra.mxu0 0.0
    %2531 = vmatprep.subr.mxu0 0.0
    %2532 = vmatpush1.xpose.msra.mxu0 0.0
    %2533 = vmatprep.subr.mxu0 0.0
    %2534 = vmatpush1.xpose.msra.mxu0 0.0
    %2535 = vmatprep.subr.mxu0 0.0
    %2536 = vmatpush1.xpose.msra.mxu0 0.0
    %2537 = vmatprep.subr.mxu0 0.0
    %2538 = vmatpush1.xpose.msra.mxu0 0.0
    %2539 = vmatprep.subr.mxu0 0.0
    %2540 = vmatpush1.xpose.msra.mxu0 0.0
    %2541 = vmatprep.subr.mxu0 0.0
    %2542 = vmatpush1.xpose.msra.mxu0 0.0
    %2543 = vmatprep.subr.mxu0 0.0
    %2544 = vmatpush1.xpose.msra.mxu0 0.0
    %2545 = vmatprep.subr.mxu0 0.0
    %2546 = vmatpush1.xpose.msra.mxu0 0.0
    %2547 = vmatprep.subr.mxu0 0.0
    %2548 = vmatpush1.xpose.msra.mxu0 0.0
    %2549 = vmatprep.subr.mxu0 0.0
    %2550 = vmatpush1.xpose.msra.mxu0 0.0
    %2551 = vmatprep.subr.mxu0 0.0
    %2552 = vmatpush1.xpose.msra.mxu0 0.0
    %2553 = vmatprep.subr.mxu0 0.0
    %2554 = vmatpush1.xpose.msra.mxu0 0.0
    %2555 = vmatprep.subr.mxu0 0.0
    %2556 = vmatpush1.xpose.msra.mxu0 0.0
    %2557 = vmatprep.subr.mxu0 0.0
    %2558 = vmatpush1.xpose.msra.mxu0 0.0
    %2559 = vmatprep.subr.mxu0 0.0
    %2560 = vmatpush1.xpose.msra.mxu0 0.0
    %2561 = vmatprep.subr.mxu0 0.0
    %2562 = vmatpush1.xpose.msra.mxu0 0.0
    %2563 = vmatprep.subr.mxu0 0.0
    %2564 = vmatpush1.xpose.msra.mxu0 0.0
    %2565 = vmatprep.subr.mxu0 0.0
    %2566 = vmatpush1.xpose.msra.mxu0 0.0
    %2567 = vmatprep.subr.mxu0 0.0
    %2568 = vmatpush1.xpose.msra.mxu0 0.0
    %2569 = vmatprep.subr.mxu0 0.0
    %2570 = vmatpush1.xpose.msra.mxu0 0.0
    %2571 = vmatprep.subr.mxu0 0.0
    %2572 = vmatpush1.xpose.msra.mxu0 0.0
    %2573 = vmatprep.subr.mxu0 0.0
    %2574 = vmatpush1.xpose.msra.mxu0 0.0
    %2575 = vmatprep.subr.mxu0 0.0
    %2576 = vmatpush1.xpose.msra.mxu0 0.0
    %2577 = vmatprep.subr.mxu0 0.0
    %2578 = vmatpush1.xpose.msra.mxu0 0.0
    %2579 = vmatprep.subr.mxu0 0.0
    %2580 = vmatpush1.xpose.msra.mxu0 0.0
    %2581 = vmatprep.mubr.f32.mxu0 0.0
    %2582 = vmatmul.mubr.f32.gmra.mrb[0].mxu0 %v2513
    %v2583 = vpop.f32.mrb[0].mxu0
    %v2584 = vadd.f32 %v150, %v2583
    %v2585 = vpop.f32.mrb[0].mxu0
    %2586 = vdwg.mxu0
    %2587 = vrot.lane.b32.xlu0 %v2202, 96
    %v2588 = vpop.permute.xlu0 %2587
    %v2589 = vsel %vm302, %v2202, 0
    %v2591 = vsel %vm302, %v2588, 0
    %2593 = vmatprep.subr.mxu0 0.0
    %2594 = vmatpush1.xpose.msra.mxu0 %v2591
    %2595 = vmatprep.subr.mxu0 0.0
    %2596 = vmatpush1.xpose.msra.mxu0 0.0
    %2597 = vmatprep.subr.mxu0 0.0
    %2598 = vmatpush1.xpose.msra.mxu0 0.0
    %2599 = vmatprep.subr.mxu0 0.0
    %2600 = vmatpush1.xpose.msra.mxu0 0.0
    %2601 = vmatprep.subr.mxu0 0.0
    %2602 = vmatpush1.xpose.msra.mxu0 0.0
    %2603 = vmatprep.subr.mxu0 0.0
    %2604 = vmatpush1.xpose.msra.mxu0 0.0
    %2605 = vmatprep.subr.mxu0 0.0
    %2606 = vmatpush1.xpose.msra.mxu0 0.0
    %2607 = vmatprep.subr.mxu0 0.0
    %2608 = vmatpush1.xpose.msra.mxu0 0.0
    %2609 = vmatprep.subr.mxu0 0.0
    %2610 = vmatpush1.xpose.msra.mxu0 0.0
    %2611 = vmatprep.subr.mxu0 0.0
    %2612 = vmatpush1.xpose.msra.mxu0 0.0
    %2613 = vmatprep.subr.mxu0 0.0
    %2614 = vmatpush1.xpose.msra.mxu0 0.0
    %2615 = vmatprep.subr.mxu0 0.0
    %2616 = vmatpush1.xpose.msra.mxu0 0.0
    %2617 = vmatprep.subr.mxu0 0.0
    %2618 = vmatpush1.xpose.msra.mxu0 0.0
    %2619 = vmatprep.subr.mxu0 0.0
    %2620 = vmatpush1.xpose.msra.mxu0 0.0
    %2621 = vmatprep.subr.mxu0 0.0
    %2622 = vmatpush1.xpose.msra.mxu0 0.0
    %2623 = vmatprep.subr.mxu0 0.0
    %2624 = vmatpush1.xpose.msra.mxu0 0.0
    %2625 = vmatprep.subr.mxu0 0.0
    %2626 = vmatpush1.xpose.msra.mxu0 0.0
    %2627 = vmatprep.subr.mxu0 0.0
    %2628 = vmatpush1.xpose.msra.mxu0 0.0
    %2629 = vmatprep.subr.mxu0 0.0
    %2630 = vmatpush1.xpose.msra.mxu0 0.0
    %2631 = vmatprep.subr.mxu0 0.0
    %2632 = vmatpush1.xpose.msra.mxu0 0.0
    %2633 = vmatprep.subr.mxu0 0.0
    %2634 = vmatpush1.xpose.msra.mxu0 0.0
    %2635 = vmatprep.subr.mxu0 0.0
    %2636 = vmatpush1.xpose.msra.mxu0 0.0
    %2637 = vmatprep.subr.mxu0 0.0
    %2638 = vmatpush1.xpose.msra.mxu0 0.0
    %2639 = vmatprep.subr.mxu0 0.0
    %2640 = vmatpush1.xpose.msra.mxu0 0.0
    %2641 = vmatprep.subr.mxu0 0.0
    %2642 = vmatpush1.xpose.msra.mxu0 0.0
    %2643 = vmatprep.subr.mxu0 0.0
    %2644 = vmatpush1.xpose.msra.mxu0 0.0
    %2645 = vmatprep.subr.mxu0 0.0
    %2646 = vmatpush1.xpose.msra.mxu0 0.0
    %2647 = vmatprep.subr.mxu0 0.0
    %2648 = vmatpush1.xpose.msra.mxu0 0.0
    %2649 = vmatprep.subr.mxu0 0.0
    %2650 = vmatpush1.xpose.msra.mxu0 0.0
    %2651 = vmatprep.subr.mxu0 0.0
    %2652 = vmatpush1.xpose.msra.mxu0 0.0
    %2653 = vmatprep.subr.mxu0 0.0
    %2654 = vmatpush1.xpose.msra.mxu0 0.0
    %2655 = vmatprep.subr.mxu0 0.0
    %2656 = vmatpush1.xpose.msra.mxu0 0.0
    %2657 = vmatprep.mubr.f32.mxu0 0.0
    %2658 = vmatmul.mubr.f32.gmra.mrb[0].mxu0 %v2589
    %v2659 = vpop.f32.mrb[0].mxu0
    %v2660 = vadd.f32 %v150, %v2659
    %v2661 = vpop.f32.mrb[0].mxu0
    %2662 = vdwg.mxu0
    %2663 = vrot.lane.b32.xlu0 %v2204, 96
    %v2664 = vpop.permute.xlu0 %2663
    %v2665 = vsel %vm302, %v2204, 0
    %v2667 = vsel %vm302, %v2664, 0
    %2669 = vmatprep.subr.mxu0 0.0
    %2670 = vmatpush1.xpose.msra.mxu0 %v2667
    %2671 = vmatprep.subr.mxu0 0.0
    %2672 = vmatpush1.xpose.msra.mxu0 0.0
    %2673 = vmatprep.subr.mxu0 0.0
    %2674 = vmatpush1.xpose.msra.mxu0 0.0
    %2675 = vmatprep.subr.mxu0 0.0
    %2676 = vmatpush1.xpose.msra.mxu0 0.0
    %2677 = vmatprep.subr.mxu0 0.0
    %2678 = vmatpush1.xpose.msra.mxu0 0.0
    %2679 = vmatprep.subr.mxu0 0.0
    %2680 = vmatpush1.xpose.msra.mxu0 0.0
    %2681 = vmatprep.subr.mxu0 0.0
    %2682 = vmatpush1.xpose.msra.mxu0 0.0
    %2683 = vmatprep.subr.mxu0 0.0
    %2684 = vmatpush1.xpose.msra.mxu0 0.0
    %2685 = vmatprep.subr.mxu0 0.0
    %2686 = vmatpush1.xpose.msra.mxu0 0.0
    %2687 = vmatprep.subr.mxu0 0.0
    %2688 = vmatpush1.xpose.msra.mxu0 0.0
    %2689 = vmatprep.subr.mxu0 0.0
    %2690 = vmatpush1.xpose.msra.mxu0 0.0
    %2691 = vmatprep.subr.mxu0 0.0
    %2692 = vmatpush1.xpose.msra.mxu0 0.0
    %2693 = vmatprep.subr.mxu0 0.0
    %2694 = vmatpush1.xpose.msra.mxu0 0.0
    %2695 = vmatprep.subr.mxu0 0.0
    %2696 = vmatpush1.xpose.msra.mxu0 0.0
    %2697 = vmatprep.subr.mxu0 0.0
    %2698 = vmatpush1.xpose.msra.mxu0 0.0
    %2699 = vmatprep.subr.mxu0 0.0
    %2700 = vmatpush1.xpose.msra.mxu0 0.0
    %2701 = vmatprep.subr.mxu0 0.0
    %2702 = vmatpush1.xpose.msra.mxu0 0.0
    %2703 = vmatprep.subr.mxu0 0.0
    %2704 = vmatpush1.xpose.msra.mxu0 0.0
    %2705 = vmatprep.subr.mxu0 0.0
    %2706 = vmatpush1.xpose.msra.mxu0 0.0
    %2707 = vmatprep.subr.mxu0 0.0
    %2708 = vmatpush1.xpose.msra.mxu0 0.0
    %2709 = vmatprep.subr.mxu0 0.0
    %2710 = vmatpush1.xpose.msra.mxu0 0.0
    %2711 = vmatprep.subr.mxu0 0.0
    %2712 = vmatpush1.xpose.msra.mxu0 0.0
    %2713 = vmatprep.subr.mxu0 0.0
    %2714 = vmatpush1.xpose.msra.mxu0 0.0
    %2715 = vmatprep.subr.mxu0 0.0
    %2716 = vmatpush1.xpose.msra.mxu0 0.0
    %2717 = vmatprep.subr.mxu0 0.0
    %2718 = vmatpush1.xpose.msra.mxu0 0.0
    %2719 = vmatprep.subr.mxu0 0.0
    %2720 = vmatpush1.xpose.msra.mxu0 0.0
    %2721 = vmatprep.subr.mxu0 0.0
    %2722 = vmatpush1.xpose.msra.mxu0 0.0
    %2723 = vmatprep.subr.mxu0 0.0
    %2724 = vmatpush1.xpose.msra.mxu0 0.0
    %2725 = vmatprep.subr.mxu0 0.0
    %2726 = vmatpush1.xpose.msra.mxu0 0.0
    %2727 = vmatprep.subr.mxu0 0.0
    %2728 = vmatpush1.xpose.msra.mxu0 0.0
    %2729 = vmatprep.subr.mxu0 0.0
    %2730 = vmatpush1.xpose.msra.mxu0 0.0
    %2731 = vmatprep.subr.mxu0 0.0
    %2732 = vmatpush1.xpose.msra.mxu0 0.0
    %2733 = vmatprep.mubr.f32.mxu0 0.0
    %2734 = vmatmul.mubr.f32.gmra.mrb[0].mxu0 %v2665
    %v2735 = vpop.f32.mrb[0].mxu0
    %v2736 = vadd.f32 %v150, %v2735
    %v2737 = vpop.f32.mrb[0].mxu0
    %2738 = vdwg.mxu0
    %2739 = vrot.lane.b32.xlu0 %v2206, 96
    %v2740 = vpop.permute.xlu0 %2739
    %v2741 = vsel %vm302, %v2206, 0
    %v2743 = vsel %vm302, %v2740, 0
    %2745 = vmatprep.subr.mxu0 0.0
    %2746 = vmatpush1.xpose.msra.mxu0 %v2743
    %2747 = vmatprep.subr.mxu0 0.0
    %2748 = vmatpush1.xpose.msra.mxu0 0.0
    %2749 = vmatprep.subr.mxu0 0.0
    %2750 = vmatpush1.xpose.msra.mxu0 0.0
    %2751 = vmatprep.subr.mxu0 0.0
    %2752 = vmatpush1.xpose.msra.mxu0 0.0
    %2753 = vmatprep.subr.mxu0 0.0
    %2754 = vmatpush1.xpose.msra.mxu0 0.0
    %2755 = vmatprep.subr.mxu0 0.0
    %2756 = vmatpush1.xpose.msra.mxu0 0.0
    %2757 = vmatprep.subr.mxu0 0.0
    %2758 = vmatpush1.xpose.msra.mxu0 0.0
    %2759 = vmatprep.subr.mxu0 0.0
    %2760 = vmatpush1.xpose.msra.mxu0 0.0
    %2761 = vmatprep.subr.mxu0 0.0
    %2762 = vmatpush1.xpose.msra.mxu0 0.0
    %2763 = vmatprep.subr.mxu0 0.0
    %2764 = vmatpush1.xpose.msra.mxu0 0.0
    %2765 = vmatprep.subr.mxu0 0.0
    %2766 = vmatpush1.xpose.msra.mxu0 0.0
    %2767 = vmatprep.subr.mxu0 0.0
    %2768 = vmatpush1.xpose.msra.mxu0 0.0
    %2769 = vmatprep.subr.mxu0 0.0
    %2770 = vmatpush1.xpose.msra.mxu0 0.0
    %2771 = vmatprep.subr.mxu0 0.0
    %2772 = vmatpush1.xpose.msra.mxu0 0.0
    %2773 = vmatprep.subr.mxu0 0.0
    %2774 = vmatpush1.xpose.msra.mxu0 0.0
    %2775 = vmatprep.subr.mxu0 0.0
    %2776 = vmatpush1.xpose.msra.mxu0 0.0
    %2777 = vmatprep.subr.mxu0 0.0
    %2778 = vmatpush1.xpose.msra.mxu0 0.0
    %2779 = vmatprep.subr.mxu0 0.0
    %2780 = vmatpush1.xpose.msra.mxu0 0.0
    %2781 = vmatprep.subr.mxu0 0.0
    %2782 = vmatpush1.xpose.msra.mxu0 0.0
    %2783 = vmatprep.subr.mxu0 0.0
    %2784 = vmatpush1.xpose.msra.mxu0 0.0
    %2785 = vmatprep.subr.mxu0 0.0
    %2786 = vmatpush1.xpose.msra.mxu0 0.0
    %2787 = vmatprep.subr.mxu0 0.0
    %2788 = vmatpush1.xpose.msra.mxu0 0.0
    %2789 = vmatprep.subr.mxu0 0.0
    %2790 = vmatpush1.xpose.msra.mxu0 0.0
    %2791 = vmatprep.subr.mxu0 0.0
    %2792 = vmatpush1.xpose.msra.mxu0 0.0
    %2793 = vmatprep.subr.mxu0 0.0
    %2794 = vmatpush1.xpose.msra.mxu0 0.0
    %2795 = vmatprep.subr.mxu0 0.0
    %2796 = vmatpush1.xpose.msra.mxu0 0.0
    %2797 = vmatprep.subr.mxu0 0.0
    %2798 = vmatpush1.xpose.msra.mxu0 0.0
    %2799 = vmatprep.subr.mxu0 0.0
    %2800 = vmatpush1.xpose.msra.mxu0 0.0
    %2801 = vmatprep.subr.mxu0 0.0
    %2802 = vmatpush1.xpose.msra.mxu0 0.0
    %2803 = vmatprep.subr.mxu0 0.0
    %2804 = vmatpush1.xpose.msra.mxu0 0.0
    %2805 = vmatprep.subr.mxu0 0.0
    %2806 = vmatpush1.xpose.msra.mxu0 0.0
    %2807 = vmatprep.subr.mxu0 0.0
    %2808 = vmatpush1.xpose.msra.mxu0 0.0
    %2809 = vmatprep.mubr.f32.mxu0 0.0
    %2810 = vmatmul.mubr.f32.gmra.mrb[0].mxu0 %v2741
    %v2811 = vpop.f32.mrb[0].mxu0
    %v2812 = vadd.f32 %v150, %v2811
    %v2813 = vpop.f32.mrb[0].mxu0
    %2814 = vdwg.mxu0
    %v2815 = vsel %vm302, %v2280, -inf
    %2816 = vmax.xlane.f32.xlu0 %v2815
    %v2817 = vpop.xlane.xlu0 %2816
    %v2818 = vsel %vm302, %v2356, -inf
    %2819 = vmax.xlane.f32.xlu0 %v2818
    %v2820 = vpop.xlane.xlu0 %2819
    %v2821 = vsel %vm302, %v2432, -inf
    %2822 = vmax.xlane.f32.xlu0 %v2821
    %v2823 = vpop.xlane.xlu0 %2822
    %v2824 = vsel %vm302, %v2508, -inf
    %2825 = vmax.xlane.f32.xlu0 %v2824
    %v2826 = vpop.xlane.xlu0 %2825
    %v2827 = vsel %vm302, %v2584, -inf
    %2828 = vmax.xlane.f32.xlu0 %v2827
    %v2829 = vpop.xlane.xlu0 %2828
    %v2830 = vsel %vm302, %v2660, -inf
    %2831 = vmax.xlane.f32.xlu0 %v2830
    %v2832 = vpop.xlane.xlu0 %2831
    %v2833 = vsel %vm302, %v2736, -inf
    %2834 = vmax.xlane.f32.xlu0 %v2833
    %v2835 = vpop.xlane.xlu0 %2834
    %v2836 = vsel %vm302, %v2812, -inf
    %2837 = vmax.xlane.f32.xlu0 %v2836
    %v2838 = vpop.xlane.xlu0 %2837
    %v2839 = vsub.f32 %v2280, %v2817
    %v2840 = vsub.f32 %v2356, %v2820
    %v2841 = vsub.f32 %v2432, %v2823
    %v2842 = vsub.f32 %v2508, %v2826
    %v2843 = vsub.f32 %v2584, %v2829
    %v2844 = vsub.f32 %v2660, %v2832
    %v2845 = vsub.f32 %v2736, %v2835
    %v2846 = vsub.f32 %v2812, %v2838
    %v2847 = vmul.f32 %v2839, 1.442695
    %v2848 = vpow.pop %v2847
    %v2849 = vmul.f32 %v2840, 1.442695
    %v2850 = vpow.pop %v2849
    %v2851 = vmul.f32 %v2841, 1.442695
    %v2852 = vpow.pop %v2851
    %v2853 = vmul.f32 %v2842, 1.442695
    %v2854 = vpow.pop %v2853
    %v2855 = vmul.f32 %v2843, 1.442695
    %v2856 = vpow.pop %v2855
    %v2857 = vmul.f32 %v2844, 1.442695
    %v2858 = vpow.pop %v2857
    %v2859 = vmul.f32 %v2845, 1.442695
    %v2860 = vpow.pop %v2859
    %v2861 = vmul.f32 %v2846, 1.442695
    %v2862 = vpow.pop %v2861
    %v2863 = vsel %vm302, %v2848, 0.0
    %2864 = vadd.xlane.f32.xlu0 %v2863
    %v2865 = vpop.xlane.xlu0 %2864
    %v2866 = vsel %vm302, %v2850, 0.0
    %2867 = vadd.xlane.f32.xlu0 %v2866
    %v2868 = vpop.xlane.xlu0 %2867
    %v2869 = vsel %vm302, %v2852, 0.0
    %2870 = vadd.xlane.f32.xlu0 %v2869
    %v2871 = vpop.xlane.xlu0 %2870
    %v2872 = vsel %vm302, %v2854, 0.0
    %2873 = vadd.xlane.f32.xlu0 %v2872
    %v2874 = vpop.xlane.xlu0 %2873
    %v2875 = vsel %vm302, %v2856, 0.0
    %2876 = vadd.xlane.f32.xlu0 %v2875
    %v2877 = vpop.xlane.xlu0 %2876
    %v2878 = vsel %vm302, %v2858, 0.0
    %2879 = vadd.xlane.f32.xlu0 %v2878
    %v2880 = vpop.xlane.xlu0 %2879
    %v2881 = vsel %vm302, %v2860, 0.0
    %2882 = vadd.xlane.f32.xlu0 %v2881
    %v2883 = vpop.xlane.xlu0 %2882
    %v2884 = vsel %vm302, %v2862, 0.0
    %2885 = vadd.xlane.f32.xlu0 %v2884
    %v2886 = vpop.xlane.xlu0 %2885
    %v2887 = vrcp.pop %v2865
    %v2888 = vrcp.pop %v2868
    %v2889 = vrcp.pop %v2871
    %v2890 = vrcp.pop %v2874
    %v2891 = vrcp.pop %v2877
    %v2892 = vrcp.pop %v2880
    %v2893 = vrcp.pop %v2883
    %v2894 = vrcp.pop %v2886
    %v2895 = vmul.f32 %v2848, %v2887
    %v2896 = vmul.f32 %v2850, %v2888
    %v2897 = vmul.f32 %v2852, %v2889
    %v2898 = vmul.f32 %v2854, %v2890
    %v2899 = vmul.f32 %v2856, %v2891
    %v2900 = vmul.f32 %v2858, %v2892
    %v2901 = vmul.f32 %v2860, %v2893
    %v2902 = vmul.f32 %v2862, %v2894
    %2903 = vrot.lane.b32.xlu0 %v2185, 64
    %v2904 = vpop.permute.xlu0 %2903
    %v2907 = vsel %vm302, %v2895, 0
    %2909 = vmatprep.subr.mxu0 0.0
    %2910 = vmatpush1.msra.mxu0 %v2904
    %2911 = vmatprep.subr.mxu0 0.0
    %2912 = vmatpush1.msra.mxu0 0.0
    %2913 = vmatprep.subr.mxu0 0.0
    %2914 = vmatpush1.msra.mxu0 0.0
    %2915 = vmatprep.subr.mxu0 0.0
    %2916 = vmatpush1.msra.mxu0 0.0
    %2917 = vmatprep.subr.mxu0 0.0
    %2918 = vmatpush1.msra.mxu0 0.0
    %2919 = vmatprep.subr.mxu0 0.0
    %2920 = vmatpush1.msra.mxu0 0.0
    %2921 = vmatprep.subr.mxu0 0.0
    %2922 = vmatpush1.msra.mxu0 0.0
    %2923 = vmatprep.subr.mxu0 0.0
    %2924 = vmatpush1.msra.mxu0 0.0
    %2925 = vmatprep.subr.mxu0 0.0
    %2926 = vmatpush1.msra.mxu0 0.0
    %2927 = vmatprep.subr.mxu0 0.0
    %2928 = vmatpush1.msra.mxu0 0.0
    %2929 = vmatprep.subr.mxu0 0.0
    %2930 = vmatpush1.msra.mxu0 0.0
    %2931 = vmatprep.subr.mxu0 0.0
    %2932 = vmatpush1.msra.mxu0 0.0
    %2933 = vmatprep.subr.mxu0 0.0
    %2934 = vmatpush1.msra.mxu0 0.0
    %2935 = vmatprep.subr.mxu0 0.0
    %2936 = vmatpush1.msra.mxu0 0.0
    %2937 = vmatprep.subr.mxu0 0.0
    %2938 = vmatpush1.msra.mxu0 0.0
    %2939 = vmatprep.subr.mxu0 0.0
    %2940 = vmatpush1.msra.mxu0 0.0
    %2941 = vmatprep.subr.mxu0 0.0
    %2942 = vmatpush1.msra.mxu0 0.0
    %2943 = vmatprep.subr.mxu0 0.0
    %2944 = vmatpush1.msra.mxu0 0.0
    %2945 = vmatprep.subr.mxu0 0.0
    %2946 = vmatpush1.msra.mxu0 0.0
    %2947 = vmatprep.subr.mxu0 0.0
    %2948 = vmatpush1.msra.mxu0 0.0
    %2949 = vmatprep.subr.mxu0 0.0
    %2950 = vmatpush1.msra.mxu0 0.0
    %2951 = vmatprep.subr.mxu0 0.0
    %2952 = vmatpush1.msra.mxu0 0.0
    %2953 = vmatprep.subr.mxu0 0.0
    %2954 = vmatpush1.msra.mxu0 0.0
    %2955 = vmatprep.subr.mxu0 0.0
    %2956 = vmatpush1.msra.mxu0 0.0
    %2957 = vmatprep.subr.mxu0 0.0
    %2958 = vmatpush1.msra.mxu0 0.0
    %2959 = vmatprep.subr.mxu0 0.0
    %2960 = vmatpush1.msra.mxu0 0.0
    %2961 = vmatprep.subr.mxu0 0.0
    %2962 = vmatpush1.msra.mxu0 0.0
    %2963 = vmatprep.subr.mxu0 0.0
    %2964 = vmatpush1.msra.mxu0 0.0
    %2965 = vmatprep.subr.mxu0 0.0
    %2966 = vmatpush1.msra.mxu0 0.0
    %2967 = vmatprep.subr.mxu0 0.0
    %2968 = vmatpush1.msra.mxu0 0.0
    %2969 = vmatprep.subr.mxu0 0.0
    %2970 = vmatpush1.msra.mxu0 0.0
    %2971 = vmatprep.subr.mxu0 0.0
    %2972 = vmatpush1.msra.mxu0 0.0
    %2973 = vmatprep.mubr.f32.mxu0 0.0
    %2974 = vmatmul.mubr.f32.gmra.mrb[0].mxu0 %v2907
    %v2975 = vpop.f32.mrb[0].mxu0
    %v2976 = vadd.f32 0.0, %v2975
    %v2977 = vpop.f32.mrb[0].mxu0
    %2978 = vdwg.mxu0
    %2979 = vrot.lane.b32.xlu0 %v2190, 64
    %v2980 = vpop.permute.xlu0 %2979
    %v2983 = vsel %vm302, %v2896, 0
    %2985 = vmatprep.subr.mxu0 0.0
    %2986 = vmatpush1.msra.mxu0 %v2980
    %2987 = vmatprep.subr.mxu0 0.0
    %2988 = vmatpush1.msra.mxu0 0.0
    %2989 = vmatprep.subr.mxu0 0.0
    %2990 = vmatpush1.msra.mxu0 0.0
    %2991 = vmatprep.subr.mxu0 0.0
    %2992 = vmatpush1.msra.mxu0 0.0
    %2993 = vmatprep.subr.mxu0 0.0
    %2994 = vmatpush1.msra.mxu0 0.0
    %2995 = vmatprep.subr.mxu0 0.0
    %2996 = vmatpush1.msra.mxu0 0.0
    %2997 = vmatprep.subr.mxu0 0.0
    %2998 = vmatpush1.msra.mxu0 0.0
    %2999 = vmatprep.subr.mxu0 0.0
    %3000 = vmatpush1.msra.mxu0 0.0
    %3001 = vmatprep.subr.mxu0 0.0
    %3002 = vmatpush1.msra.mxu0 0.0
    %3003 = vmatprep.subr.mxu0 0.0
    %3004 = vmatpush1.msra.mxu0 0.0
    %3005 = vmatprep.subr.mxu0 0.0
    %3006 = vmatpush1.msra.mxu0 0.0
    %3007 = vmatprep.subr.mxu0 0.0
    %3008 = vmatpush1.msra.mxu0 0.0
    %3009 = vmatprep.subr.mxu0 0.0
    %3010 = vmatpush1.msra.mxu0 0.0
    %3011 = vmatprep.subr.mxu0 0.0
    %3012 = vmatpush1.msra.mxu0 0.0
    %3013 = vmatprep.subr.mxu0 0.0
    %3014 = vmatpush1.msra.mxu0 0.0
    %3015 = vmatprep.subr.mxu0 0.0
    %3016 = vmatpush1.msra.mxu0 0.0
    %3017 = vmatprep.subr.mxu0 0.0
    %3018 = vmatpush1.msra.mxu0 0.0
    %3019 = vmatprep.subr.mxu0 0.0
    %3020 = vmatpush1.msra.mxu0 0.0
    %3021 = vmatprep.subr.mxu0 0.0
    %3022 = vmatpush1.msra.mxu0 0.0
    %3023 = vmatprep.subr.mxu0 0.0
    %3024 = vmatpush1.msra.mxu0 0.0
    %3025 = vmatprep.subr.mxu0 0.0
    %3026 = vmatpush1.msra.mxu0 0.0
    %3027 = vmatprep.subr.mxu0 0.0
    %3028 = vmatpush1.msra.mxu0 0.0
    %3029 = vmatprep.subr.mxu0 0.0
    %3030 = vmatpush1.msra.mxu0 0.0
    %3031 = vmatprep.subr.mxu0 0.0
    %3032 = vmatpush1.msra.mxu0 0.0
    %3033 = vmatprep.subr.mxu0 0.0
    %3034 = vmatpush1.msra.mxu0 0.0
    %3035 = vmatprep.subr.mxu0 0.0
    %3036 = vmatpush1.msra.mxu0 0.0
    %3037 = vmatprep.subr.mxu0 0.0
    %3038 = vmatpush1.msra.mxu0 0.0
    %3039 = vmatprep.subr.mxu0 0.0
    %3040 = vmatpush1.msra.mxu0 0.0
    %3041 = vmatprep.subr.mxu0 0.0
    %3042 = vmatpush1.msra.mxu0 0.0
    %3043 = vmatprep.subr.mxu0 0.0
    %3044 = vmatpush1.msra.mxu0 0.0
    %3045 = vmatprep.subr.mxu0 0.0
    %3046 = vmatpush1.msra.mxu0 0.0
    %3047 = vmatprep.subr.mxu0 0.0
    %3048 = vmatpush1.msra.mxu0 0.0
    %3049 = vmatprep.mubr.f32.mxu0 0.0
    %3050 = vmatmul.mubr.f32.gmra.mrb[0].mxu0 %v2983
    %v3051 = vpop.f32.mrb[0].mxu0
    %v3052 = vadd.f32 0.0, %v3051
    %v3053 = vpop.f32.mrb[0].mxu0
    %3054 = vdwg.mxu0
    %3055 = vrot.lane.b32.xlu0 %v2196, 64
    %v3056 = vpop.permute.xlu0 %3055
    %v3059 = vsel %vm302, %v2897, 0
    %3061 = vmatprep.subr.mxu0 0.0
    %3062 = vmatpush1.msra.mxu0 %v3056
    %3063 = vmatprep.subr.mxu0 0.0
    %3064 = vmatpush1.msra.mxu0 0.0
    %3065 = vmatprep.subr.mxu0 0.0
    %3066 = vmatpush1.msra.mxu0 0.0
    %3067 = vmatprep.subr.mxu0 0.0
    %3068 = vmatpush1.msra.mxu0 0.0
    %3069 = vmatprep.subr.mxu0 0.0
    %3070 = vmatpush1.msra.mxu0 0.0
    %3071 = vmatprep.subr.mxu0 0.0
    %3072 = vmatpush1.msra.mxu0 0.0
    %3073 = vmatprep.subr.mxu0 0.0
    %3074 = vmatpush1.msra.mxu0 0.0
    %3075 = vmatprep.subr.mxu0 0.0
    %3076 = vmatpush1.msra.mxu0 0.0
    %3077 = vmatprep.subr.mxu0 0.0
    %3078 = vmatpush1.msra.mxu0 0.0
    %3079 = vmatprep.subr.mxu0 0.0
    %3080 = vmatpush1.msra.mxu0 0.0
    %3081 = vmatprep.subr.mxu0 0.0
    %3082 = vmatpush1.msra.mxu0 0.0
    %3083 = vmatprep.subr.mxu0 0.0
    %3084 = vmatpush1.msra.mxu0 0.0
    %3085 = vmatprep.subr.mxu0 0.0
    %3086 = vmatpush1.msra.mxu0 0.0
    %3087 = vmatprep.subr.mxu0 0.0
    %3088 = vmatpush1.msra.mxu0 0.0
    %3089 = vmatprep.subr.mxu0 0.0
    %3090 = vmatpush1.msra.mxu0 0.0
    %3091 = vmatprep.subr.mxu0 0.0
    %3092 = vmatpush1.msra.mxu0 0.0
    %3093 = vmatprep.subr.mxu0 0.0
    %3094 = vmatpush1.msra.mxu0 0.0
    %3095 = vmatprep.subr.mxu0 0.0
    %3096 = vmatpush1.msra.mxu0 0.0
    %3097 = vmatprep.subr.mxu0 0.0
    %3098 = vmatpush1.msra.mxu0 0.0
    %3099 = vmatprep.subr.mxu0 0.0
    %3100 = vmatpush1.msra.mxu0 0.0
    %3101 = vmatprep.subr.mxu0 0.0
    %3102 = vmatpush1.msra.mxu0 0.0
    %3103 = vmatprep.subr.mxu0 0.0
    %3104 = vmatpush1.msra.mxu0 0.0
    %3105 = vmatprep.subr.mxu0 0.0
    %3106 = vmatpush1.msra.mxu0 0.0
    %3107 = vmatprep.subr.mxu0 0.0
    %3108 = vmatpush1.msra.mxu0 0.0
    %3109 = vmatprep.subr.mxu0 0.0
    %3110 = vmatpush1.msra.mxu0 0.0
    %3111 = vmatprep.subr.mxu0 0.0
    %3112 = vmatpush1.msra.mxu0 0.0
    %3113 = vmatprep.subr.mxu0 0.0
    %3114 = vmatpush1.msra.mxu0 0.0
    %3115 = vmatprep.subr.mxu0 0.0
    %3116 = vmatpush1.msra.mxu0 0.0
    %3117 = vmatprep.subr.mxu0 0.0
    %3118 = vmatpush1.msra.mxu0 0.0
    %3119 = vmatprep.subr.mxu0 0.0
    %3120 = vmatpush1.msra.mxu0 0.0
    %3121 = vmatprep.subr.mxu0 0.0
    %3122 = vmatpush1.msra.mxu0 0.0
    %3123 = vmatprep.subr.mxu0 0.0
    %3124 = vmatpush1.msra.mxu0 0.0
    %3125 = vmatprep.mubr.f32.mxu0 0.0
    %3126 = vmatmul.mubr.f32.gmra.mrb[0].mxu0 %v3059
    %v3127 = vpop.f32.mrb[0].mxu0
    %v3128 = vadd.f32 0.0, %v3127
    %v3129 = vpop.f32.mrb[0].mxu0
    %3130 = vdwg.mxu0
    %3131 = vrot.lane.b32.xlu0 %v2198, 64
    %v3132 = vpop.permute.xlu0 %3131
    %v3135 = vsel %vm302, %v2898, 0
    %3137 = vmatprep.subr.mxu0 0.0
    %3138 = vmatpush1.msra.mxu0 %v3132
    %3139 = vmatprep.subr.mxu0 0.0
    %3140 = vmatpush1.msra.mxu0 0.0
    %3141 = vmatprep.subr.mxu0 0.0
    %3142 = vmatpush1.msra.mxu0 0.0
    %3143 = vmatprep.subr.mxu0 0.0
    %3144 = vmatpush1.msra.mxu0 0.0
    %3145 = vmatprep.subr.mxu0 0.0
    %3146 = vmatpush1.msra.mxu0 0.0
    %3147 = vmatprep.subr.mxu0 0.0
    %3148 = vmatpush1.msra.mxu0 0.0
    %3149 = vmatprep.subr.mxu0 0.0
    %3150 = vmatpush1.msra.mxu0 0.0
    %3151 = vmatprep.subr.mxu0 0.0
    %3152 = vmatpush1.msra.mxu0 0.0
    %3153 = vmatprep.subr.mxu0 0.0
    %3154 = vmatpush1.msra.mxu0 0.0
    %3155 = vmatprep.subr.mxu0 0.0
    %3156 = vmatpush1.msra.mxu0 0.0
    %3157 = vmatprep.subr.mxu0 0.0
    %3158 = vmatpush1.msra.mxu0 0.0
    %3159 = vmatprep.subr.mxu0 0.0
    %3160 = vmatpush1.msra.mxu0 0.0
    %3161 = vmatprep.subr.mxu0 0.0
    %3162 = vmatpush1.msra.mxu0 0.0
    %3163 = vmatprep.subr.mxu0 0.0
    %3164 = vmatpush1.msra.mxu0 0.0
    %3165 = vmatprep.subr.mxu0 0.0
    %3166 = vmatpush1.msra.mxu0 0.0
    %3167 = vmatprep.subr.mxu0 0.0
    %3168 = vmatpush1.msra.mxu0 0.0
    %3169 = vmatprep.subr.mxu0 0.0
    %3170 = vmatpush1.msra.mxu0 0.0
    %3171 = vmatprep.subr.mxu0 0.0
    %3172 = vmatpush1.msra.mxu0 0.0
    %3173 = vmatprep.subr.mxu0 0.0
    %3174 = vmatpush1.msra.mxu0 0.0
    %3175 = vmatprep.subr.mxu0 0.0
    %3176 = vmatpush1.msra.mxu0 0.0
    %3177 = vmatprep.subr.mxu0 0.0
    %3178 = vmatpush1.msra.mxu0 0.0
    %3179 = vmatprep.subr.mxu0 0.0
    %3180 = vmatpush1.msra.mxu0 0.0
    %3181 = vmatprep.subr.mxu0 0.0
    %3182 = vmatpush1.msra.mxu0 0.0
    %3183 = vmatprep.subr.mxu0 0.0
    %3184 = vmatpush1.msra.mxu0 0.0
    %3185 = vmatprep.subr.mxu0 0.0
    %3186 = vmatpush1.msra.mxu0 0.0
    %3187 = vmatprep.subr.mxu0 0.0
    %3188 = vmatpush1.msra.mxu0 0.0
    %3189 = vmatprep.subr.mxu0 0.0
    %3190 = vmatpush1.msra.mxu0 0.0
    %3191 = vmatprep.subr.mxu0 0.0
    %3192 = vmatpush1.msra.mxu0 0.0
    %3193 = vmatprep.subr.mxu0 0.0
    %3194 = vmatpush1.msra.mxu0 0.0
    %3195 = vmatprep.subr.mxu0 0.0
    %3196 = vmatpush1.msra.mxu0 0.0
    %3197 = vmatprep.subr.mxu0 0.0
    %3198 = vmatpush1.msra.mxu0 0.0
    %3199 = vmatprep.subr.mxu0 0.0
    %3200 = vmatpush1.msra.mxu0 0.0
    %3201 = vmatprep.mubr.f32.mxu0 0.0
    %3202 = vmatmul.mubr.f32.gmra.mrb[0].mxu0 %v3135
    %v3203 = vpop.f32.mrb[0].mxu0
    %v3204 = vadd.f32 0.0, %v3203
    %v3205 = vpop.f32.mrb[0].mxu0
    %3206 = vdwg.mxu0
    %3207 = vrot.lane.b32.xlu0 %v2200, 64
    %v3208 = vpop.permute.xlu0 %3207
    %v3211 = vsel %vm302, %v2899, 0
    %3213 = vmatprep.subr.mxu0 0.0
    %3214 = vmatpush1.msra.mxu0 %v3208
    %3215 = vmatprep.subr.mxu0 0.0
    %3216 = vmatpush1.msra.mxu0 0.0
    %3217 = vmatprep.subr.mxu0 0.0
    %3218 = vmatpush1.msra.mxu0 0.0
    %3219 = vmatprep.subr.mxu0 0.0
    %3220 = vmatpush1.msra.mxu0 0.0
    %3221 = vmatprep.subr.mxu0 0.0
    %3222 = vmatpush1.msra.mxu0 0.0
    %3223 = vmatprep.subr.mxu0 0.0
    %3224 = vmatpush1.msra.mxu0 0.0
    %3225 = vmatprep.subr.mxu0 0.0
    %3226 = vmatpush1.msra.mxu0 0.0
    %3227 = vmatprep.subr.mxu0 0.0
    %3228 = vmatpush1.msra.mxu0 0.0
    %3229 = vmatprep.subr.mxu0 0.0
    %3230 = vmatpush1.msra.mxu0 0.0
    %3231 = vmatprep.subr.mxu0 0.0
    %3232 = vmatpush1.msra.mxu0 0.0
    %3233 = vmatprep.subr.mxu0 0.0
    %3234 = vmatpush1.msra.mxu0 0.0
    %3235 = vmatprep.subr.mxu0 0.0
    %3236 = vmatpush1.msra.mxu0 0.0
    %3237 = vmatprep.subr.mxu0 0.0
    %3238 = vmatpush1.msra.mxu0 0.0
    %3239 = vmatprep.subr.mxu0 0.0
    %3240 = vmatpush1.msra.mxu0 0.0
    %3241 = vmatprep.subr.mxu0 0.0
    %3242 = vmatpush1.msra.mxu0 0.0
    %3243 = vmatprep.subr.mxu0 0.0
    %3244 = vmatpush1.msra.mxu0 0.0
    %3245 = vmatprep.subr.mxu0 0.0
    %3246 = vmatpush1.msra.mxu0 0.0
    %3247 = vmatprep.subr.mxu0 0.0
    %3248 = vmatpush1.msra.mxu0 0.0
    %3249 = vmatprep.subr.mxu0 0.0
    %3250 = vmatpush1.msra.mxu0 0.0
    %3251 = vmatprep.subr.mxu0 0.0
    %3252 = vmatpush1.msra.mxu0 0.0
    %3253 = vmatprep.subr.mxu0 0.0
    %3254 = vmatpush1.msra.mxu0 0.0
    %3255 = vmatprep.subr.mxu0 0.0
    %3256 = vmatpush1.msra.mxu0 0.0
    %3257 = vmatprep.subr.mxu0 0.0
    %3258 = vmatpush1.msra.mxu0 0.0
    %3259 = vmatprep.subr.mxu0 0.0
    %3260 = vmatpush1.msra.mxu0 0.0
    %3261 = vmatprep.subr.mxu0 0.0
    %3262 = vmatpush1.msra.mxu0 0.0
    %3263 = vmatprep.subr.mxu0 0.0
    %3264 = vmatpush1.msra.mxu0 0.0
    %3265 = vmatprep.subr.mxu0 0.0
    %3266 = vmatpush1.msra.mxu0 0.0
    %3267 = vmatprep.subr.mxu0 0.0
    %3268 = vmatpush1.msra.mxu0 0.0
    %3269 = vmatprep.subr.mxu0 0.0
    %3270 = vmatpush1.msra.mxu0 0.0
    %3271 = vmatprep.subr.mxu0 0.0
    %3272 = vmatpush1.msra.mxu0 0.0
    %3273 = vmatprep.subr.mxu0 0.0
    %3274 = vmatpush1.msra.mxu0 0.0
    %3275 = vmatprep.subr.mxu0 0.0
    %3276 = vmatpush1.msra.mxu0 0.0
    %3277 = vmatprep.mubr.f32.mxu0 0.0
    %3278 = vmatmul.mubr.f32.gmra.mrb[0].mxu0 %v3211
    %v3279 = vpop.f32.mrb[0].mxu0
    %v3280 = vadd.f32 0.0, %v3279
    %v3281 = vpop.f32.mrb[0].mxu0
    %3282 = vdwg.mxu0
    %3283 = vrot.lane.b32.xlu0 %v2202, 64
    %v3284 = vpop.permute.xlu0 %3283
    %v3287 = vsel %vm302, %v2900, 0
    %3289 = vmatprep.subr.mxu0 0.0
    %3290 = vmatpush1.msra.mxu0 %v3284
    %3291 = vmatprep.subr.mxu0 0.0
    %3292 = vmatpush1.msra.mxu0 0.0
    %3293 = vmatprep.subr.mxu0 0.0
    %3294 = vmatpush1.msra.mxu0 0.0
    %3295 = vmatprep.subr.mxu0 0.0
    %3296 = vmatpush1.msra.mxu0 0.0
    %3297 = vmatprep.subr.mxu0 0.0
    %3298 = vmatpush1.msra.mxu0 0.0
    %3299 = vmatprep.subr.mxu0 0.0
    %3300 = vmatpush1.msra.mxu0 0.0
    %3301 = vmatprep.subr.mxu0 0.0
    %3302 = vmatpush1.msra.mxu0 0.0
    %3303 = vmatprep.subr.mxu0 0.0
    %3304 = vmatpush1.msra.mxu0 0.0
    %3305 = vmatprep.subr.mxu0 0.0
    %3306 = vmatpush1.msra.mxu0 0.0
    %3307 = vmatprep.subr.mxu0 0.0
    %3308 = vmatpush1.msra.mxu0 0.0
    %3309 = vmatprep.subr.mxu0 0.0
    %3310 = vmatpush1.msra.mxu0 0.0
    %3311 = vmatprep.subr.mxu0 0.0
    %3312 = vmatpush1.msra.mxu0 0.0
    %3313 = vmatprep.subr.mxu0 0.0
    %3314 = vmatpush1.msra.mxu0 0.0
    %3315 = vmatprep.subr.mxu0 0.0
    %3316 = vmatpush1.msra.mxu0 0.0
    %3317 = vmatprep.subr.mxu0 0.0
    %3318 = vmatpush1.msra.mxu0 0.0
    %3319 = vmatprep.subr.mxu0 0.0
    %3320 = vmatpush1.msra.mxu0 0.0
    %3321 = vmatprep.subr.mxu0 0.0
    %3322 = vmatpush1.msra.mxu0 0.0
    %3323 = vmatprep.subr.mxu0 0.0
    %3324 = vmatpush1.msra.mxu0 0.0
    %3325 = vmatprep.subr.mxu0 0.0
    %3326 = vmatpush1.msra.mxu0 0.0
    %3327 = vmatprep.subr.mxu0 0.0
    %3328 = vmatpush1.msra.mxu0 0.0
    %3329 = vmatprep.subr.mxu0 0.0
    %3330 = vmatpush1.msra.mxu0 0.0
    %3331 = vmatprep.subr.mxu0 0.0
    %3332 = vmatpush1.msra.mxu0 0.0
    %3333 = vmatprep.subr.mxu0 0.0
    %3334 = vmatpush1.msra.mxu0 0.0
    %3335 = vmatprep.subr.mxu0 0.0
    %3336 = vmatpush1.msra.mxu0 0.0
    %3337 = vmatprep.subr.mxu0 0.0
    %3338 = vmatpush1.msra.mxu0 0.0
    %3339 = vmatprep.subr.mxu0 0.0
    %3340 = vmatpush1.msra.mxu0 0.0
    %3341 = vmatprep.subr.mxu0 0.0
    %3342 = vmatpush1.msra.mxu0 0.0
    %3343 = vmatprep.subr.mxu0 0.0
    %3344 = vmatpush1.msra.mxu0 0.0
    %3345 = vmatprep.subr.mxu0 0.0
    %3346 = vmatpush1.msra.mxu0 0.0
    %3347 = vmatprep.subr.mxu0 0.0
    %3348 = vmatpush1.msra.mxu0 0.0
    %3349 = vmatprep.subr.mxu0 0.0
    %3350 = vmatpush1.msra.mxu0 0.0
    %3351 = vmatprep.subr.mxu0 0.0
    %3352 = vmatpush1.msra.mxu0 0.0
    %3353 = vmatprep.mubr.f32.mxu0 0.0
    %3354 = vmatmul.mubr.f32.gmra.mrb[0].mxu0 %v3287
    %v3355 = vpop.f32.mrb[0].mxu0
    %v3356 = vadd.f32 0.0, %v3355
    %v3357 = vpop.f32.mrb[0].mxu0
    %3358 = vdwg.mxu0
    %3359 = vrot.lane.b32.xlu0 %v2204, 64
    %v3360 = vpop.permute.xlu0 %3359
    %v3363 = vsel %vm302, %v2901, 0
    %3365 = vmatprep.subr.mxu0 0.0
    %3366 = vmatpush1.msra.mxu0 %v3360
    %3367 = vmatprep.subr.mxu0 0.0
    %3368 = vmatpush1.msra.mxu0 0.0
    %3369 = vmatprep.subr.mxu0 0.0
    %3370 = vmatpush1.msra.mxu0 0.0
    %3371 = vmatprep.subr.mxu0 0.0
    %3372 = vmatpush1.msra.mxu0 0.0
    %3373 = vmatprep.subr.mxu0 0.0
    %3374 = vmatpush1.msra.mxu0 0.0
    %3375 = vmatprep.subr.mxu0 0.0
    %3376 = vmatpush1.msra.mxu0 0.0
    %3377 = vmatprep.subr.mxu0 0.0
    %3378 = vmatpush1.msra.mxu0 0.0
    %3379 = vmatprep.subr.mxu0 0.0
    %3380 = vmatpush1.msra.mxu0 0.0
    %3381 = vmatprep.subr.mxu0 0.0
    %3382 = vmatpush1.msra.mxu0 0.0
    %3383 = vmatprep.subr.mxu0 0.0
    %3384 = vmatpush1.msra.mxu0 0.0
    %3385 = vmatprep.subr.mxu0 0.0
    %3386 = vmatpush1.msra.mxu0 0.0
    %3387 = vmatprep.subr.mxu0 0.0
    %3388 = vmatpush1.msra.mxu0 0.0
    %3389 = vmatprep.subr.mxu0 0.0
    %3390 = vmatpush1.msra.mxu0 0.0
    %3391 = vmatprep.subr.mxu0 0.0
    %3392 = vmatpush1.msra.mxu0 0.0
    %3393 = vmatprep.subr.mxu0 0.0
    %3394 = vmatpush1.msra.mxu0 0.0
    %3395 = vmatprep.subr.mxu0 0.0
    %3396 = vmatpush1.msra.mxu0 0.0
    %3397 = vmatprep.subr.mxu0 0.0
    %3398 = vmatpush1.msra.mxu0 0.0
    %3399 = vmatprep.subr.mxu0 0.0
    %3400 = vmatpush1.msra.mxu0 0.0
    %3401 = vmatprep.subr.mxu0 0.0
    %3402 = vmatpush1.msra.mxu0 0.0
    %3403 = vmatprep.subr.mxu0 0.0
    %3404 = vmatpush1.msra.mxu0 0.0
    %3405 = vmatprep.subr.mxu0 0.0
    %3406 = vmatpush1.msra.mxu0 0.0
    %3407 = vmatprep.subr.mxu0 0.0
    %3408 = vmatpush1.msra.mxu0 0.0
    %3409 = vmatprep.subr.mxu0 0.0
    %3410 = vmatpush1.msra.mxu0 0.0
    %3411 = vmatprep.subr.mxu0 0.0
    %3412 = vmatpush1.msra.mxu0 0.0
    %3413 = vmatprep.subr.mxu0 0.0
    %3414 = vmatpush1.msra.mxu0 0.0
    %3415 = vmatprep.subr.mxu0 0.0
    %3416 = vmatpush1.msra.mxu0 0.0
    %3417 = vmatprep.subr.mxu0 0.0
    %3418 = vmatpush1.msra.mxu0 0.0
    %3419 = vmatprep.subr.mxu0 0.0
    %3420 = vmatpush1.msra.mxu0 0.0
    %3421 = vmatprep.subr.mxu0 0.0
    %3422 = vmatpush1.msra.mxu0 0.0
    %3423 = vmatprep.subr.mxu0 0.0
    %3424 = vmatpush1.msra.mxu0 0.0
    %3425 = vmatprep.subr.mxu0 0.0
    %3426 = vmatpush1.msra.mxu0 0.0
    %3427 = vmatprep.subr.mxu0 0.0
    %3428 = vmatpush1.msra.mxu0 0.0
    %3429 = vmatprep.mubr.f32.mxu0 0.0
    %3430 = vmatmul.mubr.f32.gmra.mrb[0].mxu0 %v3363
    %v3431 = vpop.f32.mrb[0].mxu0
    %v3432 = vadd.f32 0.0, %v3431
    %v3433 = vpop.f32.mrb[0].mxu0
    %3434 = vdwg.mxu0
    %3435 = vrot.lane.b32.xlu0 %v2206, 64
    %v3436 = vpop.permute.xlu0 %3435
    %v3439 = vsel %vm302, %v2902, 0
    %3441 = vmatprep.subr.mxu0 0.0
    %3442 = vmatpush1.msra.mxu0 %v3436
    %3443 = vmatprep.subr.mxu0 0.0
    %3444 = vmatpush1.msra.mxu0 0.0
    %3445 = vmatprep.subr.mxu0 0.0
    %3446 = vmatpush1.msra.mxu0 0.0
    %3447 = vmatprep.subr.mxu0 0.0
    %3448 = vmatpush1.msra.mxu0 0.0
    %3449 = vmatprep.subr.mxu0 0.0
    %3450 = vmatpush1.msra.mxu0 0.0
    %3451 = vmatprep.subr.mxu0 0.0
    %3452 = vmatpush1.msra.mxu0 0.0
    %3453 = vmatprep.subr.mxu0 0.0
    %3454 = vmatpush1.msra.mxu0 0.0
    %3455 = vmatprep.subr.mxu0 0.0
    %3456 = vmatpush1.msra.mxu0 0.0
    %3457 = vmatprep.subr.mxu0 0.0
    %3458 = vmatpush1.msra.mxu0 0.0
    %3459 = vmatprep.subr.mxu0 0.0
    %3460 = vmatpush1.msra.mxu0 0.0
    %3461 = vmatprep.subr.mxu0 0.0
    %3462 = vmatpush1.msra.mxu0 0.0
    %3463 = vmatprep.subr.mxu0 0.0
    %3464 = vmatpush1.msra.mxu0 0.0
    %3465 = vmatprep.subr.mxu0 0.0
    %3466 = vmatpush1.msra.mxu0 0.0
    %3467 = vmatprep.subr.mxu0 0.0
    %3468 = vmatpush1.msra.mxu0 0.0
    %3469 = vmatprep.subr.mxu0 0.0
    %3470 = vmatpush1.msra.mxu0 0.0
    %3471 = vmatprep.subr.mxu0 0.0
    %3472 = vmatpush1.msra.mxu0 0.0
    %3473 = vmatprep.subr.mxu0 0.0
    %3474 = vmatpush1.msra.mxu0 0.0
    %3475 = vmatprep.subr.mxu0 0.0
    %3476 = vmatpush1.msra.mxu0 0.0
    %3477 = vmatprep.subr.mxu0 0.0
    %3478 = vmatpush1.msra.mxu0 0.0
    %3479 = vmatprep.subr.mxu0 0.0
    %3480 = vmatpush1.msra.mxu0 0.0
    %3481 = vmatprep.subr.mxu0 0.0
    %3482 = vmatpush1.msra.mxu0 0.0
    %3483 = vmatprep.subr.mxu0 0.0
    %3484 = vmatpush1.msra.mxu0 0.0
    %3485 = vmatprep.subr.mxu0 0.0
    %3486 = vmatpush1.msra.mxu0 0.0
    %3487 = vmatprep.subr.mxu0 0.0
    %3488 = vmatpush1.msra.mxu0 0.0
    %3489 = vmatprep.subr.mxu0 0.0
    %3490 = vmatpush1.msra.mxu0 0.0
    %3491 = vmatprep.subr.mxu0 0.0
    %3492 = vmatpush1.msra.mxu0 0.0
    %3493 = vmatprep.subr.mxu0 0.0
    %3494 = vmatpush1.msra.mxu0 0.0
    %3495 = vmatprep.subr.mxu0 0.0
    %3496 = vmatpush1.msra.mxu0 0.0
    %3497 = vmatprep.subr.mxu0 0.0
    %3498 = vmatpush1.msra.mxu0 0.0
    %3499 = vmatprep.subr.mxu0 0.0
    %3500 = vmatpush1.msra.mxu0 0.0
    %3501 = vmatprep.subr.mxu0 0.0
    %3502 = vmatpush1.msra.mxu0 0.0
    %3503 = vmatprep.subr.mxu0 0.0
    %3504 = vmatpush1.msra.mxu0 0.0
    %3505 = vmatprep.mubr.f32.mxu0 0.0
    %3506 = vmatmul.mubr.f32.gmra.mrb[0].mxu0 %v3439
    %v3507 = vpop.f32.mrb[0].mxu0
    %v3508 = vadd.f32 0.0, %v3507
    %v3509 = vpop.f32.mrb[0].mxu0
    %3510 = vdwg.mxu0
    %3513 = vrot.lane.b32.xlu0 %v3128, 8
    %v3514 = vpop.permute.xlu0 %3513
    %3515 = vrot.lane.b32.xlu0 %v3204, 8
    %v3516 = vpop.permute.xlu0 %3515
    %3521 = vrot.lane.b32.xlu0 %v3280, 16
    %v3522 = vpop.permute.xlu0 %3521
    %3523 = vrot.lane.b32.xlu0 %v3356, 16
    %v3524 = vpop.permute.xlu0 %3523
    %3529 = vrot.lane.b32.xlu0 %v3432, 24
    %v3530 = vpop.permute.xlu0 %3529
    %3531 = vrot.lane.b32.xlu0 %v3508, 24
    %v3532 = vpop.permute.xlu0 %3531
    %v3535 = vsel %vm302, %v2976, %v3514
    %v3536 = vsel %vm302, %v3052, %v3516
    %v3537 = vsel %vm51, %v3535, %v3522
    %v3538 = vsel %vm51, %v3536, %v3524
    %v3539 = vsel %vm1633, %v3537, %v3530
    %v3540 = vsel %vm1633, %v3538, %v3532
    %v3541 = vld [vmem:[#allocation5 + $0x1f0] sm:$0xff]
    %v3542 = vld [vmem:[#allocation5 + $0x1f8] sm:$0xff]
    %v3543 = vld [vmem:[#allocation5 + $0x200] sm:$0xff]
    %v3544 = vld [vmem:[#allocation5 + $0x208] sm:$0xff]
    %v3545 = vld [vmem:[#allocation5 + $0x210] sm:$0x1]
    %v3546 = vlaneseq
    %v3547 = vshrl.u32 %v3546, 7
    %v3548 = vsub.s32 0, %v3547
    %v3549 = vrot.slane %v3545, %v3548
    %v3551 = vsel %vm168, %v3539, 0
    %v3554 = vsel %vm168, %v3540, 0
    %v3557 = vsel %vm168, %v3541, 0
    %v3560 = vsel %vm168, %v3542, 0
    %v3563 = vsel %vm168, %v3543, 0
    %v3566 = vsel %vm168, %v3544, 0
    %3568 = vmatprep.subr.mxu0 0.0
    %3569 = vmatpush1.xpose.msra.mxu0 %v3557
    %3570 = vmatprep.subr.mxu0 0.0
    %3571 = vmatpush1.xpose.msra.mxu0 %v3560
    %3572 = vmatprep.subr.mxu0 0.0
    %3573 = vmatpush1.xpose.msra.mxu0 %v3563
    %3574 = vmatprep.subr.mxu0 0.0
    %3575 = vmatpush1.xpose.msra.mxu0 %v3566
    %3576 = vmatprep.subr.mxu0 0.0
    %3577 = vmatpush1.xpose.msra.mxu0 0.0
    %3578 = vmatprep.subr.mxu0 0.0
    %3579 = vmatpush1.xpose.msra.mxu0 0.0
    %3580 = vmatprep.subr.mxu0 0.0
    %3581 = vmatpush1.xpose.msra.mxu0 0.0
    %3582 = vmatprep.subr.mxu0 0.0
    %3583 = vmatpush1.xpose.msra.mxu0 0.0
    %3584 = vmatprep.subr.mxu0 0.0
    %3585 = vmatpush1.xpose.msra.mxu0 0.0
    %3586 = vmatprep.subr.mxu0 0.0
    %3587 = vmatpush1.xpose.msra.mxu0 0.0
    %3588 = vmatprep.subr.mxu0 0.0
    %3589 = vmatpush1.xpose.msra.mxu0 0.0
    %3590 = vmatprep.subr.mxu0 0.0
    %3591 = vmatpush1.xpose.msra.mxu0 0.0
    %3592 = vmatprep.subr.mxu0 0.0
    %3593 = vmatpush1.xpose.msra.mxu0 0.0
    %3594 = vmatprep.subr.mxu0 0.0
    %3595 = vmatpush1.xpose.msra.mxu0 0.0
    %3596 = vmatprep.subr.mxu0 0.0
    %3597 = vmatpush1.xpose.msra.mxu0 0.0
    %3598 = vmatprep.subr.mxu0 0.0
    %3599 = vmatpush1.xpose.msra.mxu0 0.0
    %3600 = vmatprep.subr.mxu0 0.0
    %3601 = vmatpush1.xpose.msra.mxu0 0.0
    %3602 = vmatprep.subr.mxu0 0.0
    %3603 = vmatpush1.xpose.msra.mxu0 0.0
    %3604 = vmatprep.subr.mxu0 0.0
    %3605 = vmatpush1.xpose.msra.mxu0 0.0
    %3606 = vmatprep.subr.mxu0 0.0
    %3607 = vmatpush1.xpose.msra.mxu0 0.0
    %3608 = vmatprep.subr.mxu0 0.0
    %3609 = vmatpush1.xpose.msra.mxu0 0.0
    %3610 = vmatprep.subr.mxu0 0.0
    %3611 = vmatpush1.xpose.msra.mxu0 0.0
    %3612 = vmatprep.subr.mxu0 0.0
    %3613 = vmatpush1.xpose.msra.mxu0 0.0
    %3614 = vmatprep.subr.mxu0 0.0
    %3615 = vmatpush1.xpose.msra.mxu0 0.0
    %3616 = vmatprep.subr.mxu0 0.0
    %3617 = vmatpush1.xpose.msra.mxu0 0.0
    %3618 = vmatprep.subr.mxu0 0.0
    %3619 = vmatpush1.xpose.msra.mxu0 0.0
    %3620 = vmatprep.subr.mxu0 0.0
    %3621 = vmatpush1.xpose.msra.mxu0 0.0
    %3622 = vmatprep.subr.mxu0 0.0
    %3623 = vmatpush1.xpose.msra.mxu0 0.0
    %3624 = vmatprep.subr.mxu0 0.0
    %3625 = vmatpush1.xpose.msra.mxu0 0.0
    %3626 = vmatprep.subr.mxu0 0.0
    %3627 = vmatpush1.xpose.msra.mxu0 0.0
    %3628 = vmatprep.subr.mxu0 0.0
    %3629 = vmatpush1.xpose.msra.mxu0 0.0
    %3630 = vmatprep.subr.mxu0 0.0
    %3631 = vmatpush1.xpose.msra.mxu0 0.0
    %3632 = vmatprep.mubr.f32.mxu0 0.0
    %3633 = vmatmul.mubr.f32.gmra.mrb[0].mxu0 %v3551
    %v3634 = vpop.f32.mrb[0].mxu0
    %v3635 = vadd.f32 %v3549, %v3634
    %v3636 = vpop.f32.mrb[0].mxu0
    %3637 = vmatprep.mubr.f32.mxu0 0.0
    %3638 = vmatmul.mubr.f32.gmra.mrb[0].mxu0 %v3554
    %v3639 = vpop.f32.mrb[0].mxu0
    %v3640 = vadd.f32 %v3549, %v3639
    %v3641 = vpop.f32.mrb[0].mxu0
    %3642 = vdwg.mxu0
    %v3643 = vadd.f32 %v2057, %v3635
    %v3644 = vadd.f32 %v2058, %v3640
    %v3645 = vld [vmem:[#allocation5 + $0x218] sm:$0x1]
    %v3646 = vld [vmem:[#allocation5 + $0x220] sm:$0x1]
    %v3647 = vsel %vm168, %v3643, 0.0
    %3648 = vadd.xlane.f32.xlu0 %v3647
    %v3649 = vpop.xlane.xlu0 %3648
    %v3650 = vsel %vm168, %v3644, 0.0
    %3651 = vadd.xlane.f32.xlu0 %v3650
    %v3652 = vpop.xlane.xlu0 %3651
    %v3653 = vmul.f32 %v3649, %v1748
    %v3654 = vmul.f32 %v3652, %v1748
    %v3655 = vsub.f32 %v3643, %v3653
    %v3656 = vsub.f32 %v3644, %v3654
    %v3657 = vmul.f32 %v3655, %v3655
    %v3658 = vmul.f32 %v3656, %v3656
    %v3659 = vsel %vm168, %v3657, 0.0
    %3660 = vadd.xlane.f32.xlu0 %v3659
    %v3661 = vpop.xlane.xlu0 %3660
    %v3662 = vsel %vm168, %v3658, 0.0
    %3663 = vadd.xlane.f32.xlu0 %v3662
    %v3664 = vpop.xlane.xlu0 %3663
    %v3665 = vmul.f32 %v3661, %v1748
    %v3666 = vmul.f32 %v3664, %v1748
    %v3667 = vadd.f32 %v3665, 1e-05
    %v3668 = vadd.f32 %v3666, 1e-05
    %v3669 = vrsqrt.pop %v3667
    %v3670 = vrsqrt.pop %v3668
    %v3671 = vmul.f32 %v3655, %v3669
    %v3672 = vmul.f32 %v3656, %v3670
    %v3673 = vlaneseq
    %v3674 = vshrl.u32 %v3673, 7
    %v3675 = vsub.s32 0, %v3674
    %v3676 = vrot.slane %v3645, %v3675
    %v3677 = vmul.f32 %v3671, %v3676
    %v3678 = vmul.f32 %v3672, %v3676
    %v3679 = vlaneseq
    %v3680 = vshrl.u32 %v3679, 7
    %v3681 = vsub.s32 0, %v3680
    %v3682 = vrot.slane %v3646, %v3681
    %v3683 = vadd.f32 %v3677, %v3682
    %v3684 = vadd.f32 %v3678, %v3682
    %v3685 = vld [vmem:[#allocation5 + $0x228] sm:$0xff]
    %v3686 = vld [vmem:[#allocation5 + $0x230] sm:$0xff]
    %v3687 = vld [vmem:[#allocation5 + $0x238] sm:$0xff]
    %v3688 = vld [vmem:[#allocation5 + $0x240] sm:$0xff]
    %v3689 = vld [vmem:[#allocation5 + $0x248] sm:$0xff]
    %v3690 = vld [vmem:[#allocation5 + $0x250] sm:$0xff]
    %v3691 = vld [vmem:[#allocation5 + $0x258] sm:$0xff]
    %v3692 = vld [vmem:[#allocation5 + $0x260] sm:$0xff]
    %v3693 = vld [vmem:[#allocation5 + $0x268] sm:$0xff]
    %v3694 = vld [vmem:[#allocation5 + $0x270] sm:$0xff]
    %v3695 = vld [vmem:[#allocation5 + $0x278] sm:$0xff]
    %v3696 = vld [vmem:[#allocation5 + $0x280] sm:$0xff]
    %v3697 = vld [vmem:[#allocation5 + $0x288] sm:$0xff]
    %v3698 = vld [vmem:[#allocation5 + $0x290] sm:$0xff]
    %v3699 = vld [vmem:[#allocation5 + $0x298] sm:$0xff]
    %v3700 = vld [vmem:[#allocation5 + $0x2a0] sm:$0xff]
    %v3701 = vld [vmem:[#allocation5 + $0x2a8] sm:$0x1]
    %v3702 = vlaneseq
    %v3703 = vshrl.u32 %v3702, 7
    %v3704 = vsub.s32 0, %v3703
    %v3705 = vrot.slane %v3701, %v3704
    %v3707 = vsel %vm168, %v3683, 0
    %v3710 = vsel %vm168, %v3684, 0
    %v3713 = vsel %vm168, %v3685, 0
    %v3716 = vsel %vm168, %v3686, 0
    %v3719 = vsel %vm168, %v3687, 0
    %v3722 = vsel %vm168, %v3688, 0
    %v3725 = vsel %vm168, %v3689, 0
    %v3728 = vsel %vm168, %v3690, 0
    %v3731 = vsel %vm168, %v3691, 0
    %v3734 = vsel %vm168, %v3692, 0
    %v3737 = vsel %vm168, %v3693, 0
    %v3740 = vsel %vm168, %v3694, 0
    %v3743 = vsel %vm168, %v3695, 0
    %v3746 = vsel %vm168, %v3696, 0
    %v3749 = vsel %vm168, %v3697, 0
    %v3752 = vsel %vm168, %v3698, 0
    %v3755 = vsel %vm168, %v3699, 0
    %v3758 = vsel %vm168, %v3700, 0
    %3760 = vmatprep.subr.mxu0 0.0
    %3761 = vmatpush1.xpose.msra.mxu0 %v3713
    %3762 = vmatprep.subr.mxu0 0.0
    %3763 = vmatpush1.xpose.msra.mxu0 %v3716
    %3764 = vmatprep.subr.mxu0 0.0
    %3765 = vmatpush1.xpose.msra.mxu0 %v3719
    %3766 = vmatprep.subr.mxu0 0.0
    %3767 = vmatpush1.xpose.msra.mxu0 %v3722
    %3768 = vmatprep.subr.mxu0 0.0
    %3769 = vmatpush1.xpose.msra.mxu0 %v3725
    %3770 = vmatprep.subr.mxu0 0.0
    %3771 = vmatpush1.xpose.msra.mxu0 %v3728
    %3772 = vmatprep.subr.mxu0 0.0
    %3773 = vmatpush1.xpose.msra.mxu0 %v3731
    %3774 = vmatprep.subr.mxu0 0.0
    %3775 = vmatpush1.xpose.msra.mxu0 %v3734
    %3776 = vmatprep.subr.mxu0 0.0
    %3777 = vmatpush1.xpose.msra.mxu0 %v3737
    %3778 = vmatprep.subr.mxu0 0.0
    %3779 = vmatpush1.xpose.msra.mxu0 %v3740
    %3780 = vmatprep.subr.mxu0 0.0
    %3781 = vmatpush1.xpose.msra.mxu0 %v3743
    %3782 = vmatprep.subr.mxu0 0.0
    %3783 = vmatpush1.xpose.msra.mxu0 %v3746
    %3784 = vmatprep.subr.mxu0 0.0
    %3785 = vmatpush1.xpose.msra.mxu0 %v3749
    %3786 = vmatprep.subr.mxu0 0.0
    %3787 = vmatpush1.xpose.msra.mxu0 %v3752
    %3788 = vmatprep.subr.mxu0 0.0
    %3789 = vmatpush1.xpose.msra.mxu0 %v3755
    %3790 = vmatprep.subr.mxu0 0.0
    %3791 = vmatpush1.xpose.msra.mxu0 %v3758
    %3792 = vmatprep.subr.mxu0 0.0
    %3793 = vmatpush1.xpose.msra.mxu0 0.0
    %3794 = vmatprep.subr.mxu0 0.0
    %3795 = vmatpush1.xpose.msra.mxu0 0.0
    %3796 = vmatprep.subr.mxu0 0.0
    %3797 = vmatpush1.xpose.msra.mxu0 0.0
    %3798 = vmatprep.subr.mxu0 0.0
    %3799 = vmatpush1.xpose.msra.mxu0 0.0
    %3800 = vmatprep.subr.mxu0 0.0
    %3801 = vmatpush1.xpose.msra.mxu0 0.0
    %3802 = vmatprep.subr.mxu0 0.0
    %3803 = vmatpush1.xpose.msra.mxu0 0.0
    %3804 = vmatprep.subr.mxu0 0.0
    %3805 = vmatpush1.xpose.msra.mxu0 0.0
    %3806 = vmatprep.subr.mxu0 0.0
    %3807 = vmatpush1.xpose.msra.mxu0 0.0
    %3808 = vmatprep.subr.mxu0 0.0
    %3809 = vmatpush1.xpose.msra.mxu0 0.0
    %3810 = vmatprep.subr.mxu0 0.0
    %3811 = vmatpush1.xpose.msra.mxu0 0.0
    %3812 = vmatprep.subr.mxu0 0.0
    %3813 = vmatpush1.xpose.msra.mxu0 0.0
    %3814 = vmatprep.subr.mxu0 0.0
    %3815 = vmatpush1.xpose.msra.mxu0 0.0
    %3816 = vmatprep.subr.mxu0 0.0
    %3817 = vmatpush1.xpose.msra.mxu0 0.0
    %3818 = vmatprep.subr.mxu0 0.0
    %3819 = vmatpush1.xpose.msra.mxu0 0.0
    %3820 = vmatprep.subr.mxu0 0.0
    %3821 = vmatpush1.xpose.msra.mxu0 0.0
    %3822 = vmatprep.subr.mxu0 0.0
    %3823 = vmatpush1.xpose.msra.mxu0 0.0
    %3824 = vmatprep.mubr.f32.mxu0 0.0
    %3825 = vmatmul.mubr.f32.gmra.mrb[0].mxu0 %v3707
    %v3826 = vpop.f32.mrb[0].mxu0
    %v3827 = vadd.f32 %v3705, %v3826
    %v3828 = vpop.f32.mrb[0].mxu0
    %3829 = vmatprep.mubr.f32.mxu0 0.0
    %3830 = vmatmul.mubr.f32.gmra.mrb[0].mxu0 %v3710
    %v3831 = vpop.f32.mrb[0].mxu0
    %v3832 = vadd.f32 %v3705, %v3831
    %v3833 = vpop.f32.mrb[0].mxu0
    %3834 = vdwg.mxu0
    %v3835 = vmax.f32 %v3827, 0.0
    %v3836 = vmax.f32 %v3832, 0.0
    %v3837 = vld [vmem:[#allocation5 + $0x2b0] sm:$0xff]
    %v3838 = vld [vmem:[#allocation5 + $0x2b8] sm:$0xff]
    %v3839 = vld [vmem:[#allocation5 + $0x2c0] sm:$0xff]
    %v3840 = vld [vmem:[#allocation5 + $0x2c8] sm:$0xff]
    %v3841 = vld [vmem:[#allocation5 + $0x2d0] sm:$0x1]
    %v3842 = vlaneseq
    %v3843 = vshrl.u32 %v3842, 7
    %v3844 = vsub.s32 0, %v3843
    %v3845 = vrot.slane %v3841, %v3844
    %3846 = vmatprep.subr.mxu0 0.0
    %3847 = vmatpush1.xpose.msra.mxu0 %v3837
    %3848 = vmatprep.subr.mxu0 0.0
    %3849 = vmatpush1.xpose.msra.mxu0 %v3838
    %3850 = vmatprep.subr.mxu0 0.0
    %3851 = vmatpush1.xpose.msra.mxu0 %v3839
    %3852 = vmatprep.subr.mxu0 0.0
    %3853 = vmatpush1.xpose.msra.mxu0 %v3840
    %3854 = vmatprep.subr.mxu0 0.0
    %3855 = vmatpush1.xpose.msra.mxu0 0.0
    %3856 = vmatprep.subr.mxu0 0.0
    %3857 = vmatpush1.xpose.msra.mxu0 0.0
    %3858 = vmatprep.subr.mxu0 0.0
    %3859 = vmatpush1.xpose.msra.mxu0 0.0
    %3860 = vmatprep.subr.mxu0 0.0
    %3861 = vmatpush1.xpose.msra.mxu0 0.0
    %3862 = vmatprep.subr.mxu0 0.0
    %3863 = vmatpush1.xpose.msra.mxu0 0.0
    %3864 = vmatprep.subr.mxu0 0.0
    %3865 = vmatpush1.xpose.msra.mxu0 0.0
    %3866 = vmatprep.subr.mxu0 0.0
    %3867 = vmatpush1.xpose.msra.mxu0 0.0
    %3868 = vmatprep.subr.mxu0 0.0
    %3869 = vmatpush1.xpose.msra.mxu0 0.0
    %3870 = vmatprep.subr.mxu0 0.0
    %3871 = vmatpush1.xpose.msra.mxu0 0.0
    %3872 = vmatprep.subr.mxu0 0.0
    %3873 = vmatpush1.xpose.msra.mxu0 0.0
    %3874 = vmatprep.subr.mxu0 0.0
    %3875 = vmatpush1.xpose.msra.mxu0 0.0
    %3876 = vmatprep.subr.mxu0 0.0
    %3877 = vmatpush1.xpose.msra.mxu0 0.0
    %3878 = vmatprep.subr.mxu0 0.0
    %3879 = vmatpush1.xpose.msra.mxu0 0.0
    %3880 = vmatprep.subr.mxu0 0.0
    %3881 = vmatpush1.xpose.msra.mxu0 0.0
    %3882 = vmatprep.subr.mxu0 0.0
    %3883 = vmatpush1.xpose.msra.mxu0 0.0
    %3884 = vmatprep.subr.mxu0 0.0
    %3885 = vmatpush1.xpose.msra.mxu0 0.0
    %3886 = vmatprep.subr.mxu0 0.0
    %3887 = vmatpush1.xpose.msra.mxu0 0.0
    %3888 = vmatprep.subr.mxu0 0.0
    %3889 = vmatpush1.xpose.msra.mxu0 0.0
    %3890 = vmatprep.subr.mxu0 0.0
    %3891 = vmatpush1.xpose.msra.mxu0 0.0
    %3892 = vmatprep.subr.mxu0 0.0
    %3893 = vmatpush1.xpose.msra.mxu0 0.0
    %3894 = vmatprep.subr.mxu0 0.0
    %3895 = vmatpush1.xpose.msra.mxu0 0.0
    %3896 = vmatprep.subr.mxu0 0.0
    %3897 = vmatpush1.xpose.msra.mxu0 0.0
    %3898 = vmatprep.subr.mxu0 0.0
    %3899 = vmatpush1.xpose.msra.mxu0 0.0
    %3900 = vmatprep.subr.mxu0 0.0
    %3901 = vmatpush1.xpose.msra.mxu0 0.0
    %3902 = vmatprep.subr.mxu0 0.0
    %3903 = vmatpush1.xpose.msra.mxu0 0.0
    %3904 = vmatprep.subr.mxu0 0.0
    %3905 = vmatpush1.xpose.msra.mxu0 0.0
    %3906 = vmatprep.subr.mxu0 0.0
    %3907 = vmatpush1.xpose.msra.mxu0 0.0
    %3908 = vmatprep.subr.mxu0 0.0
    %3909 = vmatpush1.xpose.msra.mxu0 0.0
    %3910 = vmatprep.mubr.f32.mxu0 0.0
    %3911 = vmatmul.mubr.f32.gmra.mrb[0].mxu0 %v3835
    %v3912 = vpop.f32.mrb[0].mxu0
    %v3913 = vadd.f32 %v3845, %v3912
    %v3914 = vpop.f32.mrb[0].mxu0
    %3915 = vmatprep.mubr.f32.mxu0 0.0
    %3916 = vmatmul.mubr.f32.gmra.mrb[0].mxu0 %v3836
    %v3917 = vpop.f32.mrb[0].mxu0
    %v3918 = vadd.f32 %v3845, %v3917
    %v3919 = vpop.f32.mrb[0].mxu0
    %3920 = vdwg.mxu0
    %v3921 = vadd.f32 %v3683, %v3913
    %v3922 = vadd.f32 %v3684, %v3918
    %v3923 = vld [vmem:[#allocation5 + $0x2d8] sm:$0x1]
    %v3924 = vld [vmem:[#allocation5 + $0x2e0] sm:$0x1]
    %v3925 = vsel %vm168, %v3921, 0.0
    %3926 = vadd.xlane.f32.xlu0 %v3925
    %v3927 = vpop.xlane.xlu0 %3926
    %v3928 = vsel %vm168, %v3922, 0.0
    %3929 = vadd.xlane.f32.xlu0 %v3928
    %v3930 = vpop.xlane.xlu0 %3929
    %v3931 = vmul.f32 %v3927, %v1748
    %v3932 = vmul.f32 %v3930, %v1748
    %v3933 = vsub.f32 %v3921, %v3931
    %v3934 = vsub.f32 %v3922, %v3932
    %v3935 = vmul.f32 %v3933, %v3933
    %v3936 = vmul.f32 %v3934, %v3934
    %v3937 = vsel %vm168, %v3935, 0.0
    %3938 = vadd.xlane.f32.xlu0 %v3937
    %v3939 = vpop.xlane.xlu0 %3938
    %v3940 = vsel %vm168, %v3936, 0.0
    %3941 = vadd.xlane.f32.xlu0 %v3940
    %v3942 = vpop.xlane.xlu0 %3941
    %v3943 = vmul.f32 %v3939, %v1748
    %v3944 = vmul.f32 %v3942, %v1748
    %v3945 = vadd.f32 %v3943, 1e-05
    %v3946 = vadd.f32 %v3944, 1e-05
    %v3947 = vrsqrt.pop %v3945
    %v3948 = vrsqrt.pop %v3946
    %v3949 = vmul.f32 %v3933, %v3947
    %v3950 = vmul.f32 %v3934, %v3948
    %v3951 = vlaneseq
    %v3952 = vshrl.u32 %v3951, 7
    %v3953 = vsub.s32 0, %v3952
    %v3954 = vrot.slane %v3923, %v3953
    %v3955 = vmul.f32 %v3949, %v3954
    %v3956 = vmul.f32 %v3950, %v3954
    %v3957 = vlaneseq
    %v3958 = vshrl.u32 %v3957, 7
    %v3959 = vsub.s32 0, %v3958
    %v3960 = vrot.slane %v3924, %v3959
    %v3961 = vadd.f32 %v3955, %v3960
    %v3962 = vadd.f32 %v3956, %v3960
    %v3963 = vld [vmem:[#allocation5 + $0x2e8] sm:$0xff]
    %v3964 = vld [vmem:[#allocation5 + $0x2f0] sm:$0xff]
    %v3965 = vld [vmem:[#allocation5 + $0x2f8] sm:$0xff]
    %v3966 = vld [vmem:[#allocation5 + $0x300] sm:$0xff]
    %v3967 = vld [vmem:[#allocation5 + $0x308] sm:$0xff]
    %v3968 = vld [vmem:[#allocation5 + $0x310] sm:$0xff]
    %v3969 = vld [vmem:[#allocation5 + $0x318] sm:$0xff]
    %v3970 = vld [vmem:[#allocation5 + $0x320] sm:$0xff]
    %v3971 = vld [vmem:[#allocation5 + $0x328] sm:$0xff]
    %v3972 = vld [vmem:[#allocation5 + $0x330] sm:$0xff]
    %v3973 = vld [vmem:[#allocation5 + $0x338] sm:$0xff]
    %v3974 = vld [vmem:[#allocation5 + $0x340] sm:$0xff]
    %v3975 = vld [vmem:[#allocation5 + $0x348] sm:$0xff]
    %v3976 = vld [vmem:[#allocation5 + $0x350] sm:$0xff]
    %v3977 = vld [vmem:[#allocation5 + $0x358] sm:$0xff]
    %v3978 = vld [vmem:[#allocation5 + $0x360] sm:$0xff]
    %v3979 = vld [vmem:[#allocation5 + $0x368] sm:$0x1]
    %v3980 = vlaneseq
    %v3981 = vshrl.u32 %v3980, 7
    %v3982 = vsub.s32 0, %v3981
    %v3983 = vrot.slane %v3979, %v3982
    %v3985 = vsel %vm168, %v3961, 0
    %v3988 = vsel %vm168, %v3962, 0
    %v3991 = vsel %vm168, %v3963, 0
    %v3994 = vsel %vm168, %v3964, 0
    %v3997 = vsel %vm168, %v3965, 0
    %v4000 = vsel %vm168, %v3966, 0
    %v4003 = vsel %vm168, %v3967, 0
    %v4006 = vsel %vm168, %v3968, 0
    %v4009 = vsel %vm168, %v3969, 0
    %v4012 = vsel %vm168, %v3970, 0
    %v4015 = vsel %vm168, %v3971, 0
    %v4018 = vsel %vm168, %v3972, 0
    %v4021 = vsel %vm168, %v3973, 0
    %v4024 = vsel %vm168, %v3974, 0
    %v4027 = vsel %vm168, %v3975, 0
    %v4030 = vsel %vm168, %v3976, 0
    %v4033 = vsel %vm168, %v3977, 0
    %v4036 = vsel %vm168, %v3978, 0
    %4038 = vmatprep.subr.mxu0 0.0
    %4039 = vmatpush1.xpose.msra.mxu0 %v3991
    %4040 = vmatprep.subr.mxu0 0.0
    %4041 = vmatpush1.xpose.msra.mxu0 %v3994
    %4042 = vmatprep.subr.mxu0 0.0
    %4043 = vmatpush1.xpose.msra.mxu0 %v3997
    %4044 = vmatprep.subr.mxu0 0.0
    %4045 = vmatpush1.xpose.msra.mxu0 %v4000
    %4046 = vmatprep.subr.mxu0 0.0
    %4047 = vmatpush1.xpose.msra.mxu0 %v4003
    %4048 = vmatprep.subr.mxu0 0.0
    %4049 = vmatpush1.xpose.msra.mxu0 %v4006
    %4050 = vmatprep.subr.mxu0 0.0
    %4051 = vmatpush1.xpose.msra.mxu0 %v4009
    %4052 = vmatprep.subr.mxu0 0.0
    %4053 = vmatpush1.xpose.msra.mxu0 %v4012
    %4054 = vmatprep.subr.mxu0 0.0
    %4055 = vmatpush1.xpose.msra.mxu0 %v4015
    %4056 = vmatprep.subr.mxu0 0.0
    %4057 = vmatpush1.xpose.msra.mxu0 %v4018
    %4058 = vmatprep.subr.mxu0 0.0
    %4059 = vmatpush1.xpose.msra.mxu0 %v4021
    %4060 = vmatprep.subr.mxu0 0.0
    %4061 = vmatpush1.xpose.msra.mxu0 %v4024
    %4062 = vmatprep.subr.mxu0 0.0
    %4063 = vmatpush1.xpose.msra.mxu0 %v4027
    %4064 = vmatprep.subr.mxu0 0.0
    %4065 = vmatpush1.xpose.msra.mxu0 %v4030
    %4066 = vmatprep.subr.mxu0 0.0
    %4067 = vmatpush1.xpose.msra.mxu0 %v4033
    %4068 = vmatprep.subr.mxu0 0.0
    %4069 = vmatpush1.xpose.msra.mxu0 %v4036
    %4070 = vmatprep.subr.mxu0 0.0
    %4071 = vmatpush1.xpose.msra.mxu0 0.0
    %4072 = vmatprep.subr.mxu0 0.0
    %4073 = vmatpush1.xpose.msra.mxu0 0.0
    %4074 = vmatprep.subr.mxu0 0.0
    %4075 = vmatpush1.xpose.msra.mxu0 0.0
    %4076 = vmatprep.subr.mxu0 0.0
    %4077 = vmatpush1.xpose.msra.mxu0 0.0
    %4078 = vmatprep.subr.mxu0 0.0
    %4079 = vmatpush1.xpose.msra.mxu0 0.0
    %4080 = vmatprep.subr.mxu0 0.0
    %4081 = vmatpush1.xpose.msra.mxu0 0.0
    %4082 = vmatprep.subr.mxu0 0.0
    %4083 = vmatpush1.xpose.msra.mxu0 0.0
    %4084 = vmatprep.subr.mxu0 0.0
    %4085 = vmatpush1.xpose.msra.mxu0 0.0
    %4086 = vmatprep.subr.mxu0 0.0
    %4087 = vmatpush1.xpose.msra.mxu0 0.0
    %4088 = vmatprep.subr.mxu0 0.0
    %4089 = vmatpush1.xpose.msra.mxu0 0.0
    %4090 = vmatprep.subr.mxu0 0.0
    %4091 = vmatpush1.xpose.msra.mxu0 0.0
    %4092 = vmatprep.subr.mxu0 0.0
    %4093 = vmatpush1.xpose.msra.mxu0 0.0
    %4094 = vmatprep.subr.mxu0 0.0
    %4095 = vmatpush1.xpose.msra.mxu0 0.0
    %4096 = vmatprep.subr.mxu0 0.0
    %4097 = vmatpush1.xpose.msra.mxu0 0.0
    %4098 = vmatprep.subr.mxu0 0.0
    %4099 = vmatpush1.xpose.msra.mxu0 0.0
    %4100 = vmatprep.subr.mxu0 0.0
    %4101 = vmatpush1.xpose.msra.mxu0 0.0
    %4102 = vmatprep.mubr.f32.mxu0 0.0
    %4103 = vmatmul.mubr.f32.gmra.mrb[0].mxu0 %v3985
    %v4104 = vpop.f32.mrb[0].mxu0
    %v4105 = vadd.f32 %v3983, %v4104
    %v4106 = vpop.f32.mrb[0].mxu0
    %4107 = vmatprep.mubr.f32.mxu0 0.0
    %4108 = vmatmul.mubr.f32.gmra.mrb[0].mxu0 %v3988
    %v4109 = vpop.f32.mrb[0].mxu0
    %v4110 = vadd.f32 %v3983, %v4109
    %v4111 = vpop.f32.mrb[0].mxu0
    %4112 = vdwg.mxu0
    %v4113 = vxor.u32 %v4105, 2147483648
    %v4114 = vxor.u32 %v4110, 2147483648
    %v4115 = vmul.f32 %v4113, 1.442695
    %v4116 = vpow.pop %v4115
    %v4117 = vmul.f32 %v4114, 1.442695
    %v4118 = vpow.pop %v4117
    %v4119 = vadd.f32 %v4116, 1.0
    %v4120 = vadd.f32 %v4118, 1.0
    %v4121 = vrcp.pop %v4119
    %v4122 = vmul.f32 1.0, %v4121
    %v4123 = vrcp.pop %v4120
    %v4124 = vmul.f32 1.0, %v4123
    %4125 = vst [vmem:[#allocation7] sm:$0xff] %v4122
    %4126 = vst [vmem:[#allocation7 + $0x8] sm:$0xff] %v4124
    // Predicated region
    $region18: #{tpu_custom_call.1} parent=1 // pred_check
      _
    $region19: #{tpu_custom_call.1} parent=1 // pred_check_branch
      %4128 = sbr.rel (0) target = $region21
    $region20: #{tpu_custom_call.1} parent=1 // pred_region
      %s4130 = ssub.s32 256, 256
      %4131 = vsyncadd [#allocation4], %s4130
      %s4132 = sshll.u32 [#allocation7], 4
      %s4133 = int_to_ptr.vmem [resolvable:$true] %s4132
      %4138 = dma.vmem_to_hbm [thread:$0]  %s4133, 256, %s2, [#allocation4], 128, 128, 8
    $region21: #{tpu_custom_call.1} parent=1 // pred_fallthru
      _
    // Predicated region
    $region22: #{tpu_custom_call.1} parent=1 // pred_check
      _
    $region23: #{tpu_custom_call.1} parent=1 // pred_check_branch
      %4140 = sbr.rel (0) target = $region25
    $region24: #{tpu_custom_call.1} parent=1 // pred_region
      %4141 = dma.done [#allocation4], 256
    $region25: #{tpu_custom_call.1} parent=1 // pred_fallthru
      _
    %4142 = vsyncpa [#allocation3], 1
    %4143 = vsyncpa [#allocation6], 1
    %4144 = vsyncpa [#allocation4], 1

</llo_original>
